<compile_context>
chip_gen: v5e
topology: v5e:2x2
jax: 0.10.0
libtpu: 0.0.40
codegen_flags: <defaults>
</compile_context>

<pallas_src>
import functools

import jax
import jax.numpy as jnp
import numpy as np
from jax.experimental import pallas as pl
from jax.experimental.pallas import tpu as pltpu

# ---------------- configuration (matches Evolution_ms.__init__ semantics) -------------
RO = 4.0            # snake_config.ro
NP = 128            # self.Np  (number of polygon points; maps to the 128-lane axis)
NN = 9              # self.Nn  (circular-conv kernel size)
N_ITER = 2          # self.iter -> blocks: block, block0, block1
C_FEAT = 6          # cnn_feature channels
C_IN = C_FEAT + 2   # sampled features + relative (x, y)
S_DIM = 32          # snake state dim
H_DIM = 64          # prediction-head hidden dim
N_RES = 2           # residual circular-conv layers inside one SnakeBlock
N_STATES = N_RES + 1


# ------------------------- packed parameter layout (static) ----------------------------
_PACK_ORDER = ['wh', 'wr', 'wf', 'wp1', 'wp2', 'bh', 'br', 'bf', 'bp1', 'bp2']
_PACK_SHAPES = {
    'wh':  (S_DIM, NN * C_IN),                 # (32, 72)  head circ-conv, flattened
    'wr':  (N_RES * S_DIM, NN * S_DIM),        # (64, 288) residual circ-convs, row-stacked
    'wf':  (S_DIM, N_STATES * S_DIM),          # (32, 96)  fusion 1x1 over concat states
    'wp1': (H_DIM, (N_STATES + 1) * S_DIM),    # (64, 128) pred head over [states..., gmax]
    'wp2': (2, H_DIM),                         # (2, 64)
    'bh':  (S_DIM, 1),
    'br':  (N_RES * S_DIM, 1),
    'bf':  (S_DIM, 1),
    'bp1': (H_DIM, 1),
    'bp2': (2, 1),
}


def _build_pack_layout():
    layout = {}
    row = 0
    for name in _PACK_ORDER:
        r, c = _PACK_SHAPES[name]
        layout[name] = (row, r, c)
        row += -(-r // 8) * 8                  # keep every block sublane(8)-aligned
    return layout, row, NN * S_DIM             # widest block (wr) -> 288 cols


PACK_LAYOUT, PACK_ROWS, PACK_COLS = _build_pack_layout()


def _pack_block_params(p):
    """Flatten circ-conv weights to lane-dense 2-D matrices and pack everything into one array."""
    wh = jnp.transpose(p['wh'], (1, 0, 2)).reshape(S_DIM, NN * C_IN)
    wr = jnp.concatenate(
        [jnp.transpose(p['wr'][r], (1, 0, 2)).reshape(S_DIM, NN * S_DIM)
         for r in range(N_RES)], axis=0)
    wf = jnp.transpose(p['wf'], (1, 0, 2)).reshape(S_DIM, N_STATES * S_DIM)
    order = list(range(1, N_STATES + 1)) + [0]          # state chunks first, global-max last
    wp1 = jnp.concatenate([p['wp1'][j] for j in order], axis=1)
    mats = {
        'wh': wh, 'wr': wr, 'wf': wf, 'wp1': wp1, 'wp2': p['wp2'],
        'bh': p['bh'], 'br': p['br'].reshape(N_RES * S_DIM, 1),
        'bf': p['bf'], 'bp1': p['bp1'], 'bp2': p['bp2'],
    }
    packed = jnp.zeros((PACK_ROWS, PACK_COLS), jnp.float32)
    for name in _PACK_ORDER:
        r0, nr, nc = PACK_LAYOUT[name]
        m = mats[name].astype(jnp.float32)
        assert m.shape == (nr, nc), (name, m.shape, (nr, nc))
        packed = packed.at[r0:r0 + nr, 0:nc].set(m)
    return packed


# ================================ Pallas kernel ========================================
def _snake_block_kernel(feat_ref, poly_ref, w_ref, out_ref, slab_ref, state_ref,
                        *, K, n_res, tb, np_):
    """One grid step == `tb` lane-batched polygon instances.

    feat_ref  : (C_IN, tb*NP)   sampled features + relative coords (instance b -> lanes b*NP..)
    poly_ref  : (2, tb*NP)      input polygons (x, y rows)
    w_ref     : (PACK_ROWS, PACK_COLS)  all weights + biases (static row offsets)
    out_ref   : (2, tb*NP)      evolved polygon = poly * ro + offset
    slab_ref  : (K*S, tb*NP)    VMEM scratch: K per-instance-rolled copies of an activation
    state_ref : ((N_RES+2)*S, tb*NP)  VMEM scratch: [x0, x1, ..., global-max broadcast]
    """
    c_in = feat_ref.shape[0]
    s_dim = S_DIM
    n_states = n_res + 1
    c = K // 2

    def get(name, sub=None):
        r0, nr, nc = PACK_LAYOUT[name]
        if sub is not None:
            lo, hi = sub
            return w_ref[r0 + lo:r0 + hi, 0:nc]
        return w_ref[r0:r0 + nr, 0:nc]

    def rolled(x, k):
        sh = (c - k) % np_
        return x if sh == 0 else pltpu.roll(x, shift=sh, axis=1)

    def fill_slab(x, rows):
        # x: (rows, tb*NP) lane-batched activation.  Per-instance circular rolls (XLU) are
        # written at lane offset b*NP; the matmul over the whole slab is then a single MXU op.
        for b in range(tb):
            xb = x[:, b * np_:(b + 1) * np_]
            for k in range(K):
                slab_ref[k * rows:(k + 1) * rows, b * np_:(b + 1) * np_] = rolled(xb, k)

    # ---- head circular conv: one (S, K*C_IN) x (K*C_IN, tb*NP) matmul ----
    fill_slab(feat_ref[...], c_in)
    x0 = jax.nn.relu(
        jnp.dot(get('wh'), slab_ref[0:K * c_in, :],
                preferred_element_type=jnp.float32) + get('bh'))        # (S, tb*NP)
    state_ref[0:s_dim, :] = x0

    # ---- residual circular convs: one (S, K*S) x (K*S, tb*NP) matmul each ----
    xp = x0
    for r in range(n_res):
        fill_slab(xp, s_dim)
        wr = get('wr', (r * s_dim, (r + 1) * s_dim))
        br = get('br', (r * s_dim, (r + 1) * s_dim))
        xr = jax.nn.relu(
            jnp.dot(wr, slab_ref[...], preferred_element_type=jnp.float32) + br) + xp
        state_ref[(r + 1) * s_dim:(r + 2) * s_dim, :] = xr
        xp = xr

    # ---- fusion 1x1 conv over concatenated states + per-instance global max over points ----
    fused = jnp.dot(get('wf'), state_ref[0:n_states * s_dim, :],
                    preferred_element_type=jnp.float32) + get('bf')     # (S, tb*NP)
    for b in range(tb):
        gb = jnp.max(fused[:, b * np_:(b + 1) * np_], axis=1, keepdims=True)   # (S, 1)
        state_ref[n_states * s_dim:(n_states + 1) * s_dim, b * np_:(b + 1) * np_] = (
            jnp.broadcast_to(gb, (s_dim, np_)))

    # ---- prediction head: one matmul over [states..., global chunk] -> ReLU -> 1x1 -> 2 ----
    h = jax.nn.relu(
        jnp.dot(get('wp1'), state_ref[...],
                preferred_element_type=jnp.float32) + get('bp1'))       # (H, tb*NP)
    off = jnp.dot(get('wp2'), h, preferred_element_type=jnp.float32) + get('bp2')  # (2, tb*NP)

    # single lane-dense store for all tb instances
    out_ref[...] = poly_ref[...] * RO + off


def _num_tensorcores():
    # v7x has 2 TensorCores per chip -> 2 parallel grid blocks; v5e/v6e have 1 TC where extra
    # grid steps are just a serial loop, so keep a single step (maximize matmul N width).
    try:
        kind = jax.devices()[0].device_kind.lower()
    except Exception:
        return 1
    return 2 if 'v7' in kind else 1


def snake_block_pallas(params, feat, poly_cf, *, max_tb=32):
    """feat: (Ninst, C_IN, NP), poly_cf: (Ninst, 2, NP) -> (Ninst, 2, NP)."""
    n_inst, c_in, n_pts = feat.shape
    wpack = _pack_block_params(params)

    n_tc = _num_tensorcores()
    tb = max(1, min(max_tb, -(-n_inst // max(1, n_tc))))     # instances per grid step
    n_blocks = -(-n_inst // tb)
    n_pad = n_blocks * tb
    lane_blk = tb * n_pts

    def to_lanes(x):
        # (Ninst, C, NP) -> (C, n_pad*NP) with instance b at lanes [b*NP, (b+1)*NP)
        if n_pad != n_inst:
            x = jnp.concatenate(
                [x, jnp.zeros((n_pad - n_inst,) + x.shape[1:], x.dtype)], axis=0)
        return jnp.transpose(x, (1, 0, 2)).reshape(x.shape[1], n_pad * n_pts)

    feat_l = to_lanes(feat)       # (C_IN, n_pad*NP)
    poly_l = to_lanes(poly_cf)    # (2,    n_pad*NP)

    kernel = functools.partial(_snake_block_kernel, K=NN, n_res=N_RES, tb=tb, np_=n_pts)

    flops = 2 * n_pad * n_pts * (
        S_DIM * NN * C_IN + N_RES * S_DIM * NN * S_DIM + S_DIM * N_STATES * S_DIM
        + H_DIM * (N_STATES + 1) * S_DIM + 2 * H_DIM)
    bytes_accessed = 4 * (feat_l.size + poly_l.size + wpack.size + 2 * n_pad * n_pts)

    out_l = pl.pallas_call(
        kernel,
        out_shape=jax.ShapeDtypeStruct((2, n_pad * n_pts), jnp.float32),
        grid_spec=pltpu.PrefetchScalarGridSpec(
            num_scalar_prefetch=0,
            grid=(n_blocks,),
            in_specs=[pl.BlockSpec((c_in, lane_blk), lambda i: (0, i)),
                      pl.BlockSpec((2, lane_blk), lambda i: (0, i)),
                      pl.BlockSpec((PACK_ROWS, PACK_COLS), lambda i: (0, 0))],
            out_specs=pl.BlockSpec((2, lane_blk), lambda i: (0, i)),
            scratch_shapes=[pltpu.VMEM((NN * S_DIM, lane_blk), jnp.float32),
                            pltpu.VMEM(((N_RES + 2) * S_DIM, lane_blk), jnp.float32)]),
        compiler_params=pltpu.CompilerParams(dimension_semantics=("parallel",)),
        cost_estimate=pl.CostEstimate(flops=flops, transcendentals=0,
                                      bytes_accessed=bytes_accessed),
    )(feat_l, poly_l, wpack)

    out = jnp.transpose(out_l.reshape(2, n_pad, n_pts), (1, 0, 2))   # (n_pad, 2, NP)
    return out[:n_inst]


# ============================ pure-JAX reference (for checking) ========================
def snake_block_reference(params, feat, poly_cf):
    """Uses the original (un-flattened) weights; matmuls forced to HIGHEST precision."""
    c = NN // 2
    P = jax.lax.Precision.HIGHEST

    def mm(a, b):
        return jnp.dot(a, b, precision=P)

    def circ(x, w, b):
        acc = b
        for k in range(NN):
            acc = acc + mm(w[k], jnp.roll(x, (c - k) % x.shape[-1], axis=1))
        return acc

    def one(feat_i, poly_i):
        x0 = jax.nn.relu(circ(feat_i, params['wh'], params['bh']))
        states = [x0]
        xp = x0
        for r in range(N_RES):
            xr = jax.nn.relu(circ(xp, params['wr'][r], params['br'][r])) + xp
            states.append(xr)
            xp = xr
        fused = params['bf']
        for j, s in enumerate(states):
            fused = fused + mm(params['wf'][j], s)
        gmax = jnp.max(fused, axis=1, keepdims=True)
        h = mm(params['wp1'][0], gmax) + params['bp1']
        for j, s in enumerate(states):
            h = h + mm(params['wp1'][j + 1], s)
        h = jax.nn.relu(h)
        off = mm(params['wp2'], h) + params['bp2']
        return poly_i * RO + off

    return jax.vmap(one)(feat, poly_cf)


# ================================= JAX glue =============================================
def bilinear_sample_features(cnn_feature, poly, ind):
    """get_gcn_feature: torch.grid_sample(bilinear, align_corners=False, zeros padding).

    cnn_feature: (B, C, H, W) NCHW; poly: (Ninst, NP, 2) in feature-map coords; ind: (Ninst,)
    returns (Ninst, C, NP)
    """
    B, C, H, W = cnn_feature.shape
    fmaps = cnn_feature[ind]                       # (Ninst, C, H, W)
    x = poly[..., 0] - 0.5                         # align_corners=False pixel mapping
    y = poly[..., 1] - 0.5
    x0 = jnp.floor(x)
    y0 = jnp.floor(y)

    def gather(fm, xi, yi):
        xi_i = xi.astype(jnp.int32)
        yi_i = yi.astype(jnp.int32)
        valid = ((xi_i >= 0) & (xi_i < W) & (yi_i >= 0) & (yi_i < H)).astype(fm.dtype)
        v = fm[:, jnp.clip(yi_i, 0, H - 1), jnp.clip(xi_i, 0, W - 1)]   # (C, NP)
        return v * valid[None, :]

    def per_inst(fm, x, y, x0, y0):
        wx1 = x - x0
        wx0 = 1.0 - wx1
        wy1 = y - y0
        wy0 = 1.0 - wy1
        v00 = gather(fm, x0, y0)
        v10 = gather(fm, x0 + 1.0, y0)
        v01 = gather(fm, x0, y0 + 1.0)
        v11 = gather(fm, x0 + 1.0, y0 + 1.0)
        return v00 * (wx0 * wy0) + v10 * (wx1 * wy0) + v01 * (wx0 * wy1) + v11 * (wx1 * wy1)

    return jax.vmap(per_inst)(fmaps, x, y, x0, y0)


def build_block_input(cnn_feature, poly, ind):
    sampled = bilinear_sample_features(cnn_feature, poly, ind)          # (Ninst, C, NP)
    center = 0.5 * (poly.min(axis=1) + poly.max(axis=1))                # (Ninst, 2)
    rel = poly - center[:, None, :]                                     # (Ninst, NP, 2)
    return jnp.concatenate([sampled, jnp.transpose(rel, (0, 2, 1))], axis=1)  # (Ninst, C+2, NP)


def apply_snake_block(params, cnn_feature, poly, ind, use_pallas=True):
    """inst_evolve_poly: block(cnn_feature, i_it_poly, ind, ct_map=None)."""
    if poly.shape[0] == 0:
        return jnp.zeros_like(poly)
    feat = build_block_input(cnn_feature, poly, ind)
    poly_cf = jnp.transpose(poly, (0, 2, 1))                            # (Ninst, 2, NP)
    fn = snake_block_pallas if use_pallas else snake_block_reference
    out_cf = fn(params, feat, poly_cf)
    return jnp.transpose(out_cf, (0, 2, 1))                             # (Ninst, NP, 2)


def evolution_ms_infer(cnn_feature, ct_hm, init_py, ind, params, use_pallas=True):
    """snake0_snake1_snake2 inference path of Evolution_ms.forward (eval mode)."""
    del ct_hm  # use_aggr_ctfeat_heatmap = False -> ct map unused by the blocks
    output = {'init_py': init_py, 'init_ind': ind}
    py = apply_snake_block(params['block'], cnn_feature, init_py, ind, use_pallas)
    pys = [py / RO]
    for i in range(N_ITER):
        p_in = py / RO
        py = apply_snake_block(params['block' + str(i)], cnn_feature, p_in, ind, use_pallas)
        pys.append(py / RO)
    output.update({'py': pys, 'py_fin': pys[-1]})
    return output


# =============================== parameter init =========================================
def init_snake_block_params(key):
    ks = jax.random.split(key, 10)

    def w(k, shape, fan_in):
        return jax.random.normal(k, shape, jnp.float32) / jnp.sqrt(float(fan_in))

    return {
        'wh':  w(ks[0], (NN, S_DIM, C_IN), NN * C_IN),
        'bh':  0.1 * jax.random.normal(ks[1], (S_DIM, 1), jnp.float32),
        'wr':  w(ks[2], (N_RES, NN, S_DIM, S_DIM), NN * S_DIM),
        'br':  0.1 * jax.random.normal(ks[3], (N_RES, S_DIM, 1), jnp.float32),
        'wf':  w(ks[4], (N_STATES, S_DIM, S_DIM), N_STATES * S_DIM),
        'bf':  0.1 * jax.random.normal(ks[5], (S_DIM, 1), jnp.float32),
        'wp1': w(ks[6], (N_STATES + 1, H_DIM, S_DIM), (N_STATES + 1) * S_DIM),
        'bp1': 0.1 * jax.random.normal(ks[7], (H_DIM, 1), jnp.float32),
        'wp2': w(ks[8], (2, H_DIM), H_DIM),
        'bp2': 0.1 * jax.random.normal(ks[9], (2, 1), jnp.float32),
    }


# ==================================== main ===============================================
if __name__ == "__main__":
    key = jax.random.PRNGKey(0)
    k_feat, k_hm, k_b, k_b0, k_b1 = jax.random.split(key, 5)

    B, H, W = 2, 16, 16
    cnn_feature = jax.random.normal(k_feat, (B, C_FEAT, H, W), jnp.float32)   # NCHW
    ct_hm = jax.random.normal(k_hm, (B, 1, H, W), jnp.float32)                # ignored

    params = {
        'block':  init_snake_block_params(k_b),
        'block0': init_snake_block_params(k_b0),
        'block1': init_snake_block_params(k_b1),
    }

    # synthetic initial polygons (would come from prepare_testing / detection boxes)
    t = jnp.linspace(0.0, 2.0 * jnp.pi, NP, endpoint=False)
    circle = jnp.stack([jnp.cos(t), jnp.sin(t)], axis=-1)                     # (NP, 2)
    centers = jnp.array([[5.0, 6.0], [10.0, 9.0], [7.0, 8.0], [12.0, 4.0]], jnp.float32)
    radii = jnp.array([[3.0, 2.5], [4.0, 3.0], [2.5, 3.5], [3.0, 2.0]], jnp.float32)
    init_py = centers[:, None, :] + radii[:, None, :] * circle[None]          # (4, NP, 2)
    ind = jnp.array([0, 0, 1, 1], jnp.int32)                                  # instance -> batch image

    # jit the whole inference pass so the 3 snake blocks + JAX-side gathers/transposes fuse
    # into one program (removes per-pallas_call launch / HBM round-trip overhead).
    infer_pallas = jax.jit(functools.partial(evolution_ms_infer, use_pallas=True))
    infer_ref = jax.jit(functools.partial(evolution_ms_infer, use_pallas=False))

    out = infer_pallas(cnn_feature, ct_hm, init_py, ind, params)
    py_fin = jax.block_until_ready(out['py_fin'])

    ref = infer_ref(cnn_feature, ct_hm, init_py, ind, params)
    jax.block_until_ready(ref['py_fin'])

    # f32 path on both sides (reference matmuls at HIGHEST precision) -> tight tolerance.
    for got, want in zip(out['py'], ref['py']):
        np.testing.assert_allclose(np.asarray(got), np.asarray(want), rtol=1e-4, atol=1e-3)
    np.testing.assert_allclose(np.asarray(py_fin), np.asarray(ref['py_fin']),
                               rtol=1e-4, atol=1e-3)

    print("KERNEL_OK")
</pallas_src>

<mosaic_0001>
module attributes {stable_mosaic.version = 11 : i64} {
  func.func @_snake_block_kernel(%arg0: i32, %arg1: memref<8x512xf32, #tpu.memory_space<vmem>>, %arg2: memref<2x512xf32, #tpu.memory_space<vmem>>, %arg3: memref<400x288xf32, #tpu.memory_space<vmem>>, %arg4: memref<2x512xf32, #tpu.memory_space<vmem>>, %arg5: memref<288x512xf32, #tpu.memory_space<vmem>>, %arg6: memref<128x512xf32, #tpu.memory_space<vmem>>) attributes {dimension_semantics = [#tpu.dimension_semantics<parallel>], iteration_bounds = array<i64: 1>, scalar_prefetch = 0 : i64, scratch_operands = 2 : i64, tpu.core_type = #tpu.core_type<tc>, window_params = [{transform_indices = @transform_0, window_bounds = array<i64: 8, 512>}, {transform_indices = @transform_1, window_bounds = array<i64: 2, 512>}, {pipeline_mode = #tpu.pipeline_mode<synchronous>, transform_indices = @transform_2, window_bounds = array<i64: 400, 288>}, {transform_indices = @transform_3, window_bounds = array<i64: 2, 512>}]} {
    %c0 = arith.constant 0 : index
    %c0_0 = arith.constant 0 : index
    %0 = vector.load %arg1[%c0, %c0_0] : memref<8x512xf32, #tpu.memory_space<vmem>>, vector<8x512xf32>
    %1 = vector.extract_strided_slice %0 {offsets = [0, 0], sizes = [8, 128], strides = [1, 1]} : vector<8x512xf32> to vector<8x128xf32>
    %c4_i32 = arith.constant 4 : i32
    %2 = tpu.dynamic_rotate %1 by %c4_i32 dim 1 : vector<8x128xf32>, i32 -> vector<8x128xf32>
    %c0_1 = arith.constant 0 : index
    %c0_2 = arith.constant 0 : index
    %3 = vector.load %arg5[%c0_1, %c0_2] : memref<288x512xf32, #tpu.memory_space<vmem>>, vector<8x128xf32>
    tpu.vector_store %arg5[%c0_1, %c0_2], %2 {strides = array<i32>} : memref<288x512xf32, #tpu.memory_space<vmem>>, vector<8x128xf32>,
    %c3_i32 = arith.constant 3 : i32
    %4 = tpu.dynamic_rotate %1 by %c3_i32 dim 1 : vector<8x128xf32>, i32 -> vector<8x128xf32>
    %c8 = arith.constant 8 : index
    %c0_3 = arith.constant 0 : index
    %5 = vector.load %arg5[%c8, %c0_3] : memref<288x512xf32, #tpu.memory_space<vmem>>, vector<8x128xf32>
    tpu.vector_store %arg5[%c8, %c0_3], %4 {strides = array<i32>} : memref<288x512xf32, #tpu.memory_space<vmem>>, vector<8x128xf32>,
    %c2_i32 = arith.constant 2 : i32
    %6 = tpu.dynamic_rotate %1 by %c2_i32 dim 1 : vector<8x128xf32>, i32 -> vector<8x128xf32>
    %c16 = arith.constant 16 : index
    %c0_4 = arith.constant 0 : index
    %7 = vector.load %arg5[%c16, %c0_4] : memref<288x512xf32, #tpu.memory_space<vmem>>, vector<8x128xf32>
    tpu.vector_store %arg5[%c16, %c0_4], %6 {strides = array<i32>} : memref<288x512xf32, #tpu.memory_space<vmem>>, vector<8x128xf32>,
    %c1_i32 = arith.constant 1 : i32
    %8 = tpu.dynamic_rotate %1 by %c1_i32 dim 1 : vector<8x128xf32>, i32 -> vector<8x128xf32>
    %c24 = arith.constant 24 : index
    %c0_5 = arith.constant 0 : index
    %9 = vector.load %arg5[%c24, %c0_5] : memref<288x512xf32, #tpu.memory_space<vmem>>, vector<8x128xf32>
    tpu.vector_store %arg5[%c24, %c0_5], %8 {strides = array<i32>} : memref<288x512xf32, #tpu.memory_space<vmem>>, vector<8x128xf32>,
    %c32 = arith.constant 32 : index
    %c0_6 = arith.constant 0 : index
    %10 = vector.load %arg5[%c32, %c0_6] : memref<288x512xf32, #tpu.memory_space<vmem>>, vector<8x128xf32>
    tpu.vector_store %arg5[%c32, %c0_6], %1 {strides = array<i32>} : memref<288x512xf32, #tpu.memory_space<vmem>>, vector<8x128xf32>,
    %c127_i32 = arith.constant 127 : i32
    %11 = tpu.dynamic_rotate %1 by %c127_i32 dim 1 : vector<8x128xf32>, i32 -> vector<8x128xf32>
    %c40 = arith.constant 40 : index
    %c0_7 = arith.constant 0 : index
    %12 = vector.load %arg5[%c40, %c0_7] : memref<288x512xf32, #tpu.memory_space<vmem>>, vector<8x128xf32>
    tpu.vector_store %arg5[%c40, %c0_7], %11 {strides = array<i32>} : memref<288x512xf32, #tpu.memory_space<vmem>>, vector<8x128xf32>,
    %c126_i32 = arith.constant 126 : i32
    %13 = tpu.dynamic_rotate %1 by %c126_i32 dim 1 : vector<8x128xf32>, i32 -> vector<8x128xf32>
    %c48 = arith.constant 48 : index
    %c0_8 = arith.constant 0 : index
    %14 = vector.load %arg5[%c48, %c0_8] : memref<288x512xf32, #tpu.memory_space<vmem>>, vector<8x128xf32>
    tpu.vector_store %arg5[%c48, %c0_8], %13 {strides = array<i32>} : memref<288x512xf32, #tpu.memory_space<vmem>>, vector<8x128xf32>,
    %c125_i32 = arith.constant 125 : i32
    %15 = tpu.dynamic_rotate %1 by %c125_i32 dim 1 : vector<8x128xf32>, i32 -> vector<8x128xf32>
    %c56 = arith.constant 56 : index
    %c0_9 = arith.constant 0 : index
    %16 = vector.load %arg5[%c56, %c0_9] : memref<288x512xf32, #tpu.memory_space<vmem>>, vector<8x128xf32>
    tpu.vector_store %arg5[%c56, %c0_9], %15 {strides = array<i32>} : memref<288x512xf32, #tpu.memory_space<vmem>>, vector<8x128xf32>,
    %c124_i32 = arith.constant 124 : i32
    %17 = tpu.dynamic_rotate %1 by %c124_i32 dim 1 : vector<8x128xf32>, i32 -> vector<8x128xf32>
    %c64 = arith.constant 64 : index
    %c0_10 = arith.constant 0 : index
    %18 = vector.load %arg5[%c64, %c0_10] : memref<288x512xf32, #tpu.memory_space<vmem>>, vector<8x128xf32>
    tpu.vector_store %arg5[%c64, %c0_10], %17 {strides = array<i32>} : memref<288x512xf32, #tpu.memory_space<vmem>>, vector<8x128xf32>,
    %19 = vector.extract_strided_slice %0 {offsets = [0, 128], sizes = [8, 128], strides = [1, 1]} : vector<8x512xf32> to vector<8x128xf32>
    %c4_i32_11 = arith.constant 4 : i32
    %20 = tpu.dynamic_rotate %19 by %c4_i32_11 dim 1 : vector<8x128xf32>, i32 -> vector<8x128xf32>
    %c0_12 = arith.constant 0 : index
    %c128 = arith.constant 128 : index
    %21 = vector.load %arg5[%c0_12, %c128] : memref<288x512xf32, #tpu.memory_space<vmem>>, vector<8x128xf32>
    tpu.vector_store %arg5[%c0_12, %c128], %20 {strides = array<i32>} : memref<288x512xf32, #tpu.memory_space<vmem>>, vector<8x128xf32>,
    %c3_i32_13 = arith.constant 3 : i32
    %22 = tpu.dynamic_rotate %19 by %c3_i32_13 dim 1 : vector<8x128xf32>, i32 -> vector<8x128xf32>
    %c8_14 = arith.constant 8 : index
    %c128_15 = arith.constant 128 : index
    %23 = vector.load %arg5[%c8_14, %c128_15] : memref<288x512xf32, #tpu.memory_space<vmem>>, vector<8x128xf32>
    tpu.vector_store %arg5[%c8_14, %c128_15], %22 {strides = array<i32>} : memref<288x512xf32, #tpu.memory_space<vmem>>, vector<8x128xf32>,
    %c2_i32_16 = arith.constant 2 : i32
    %24 = tpu.dynamic_rotate %19 by %c2_i32_16 dim 1 : vector<8x128xf32>, i32 -> vector<8x128xf32>
    %c16_17 = arith.constant 16 : index
    %c128_18 = arith.constant 128 : index
    %25 = vector.load %arg5[%c16_17, %c128_18] : memref<288x512xf32, #tpu.memory_space<vmem>>, vector<8x128xf32>
    tpu.vector_store %arg5[%c16_17, %c128_18], %24 {strides = array<i32>} : memref<288x512xf32, #tpu.memory_space<vmem>>, vector<8x128xf32>,
    %c1_i32_19 = arith.constant 1 : i32
    %26 = tpu.dynamic_rotate %19 by %c1_i32_19 dim 1 : vector<8x128xf32>, i32 -> vector<8x128xf32>
    %c24_20 = arith.constant 24 : index
    %c128_21 = arith.constant 128 : index
    %27 = vector.load %arg5[%c24_20, %c128_21] : memref<288x512xf32, #tpu.memory_space<vmem>>, vector<8x128xf32>
    tpu.vector_store %arg5[%c24_20, %c128_21], %26 {strides = array<i32>} : memref<288x512xf32, #tpu.memory_space<vmem>>, vector<8x128xf32>,
    %c32_22 = arith.constant 32 : index
    %c128_23 = arith.constant 128 : index
    %28 = vector.load %arg5[%c32_22, %c128_23] : memref<288x512xf32, #tpu.memory_space<vmem>>, vector<8x128xf32>
    tpu.vector_store %arg5[%c32_22, %c128_23], %19 {strides = array<i32>} : memref<288x512xf32, #tpu.memory_space<vmem>>, vector<8x128xf32>,
    %c127_i32_24 = arith.constant 127 : i32
    %29 = tpu.dynamic_rotate %19 by %c127_i32_24 dim 1 : vector<8x128xf32>, i32 -> vector<8x128xf32>
    %c40_25 = arith.constant 40 : index
    %c128_26 = arith.constant 128 : index
    %30 = vector.load %arg5[%c40_25, %c128_26] : memref<288x512xf32, #tpu.memory_space<vmem>>, vector<8x128xf32>
    tpu.vector_store %arg5[%c40_25, %c128_26], %29 {strides = array<i32>} : memref<288x512xf32, #tpu.memory_space<vmem>>, vector<8x128xf32>,
    %c126_i32_27 = arith.constant 126 : i32
    %31 = tpu.dynamic_rotate %19 by %c126_i32_27 dim 1 : vector<8x128xf32>, i32 -> vector<8x128xf32>
    %c48_28 = arith.constant 48 : index
    %c128_29 = arith.constant 128 : index
    %32 = vector.load %arg5[%c48_28, %c128_29] : memref<288x512xf32, #tpu.memory_space<vmem>>, vector<8x128xf32>
    tpu.vector_store %arg5[%c48_28, %c128_29], %31 {strides = array<i32>} : memref<288x512xf32, #tpu.memory_space<vmem>>, vector<8x128xf32>,
    %c125_i32_30 = arith.constant 125 : i32
    %33 = tpu.dynamic_rotate %19 by %c125_i32_30 dim 1 : vector<8x128xf32>, i32 -> vector<8x128xf32>
    %c56_31 = arith.constant 56 : index
    %c128_32 = arith.constant 128 : index
    %34 = vector.load %arg5[%c56_31, %c128_32] : memref<288x512xf32, #tpu.memory_space<vmem>>, vector<8x128xf32>
    tpu.vector_store %arg5[%c56_31, %c128_32], %33 {strides = array<i32>} : memref<288x512xf32, #tpu.memory_space<vmem>>, vector<8x128xf32>,
    %c124_i32_33 = arith.constant 124 : i32
    %35 = tpu.dynamic_rotate %19 by %c124_i32_33 dim 1 : vector<8x128xf32>, i32 -> vector<8x128xf32>
    %c64_34 = arith.constant 64 : index
    %c128_35 = arith.constant 128 : index
    %36 = vector.load %arg5[%c64_34, %c128_35] : memref<288x512xf32, #tpu.memory_space<vmem>>, vector<8x128xf32>
    tpu.vector_store %arg5[%c64_34, %c128_35], %35 {strides = array<i32>} : memref<288x512xf32, #tpu.memory_space<vmem>>, vector<8x128xf32>,
    %37 = vector.extract_strided_slice %0 {offsets = [0, 256], sizes = [8, 128], strides = [1, 1]} : vector<8x512xf32> to vector<8x128xf32>
    %c4_i32_36 = arith.constant 4 : i32
    %38 = tpu.dynamic_rotate %37 by %c4_i32_36 dim 1 : vector<8x128xf32>, i32 -> vector<8x128xf32>
    %c0_37 = arith.constant 0 : index
    %c256 = arith.constant 256 : index
    %39 = vector.load %arg5[%c0_37, %c256] : memref<288x512xf32, #tpu.memory_space<vmem>>, vector<8x128xf32>
    tpu.vector_store %arg5[%c0_37, %c256], %38 {strides = array<i32>} : memref<288x512xf32, #tpu.memory_space<vmem>>, vector<8x128xf32>,
    %c3_i32_38 = arith.constant 3 : i32
    %40 = tpu.dynamic_rotate %37 by %c3_i32_38 dim 1 : vector<8x128xf32>, i32 -> vector<8x128xf32>
    %c8_39 = arith.constant 8 : index
    %c256_40 = arith.constant 256 : index
    %41 = vector.load %arg5[%c8_39, %c256_40] : memref<288x512xf32, #tpu.memory_space<vmem>>, vector<8x128xf32>
    tpu.vector_store %arg5[%c8_39, %c256_40], %40 {strides = array<i32>} : memref<288x512xf32, #tpu.memory_space<vmem>>, vector<8x128xf32>,
    %c2_i32_41 = arith.constant 2 : i32
    %42 = tpu.dynamic_rotate %37 by %c2_i32_41 dim 1 : vector<8x128xf32>, i32 -> vector<8x128xf32>
    %c16_42 = arith.constant 16 : index
    %c256_43 = arith.constant 256 : index
    %43 = vector.load %arg5[%c16_42, %c256_43] : memref<288x512xf32, #tpu.memory_space<vmem>>, vector<8x128xf32>
    tpu.vector_store %arg5[%c16_42, %c256_43], %42 {strides = array<i32>} : memref<288x512xf32, #tpu.memory_space<vmem>>, vector<8x128xf32>,
    %c1_i32_44 = arith.constant 1 : i32
    %44 = tpu.dynamic_rotate %37 by %c1_i32_44 dim 1 : vector<8x128xf32>, i32 -> vector<8x128xf32>
    %c24_45 = arith.constant 24 : index
    %c256_46 = arith.constant 256 : index
    %45 = vector.load %arg5[%c24_45, %c256_46] : memref<288x512xf32, #tpu.memory_space<vmem>>, vector<8x128xf32>
    tpu.vector_store %arg5[%c24_45, %c256_46], %44 {strides = array<i32>} : memref<288x512xf32, #tpu.memory_space<vmem>>, vector<8x128xf32>,
    %c32_47 = arith.constant 32 : index
    %c256_48 = arith.constant 256 : index
    %46 = vector.load %arg5[%c32_47, %c256_48] : memref<288x512xf32, #tpu.memory_space<vmem>>, vector<8x128xf32>
    tpu.vector_store %arg5[%c32_47, %c256_48], %37 {strides = array<i32>} : memref<288x512xf32, #tpu.memory_space<vmem>>, vector<8x128xf32>,
    %c127_i32_49 = arith.constant 127 : i32
    %47 = tpu.dynamic_rotate %37 by %c127_i32_49 dim 1 : vector<8x128xf32>, i32 -> vector<8x128xf32>
    %c40_50 = arith.constant 40 : index
    %c256_51 = arith.constant 256 : index
    %48 = vector.load %arg5[%c40_50, %c256_51] : memref<288x512xf32, #tpu.memory_space<vmem>>, vector<8x128xf32>
    tpu.vector_store %arg5[%c40_50, %c256_51], %47 {strides = array<i32>} : memref<288x512xf32, #tpu.memory_space<vmem>>, vector<8x128xf32>,
    %c126_i32_52 = arith.constant 126 : i32
    %49 = tpu.dynamic_rotate %37 by %c126_i32_52 dim 1 : vector<8x128xf32>, i32 -> vector<8x128xf32>
    %c48_53 = arith.constant 48 : index
    %c256_54 = arith.constant 256 : index
    %50 = vector.load %arg5[%c48_53, %c256_54] : memref<288x512xf32, #tpu.memory_space<vmem>>, vector<8x128xf32>
    tpu.vector_store %arg5[%c48_53, %c256_54], %49 {strides = array<i32>} : memref<288x512xf32, #tpu.memory_space<vmem>>, vector<8x128xf32>,
    %c125_i32_55 = arith.constant 125 : i32
    %51 = tpu.dynamic_rotate %37 by %c125_i32_55 dim 1 : vector<8x128xf32>, i32 -> vector<8x128xf32>
    %c56_56 = arith.constant 56 : index
    %c256_57 = arith.constant 256 : index
    %52 = vector.load %arg5[%c56_56, %c256_57] : memref<288x512xf32, #tpu.memory_space<vmem>>, vector<8x128xf32>
    tpu.vector_store %arg5[%c56_56, %c256_57], %51 {strides = array<i32>} : memref<288x512xf32, #tpu.memory_space<vmem>>, vector<8x128xf32>,
    %c124_i32_58 = arith.constant 124 : i32
    %53 = tpu.dynamic_rotate %37 by %c124_i32_58 dim 1 : vector<8x128xf32>, i32 -> vector<8x128xf32>
    %c64_59 = arith.constant 64 : index
    %c256_60 = arith.constant 256 : index
    %54 = vector.load %arg5[%c64_59, %c256_60] : memref<288x512xf32, #tpu.memory_space<vmem>>, vector<8x128xf32>
    tpu.vector_store %arg5[%c64_59, %c256_60], %53 {strides = array<i32>} : memref<288x512xf32, #tpu.memory_space<vmem>>, vector<8x128xf32>,
    %55 = vector.extract_strided_slice %0 {offsets = [0, 384], sizes = [8, 128], strides = [1, 1]} : vector<8x512xf32> to vector<8x128xf32>
    %c4_i32_61 = arith.constant 4 : i32
    %56 = tpu.dynamic_rotate %55 by %c4_i32_61 dim 1 : vector<8x128xf32>, i32 -> vector<8x128xf32>
    %c0_62 = arith.constant 0 : index
    %c384 = arith.constant 384 : index
    %57 = vector.load %arg5[%c0_62, %c384] : memref<288x512xf32, #tpu.memory_space<vmem>>, vector<8x128xf32>
    tpu.vector_store %arg5[%c0_62, %c384], %56 {strides = array<i32>} : memref<288x512xf32, #tpu.memory_space<vmem>>, vector<8x128xf32>,
    %c3_i32_63 = arith.constant 3 : i32
    %58 = tpu.dynamic_rotate %55 by %c3_i32_63 dim 1 : vector<8x128xf32>, i32 -> vector<8x128xf32>
    %c8_64 = arith.constant 8 : index
    %c384_65 = arith.constant 384 : index
    %59 = vector.load %arg5[%c8_64, %c384_65] : memref<288x512xf32, #tpu.memory_space<vmem>>, vector<8x128xf32>
    tpu.vector_store %arg5[%c8_64, %c384_65], %58 {strides = array<i32>} : memref<288x512xf32, #tpu.memory_space<vmem>>, vector<8x128xf32>,
    %c2_i32_66 = arith.constant 2 : i32
    %60 = tpu.dynamic_rotate %55 by %c2_i32_66 dim 1 : vector<8x128xf32>, i32 -> vector<8x128xf32>
    %c16_67 = arith.constant 16 : index
    %c384_68 = arith.constant 384 : index
    %61 = vector.load %arg5[%c16_67, %c384_68] : memref<288x512xf32, #tpu.memory_space<vmem>>, vector<8x128xf32>
    tpu.vector_store %arg5[%c16_67, %c384_68], %60 {strides = array<i32>} : memref<288x512xf32, #tpu.memory_space<vmem>>, vector<8x128xf32>,
    %c1_i32_69 = arith.constant 1 : i32
    %62 = tpu.dynamic_rotate %55 by %c1_i32_69 dim 1 : vector<8x128xf32>, i32 -> vector<8x128xf32>
    %c24_70 = arith.constant 24 : index
    %c384_71 = arith.constant 384 : index
    %63 = vector.load %arg5[%c24_70, %c384_71] : memref<288x512xf32, #tpu.memory_space<vmem>>, vector<8x128xf32>
    tpu.vector_store %arg5[%c24_70, %c384_71], %62 {strides = array<i32>} : memref<288x512xf32, #tpu.memory_space<vmem>>, vector<8x128xf32>,
    %c32_72 = arith.constant 32 : index
    %c384_73 = arith.constant 384 : index
    %64 = vector.load %arg5[%c32_72, %c384_73] : memref<288x512xf32, #tpu.memory_space<vmem>>, vector<8x128xf32>
    tpu.vector_store %arg5[%c32_72, %c384_73], %55 {strides = array<i32>} : memref<288x512xf32, #tpu.memory_space<vmem>>, vector<8x128xf32>,
    %c127_i32_74 = arith.constant 127 : i32
    %65 = tpu.dynamic_rotate %55 by %c127_i32_74 dim 1 : vector<8x128xf32>, i32 -> vector<8x128xf32>
    %c40_75 = arith.constant 40 : index
    %c384_76 = arith.constant 384 : index
    %66 = vector.load %arg5[%c40_75, %c384_76] : memref<288x512xf32, #tpu.memory_space<vmem>>, vector<8x128xf32>
    tpu.vector_store %arg5[%c40_75, %c384_76], %65 {strides = array<i32>} : memref<288x512xf32, #tpu.memory_space<vmem>>, vector<8x128xf32>,
    %c126_i32_77 = arith.constant 126 : i32
    %67 = tpu.dynamic_rotate %55 by %c126_i32_77 dim 1 : vector<8x128xf32>, i32 -> vector<8x128xf32>
    %c48_78 = arith.constant 48 : index
    %c384_79 = arith.constant 384 : index
    %68 = vector.load %arg5[%c48_78, %c384_79] : memref<288x512xf32, #tpu.memory_space<vmem>>, vector<8x128xf32>
    tpu.vector_store %arg5[%c48_78, %c384_79], %67 {strides = array<i32>} : memref<288x512xf32, #tpu.memory_space<vmem>>, vector<8x128xf32>,
    %c125_i32_80 = arith.constant 125 : i32
    %69 = tpu.dynamic_rotate %55 by %c125_i32_80 dim 1 : vector<8x128xf32>, i32 -> vector<8x128xf32>
    %c56_81 = arith.constant 56 : index
    %c384_82 = arith.constant 384 : index
    %70 = vector.load %arg5[%c56_81, %c384_82] : memref<288x512xf32, #tpu.memory_space<vmem>>, vector<8x128xf32>
    tpu.vector_store %arg5[%c56_81, %c384_82], %69 {strides = array<i32>} : memref<288x512xf32, #tpu.memory_space<vmem>>, vector<8x128xf32>,
    %c124_i32_83 = arith.constant 124 : i32
    %71 = tpu.dynamic_rotate %55 by %c124_i32_83 dim 1 : vector<8x128xf32>, i32 -> vector<8x128xf32>
    %c64_84 = arith.constant 64 : index
    %c384_85 = arith.constant 384 : index
    %72 = vector.load %arg5[%c64_84, %c384_85] : memref<288x512xf32, #tpu.memory_space<vmem>>, vector<8x128xf32>
    tpu.vector_store %arg5[%c64_84, %c384_85], %71 {strides = array<i32>} : memref<288x512xf32, #tpu.memory_space<vmem>>, vector<8x128xf32>,
    %c0_86 = arith.constant 0 : index
    %c0_87 = arith.constant 0 : index
    %73 = vector.load %arg3[%c0_86, %c0_87] : memref<400x288xf32, #tpu.memory_space<vmem>>, vector<32x72xf32>
    %c0_88 = arith.constant 0 : index
    %c0_89 = arith.constant 0 : index
    %74 = vector.load %arg5[%c0_88, %c0_89] : memref<288x512xf32, #tpu.memory_space<vmem>>, vector<72x512xf32>
    %cst = arith.constant dense<0.000000e+00> : vector<32x512xf32>
    %75 = tpu.matmul %73, %74, %cst {dimension_numbers = #tpu.dot_dimension_numbers<[1], [0], [0], [1], [0, 0, 1, 1], [], []>} : vector<32x72xf32>, vector<72x512xf32>, vector<32x512xf32> -> vector<32x512xf32>
    %c200 = arith.constant 200 : index
    %c0_90 = arith.constant 0 : index
    %76 = vector.load %arg3[%c200, %c0_90] : memref<400x288xf32, #tpu.memory_space<vmem>>, vector<32x1xf32>
    %77 = vector.broadcast %76 : vector<32x1xf32> to vector<32x512xf32>
    %78 = arith.addf %75, %77 : vector<32x512xf32>
    %cst_91 = arith.constant 0.000000e+00 : f32
    %79 = vector.broadcast %cst_91 : f32 to vector<32x512xf32>
    %80 = arith.maximumf %78, %79 : vector<32x512xf32>
    %c0_92 = arith.constant 0 : index
    %c0_93 = arith.constant 0 : index
    %81 = vector.load %arg6[%c0_92, %c0_93] : memref<128x512xf32, #tpu.memory_space<vmem>>, vector<32x512xf32>
    tpu.vector_store %arg6[%c0_92, %c0_93], %80 {strides = array<i32>} : memref<128x512xf32, #tpu.memory_space<vmem>>, vector<32x512xf32>,
    %82 = vector.extract_strided_slice %80 {offsets = [0, 0], sizes = [32, 128], strides = [1, 1]} : vector<32x512xf32> to vector<32x128xf32>
    %c4_i32_94 = arith.constant 4 : i32
    %83 = tpu.dynamic_rotate %82 by %c4_i32_94 dim 1 : vector<32x128xf32>, i32 -> vector<32x128xf32>
    %c0_95 = arith.constant 0 : index
    %c0_96 = arith.constant 0 : index
    %84 = vector.load %arg5[%c0_95, %c0_96] : memref<288x512xf32, #tpu.memory_space<vmem>>, vector<32x128xf32>
    tpu.vector_store %arg5[%c0_95, %c0_96], %83 {strides = array<i32>} : memref<288x512xf32, #tpu.memory_space<vmem>>, vector<32x128xf32>,
    %c3_i32_97 = arith.constant 3 : i32
    %85 = tpu.dynamic_rotate %82 by %c3_i32_97 dim 1 : vector<32x128xf32>, i32 -> vector<32x128xf32>
    %c32_98 = arith.constant 32 : index
    %c0_99 = arith.constant 0 : index
    %86 = vector.load %arg5[%c32_98, %c0_99] : memref<288x512xf32, #tpu.memory_space<vmem>>, vector<32x128xf32>
    tpu.vector_store %arg5[%c32_98, %c0_99], %85 {strides = array<i32>} : memref<288x512xf32, #tpu.memory_space<vmem>>, vector<32x128xf32>,
    %c2_i32_100 = arith.constant 2 : i32
    %87 = tpu.dynamic_rotate %82 by %c2_i32_100 dim 1 : vector<32x128xf32>, i32 -> vector<32x128xf32>
    %c64_101 = arith.constant 64 : index
    %c0_102 = arith.constant 0 : index
    %88 = vector.load %arg5[%c64_101, %c0_102] : memref<288x512xf32, #tpu.memory_space<vmem>>, vector<32x128xf32>
    tpu.vector_store %arg5[%c64_101, %c0_102], %87 {strides = array<i32>} : memref<288x512xf32, #tpu.memory_space<vmem>>, vector<32x128xf32>,
    %c1_i32_103 = arith.constant 1 : i32
    %89 = tpu.dynamic_rotate %82 by %c1_i32_103 dim 1 : vector<32x128xf32>, i32 -> vector<32x128xf32>
    %c96 = arith.constant 96 : index
    %c0_104 = arith.constant 0 : index
    %90 = vector.load %arg5[%c96, %c0_104] : memref<288x512xf32, #tpu.memory_space<vmem>>, vector<32x128xf32>
    tpu.vector_store %arg5[%c96, %c0_104], %89 {strides = array<i32>} : memref<288x512xf32, #tpu.memory_space<vmem>>, vector<32x128xf32>,
    %c128_105 = arith.constant 128 : index
    %c0_106 = arith.constant 0 : index
    %91 = vector.load %arg5[%c128_105, %c0_106] : memref<288x512xf32, #tpu.memory_space<vmem>>, vector<32x128xf32>
    tpu.vector_store %arg5[%c128_105, %c0_106], %82 {strides = array<i32>} : memref<288x512xf32, #tpu.memory_space<vmem>>, vector<32x128xf32>,
    %c127_i32_107 = arith.constant 127 : i32
    %92 = tpu.dynamic_rotate %82 by %c127_i32_107 dim 1 : vector<32x128xf32>, i32 -> vector<32x128xf32>
    %c160 = arith.constant 160 : index
    %c0_108 = arith.constant 0 : index
    %93 = vector.load %arg5[%c160, %c0_108] : memref<288x512xf32, #tpu.memory_space<vmem>>, vector<32x128xf32>
    tpu.vector_store %arg5[%c160, %c0_108], %92 {strides = array<i32>} : memref<288x512xf32, #tpu.memory_space<vmem>>, vector<32x128xf32>,
    %c126_i32_109 = arith.constant 126 : i32
    %94 = tpu.dynamic_rotate %82 by %c126_i32_109 dim 1 : vector<32x128xf32>, i32 -> vector<32x128xf32>
    %c192 = arith.constant 192 : index
    %c0_110 = arith.constant 0 : index
    %95 = vector.load %arg5[%c192, %c0_110] : memref<288x512xf32, #tpu.memory_space<vmem>>, vector<32x128xf32>
    tpu.vector_store %arg5[%c192, %c0_110], %94 {strides = array<i32>} : memref<288x512xf32, #tpu.memory_space<vmem>>, vector<32x128xf32>,
    %c125_i32_111 = arith.constant 125 : i32
    %96 = tpu.dynamic_rotate %82 by %c125_i32_111 dim 1 : vector<32x128xf32>, i32 -> vector<32x128xf32>
    %c224 = arith.constant 224 : index
    %c0_112 = arith.constant 0 : index
    %97 = vector.load %arg5[%c224, %c0_112] : memref<288x512xf32, #tpu.memory_space<vmem>>, vector<32x128xf32>
    tpu.vector_store %arg5[%c224, %c0_112], %96 {strides = array<i32>} : memref<288x512xf32, #tpu.memory_space<vmem>>, vector<32x128xf32>,
    %c124_i32_113 = arith.constant 124 : i32
    %98 = tpu.dynamic_rotate %82 by %c124_i32_113 dim 1 : vector<32x128xf32>, i32 -> vector<32x128xf32>
    %c256_114 = arith.constant 256 : index
    %c0_115 = arith.constant 0 : index
    %99 = vector.load %arg5[%c256_114, %c0_115] : memref<288x512xf32, #tpu.memory_space<vmem>>, vector<32x128xf32>
    tpu.vector_store %arg5[%c256_114, %c0_115], %98 {strides = array<i32>} : memref<288x512xf32, #tpu.memory_space<vmem>>, vector<32x128xf32>,
    %100 = vector.extract_strided_slice %80 {offsets = [0, 128], sizes = [32, 128], strides = [1, 1]} : vector<32x512xf32> to vector<32x128xf32>
    %c4_i32_116 = arith.constant 4 : i32
    %101 = tpu.dynamic_rotate %100 by %c4_i32_116 dim 1 : vector<32x128xf32>, i32 -> vector<32x128xf32>
    %c0_117 = arith.constant 0 : index
    %c128_118 = arith.constant 128 : index
    %102 = vector.load %arg5[%c0_117, %c128_118] : memref<288x512xf32, #tpu.memory_space<vmem>>, vector<32x128xf32>
    tpu.vector_store %arg5[%c0_117, %c128_118], %101 {strides = array<i32>} : memref<288x512xf32, #tpu.memory_space<vmem>>, vector<32x128xf32>,
    %c3_i32_119 = arith.constant 3 : i32
    %103 = tpu.dynamic_rotate %100 by %c3_i32_119 dim 1 : vector<32x128xf32>, i32 -> vector<32x128xf32>
    %c32_120 = arith.constant 32 : index
    %c128_121 = arith.constant 128 : index
    %104 = vector.load %arg5[%c32_120, %c128_121] : memref<288x512xf32, #tpu.memory_space<vmem>>, vector<32x128xf32>
    tpu.vector_store %arg5[%c32_120, %c128_121], %103 {strides = array<i32>} : memref<288x512xf32, #tpu.memory_space<vmem>>, vector<32x128xf32>,
    %c2_i32_122 = arith.constant 2 : i32
    %105 = tpu.dynamic_rotate %100 by %c2_i32_122 dim 1 : vector<32x128xf32>, i32 -> vector<32x128xf32>
    %c64_123 = arith.constant 64 : index
    %c128_124 = arith.constant 128 : index
    %106 = vector.load %arg5[%c64_123, %c128_124] : memref<288x512xf32, #tpu.memory_space<vmem>>, vector<32x128xf32>
    tpu.vector_store %arg5[%c64_123, %c128_124], %105 {strides = array<i32>} : memref<288x512xf32, #tpu.memory_space<vmem>>, vector<32x128xf32>,
    %c1_i32_125 = arith.constant 1 : i32
    %107 = tpu.dynamic_rotate %100 by %c1_i32_125 dim 1 : vector<32x128xf32>, i32 -> vector<32x128xf32>
    %c96_126 = arith.constant 96 : index
    %c128_127 = arith.constant 128 : index
    %108 = vector.load %arg5[%c96_126, %c128_127] : memref<288x512xf32, #tpu.memory_space<vmem>>, vector<32x128xf32>
    tpu.vector_store %arg5[%c96_126, %c128_127], %107 {strides = array<i32>} : memref<288x512xf32, #tpu.memory_space<vmem>>, vector<32x128xf32>,
    %c128_128 = arith.constant 128 : index
    %c128_129 = arith.constant 128 : index
    %109 = vector.load %arg5[%c128_128, %c128_129] : memref<288x512xf32, #tpu.memory_space<vmem>>, vector<32x128xf32>
    tpu.vector_store %arg5[%c128_128, %c128_129], %100 {strides = array<i32>} : memref<288x512xf32, #tpu.memory_space<vmem>>, vector<32x128xf32>,
    %c127_i32_130 = arith.constant 127 : i32
    %110 = tpu.dynamic_rotate %100 by %c127_i32_130 dim 1 : vector<32x128xf32>, i32 -> vector<32x128xf32>
    %c160_131 = arith.constant 160 : index
    %c128_132 = arith.constant 128 : index
    %111 = vector.load %arg5[%c160_131, %c128_132] : memref<288x512xf32, #tpu.memory_space<vmem>>, vector<32x128xf32>
    tpu.vector_store %arg5[%c160_131, %c128_132], %110 {strides = array<i32>} : memref<288x512xf32, #tpu.memory_space<vmem>>, vector<32x128xf32>,
    %c126_i32_133 = arith.constant 126 : i32
    %112 = tpu.dynamic_rotate %100 by %c126_i32_133 dim 1 : vector<32x128xf32>, i32 -> vector<32x128xf32>
    %c192_134 = arith.constant 192 : index
    %c128_135 = arith.constant 128 : index
    %113 = vector.load %arg5[%c192_134, %c128_135] : memref<288x512xf32, #tpu.memory_space<vmem>>, vector<32x128xf32>
    tpu.vector_store %arg5[%c192_134, %c128_135], %112 {strides = array<i32>} : memref<288x512xf32, #tpu.memory_space<vmem>>, vector<32x128xf32>,
    %c125_i32_136 = arith.constant 125 : i32
    %114 = tpu.dynamic_rotate %100 by %c125_i32_136 dim 1 : vector<32x128xf32>, i32 -> vector<32x128xf32>
    %c224_137 = arith.constant 224 : index
    %c128_138 = arith.constant 128 : index
    %115 = vector.load %arg5[%c224_137, %c128_138] : memref<288x512xf32, #tpu.memory_space<vmem>>, vector<32x128xf32>
    tpu.vector_store %arg5[%c224_137, %c128_138], %114 {strides = array<i32>} : memref<288x512xf32, #tpu.memory_space<vmem>>, vector<32x128xf32>,
    %c124_i32_139 = arith.constant 124 : i32
    %116 = tpu.dynamic_rotate %100 by %c124_i32_139 dim 1 : vector<32x128xf32>, i32 -> vector<32x128xf32>
    %c256_140 = arith.constant 256 : index
    %c128_141 = arith.constant 128 : index
    %117 = vector.load %arg5[%c256_140, %c128_141] : memref<288x512xf32, #tpu.memory_space<vmem>>, vector<32x128xf32>
    tpu.vector_store %arg5[%c256_140, %c128_141], %116 {strides = array<i32>} : memref<288x512xf32, #tpu.memory_space<vmem>>, vector<32x128xf32>,
    %118 = vector.extract_strided_slice %80 {offsets = [0, 256], sizes = [32, 128], strides = [1, 1]} : vector<32x512xf32> to vector<32x128xf32>
    %c4_i32_142 = arith.constant 4 : i32
    %119 = tpu.dynamic_rotate %118 by %c4_i32_142 dim 1 : vector<32x128xf32>, i32 -> vector<32x128xf32>
    %c0_143 = arith.constant 0 : index
    %c256_144 = arith.constant 256 : index
    %120 = vector.load %arg5[%c0_143, %c256_144] : memref<288x512xf32, #tpu.memory_space<vmem>>, vector<32x128xf32>
    tpu.vector_store %arg5[%c0_143, %c256_144], %119 {strides = array<i32>} : memref<288x512xf32, #tpu.memory_space<vmem>>, vector<32x128xf32>,
    %c3_i32_145 = arith.constant 3 : i32
    %121 = tpu.dynamic_rotate %118 by %c3_i32_145 dim 1 : vector<32x128xf32>, i32 -> vector<32x128xf32>
    %c32_146 = arith.constant 32 : index
    %c256_147 = arith.constant 256 : index
    %122 = vector.load %arg5[%c32_146, %c256_147] : memref<288x512xf32, #tpu.memory_space<vmem>>, vector<32x128xf32>
    tpu.vector_store %arg5[%c32_146, %c256_147], %121 {strides = array<i32>} : memref<288x512xf32, #tpu.memory_space<vmem>>, vector<32x128xf32>,
    %c2_i32_148 = arith.constant 2 : i32
    %123 = tpu.dynamic_rotate %118 by %c2_i32_148 dim 1 : vector<32x128xf32>, i32 -> vector<32x128xf32>
    %c64_149 = arith.constant 64 : index
    %c256_150 = arith.constant 256 : index
    %124 = vector.load %arg5[%c64_149, %c256_150] : memref<288x512xf32, #tpu.memory_space<vmem>>, vector<32x128xf32>
    tpu.vector_store %arg5[%c64_149, %c256_150], %123 {strides = array<i32>} : memref<288x512xf32, #tpu.memory_space<vmem>>, vector<32x128xf32>,
    %c1_i32_151 = arith.constant 1 : i32
    %125 = tpu.dynamic_rotate %118 by %c1_i32_151 dim 1 : vector<32x128xf32>, i32 -> vector<32x128xf32>
    %c96_152 = arith.constant 96 : index
    %c256_153 = arith.constant 256 : index
    %126 = vector.load %arg5[%c96_152, %c256_153] : memref<288x512xf32, #tpu.memory_space<vmem>>, vector<32x128xf32>
    tpu.vector_store %arg5[%c96_152, %c256_153], %125 {strides = array<i32>} : memref<288x512xf32, #tpu.memory_space<vmem>>, vector<32x128xf32>,
    %c128_154 = arith.constant 128 : index
    %c256_155 = arith.constant 256 : index
    %127 = vector.load %arg5[%c128_154, %c256_155] : memref<288x512xf32, #tpu.memory_space<vmem>>, vector<32x128xf32>
    tpu.vector_store %arg5[%c128_154, %c256_155], %118 {strides = array<i32>} : memref<288x512xf32, #tpu.memory_space<vmem>>, vector<32x128xf32>,
    %c127_i32_156 = arith.constant 127 : i32
    %128 = tpu.dynamic_rotate %118 by %c127_i32_156 dim 1 : vector<32x128xf32>, i32 -> vector<32x128xf32>
    %c160_157 = arith.constant 160 : index
    %c256_158 = arith.constant 256 : index
    %129 = vector.load %arg5[%c160_157, %c256_158] : memref<288x512xf32, #tpu.memory_space<vmem>>, vector<32x128xf32>
    tpu.vector_store %arg5[%c160_157, %c256_158], %128 {strides = array<i32>} : memref<288x512xf32, #tpu.memory_space<vmem>>, vector<32x128xf32>,
    %c126_i32_159 = arith.constant 126 : i32
    %130 = tpu.dynamic_rotate %118 by %c126_i32_159 dim 1 : vector<32x128xf32>, i32 -> vector<32x128xf32>
    %c192_160 = arith.constant 192 : index
    %c256_161 = arith.constant 256 : index
    %131 = vector.load %arg5[%c192_160, %c256_161] : memref<288x512xf32, #tpu.memory_space<vmem>>, vector<32x128xf32>
    tpu.vector_store %arg5[%c192_160, %c256_161], %130 {strides = array<i32>} : memref<288x512xf32, #tpu.memory_space<vmem>>, vector<32x128xf32>,
    %c125_i32_162 = arith.constant 125 : i32
    %132 = tpu.dynamic_rotate %118 by %c125_i32_162 dim 1 : vector<32x128xf32>, i32 -> vector<32x128xf32>
    %c224_163 = arith.constant 224 : index
    %c256_164 = arith.constant 256 : index
    %133 = vector.load %arg5[%c224_163, %c256_164] : memref<288x512xf32, #tpu.memory_space<vmem>>, vector<32x128xf32>
    tpu.vector_store %arg5[%c224_163, %c256_164], %132 {strides = array<i32>} : memref<288x512xf32, #tpu.memory_space<vmem>>, vector<32x128xf32>,
    %c124_i32_165 = arith.constant 124 : i32
    %134 = tpu.dynamic_rotate %118 by %c124_i32_165 dim 1 : vector<32x128xf32>, i32 -> vector<32x128xf32>
    %c256_166 = arith.constant 256 : index
    %c256_167 = arith.constant 256 : index
    %135 = vector.load %arg5[%c256_166, %c256_167] : memref<288x512xf32, #tpu.memory_space<vmem>>, vector<32x128xf32>
    tpu.vector_store %arg5[%c256_166, %c256_167], %134 {strides = array<i32>} : memref<288x512xf32, #tpu.memory_space<vmem>>, vector<32x128xf32>,
    %136 = vector.extract_strided_slice %80 {offsets = [0, 384], sizes = [32, 128], strides = [1, 1]} : vector<32x512xf32> to vector<32x128xf32>
    %c4_i32_168 = arith.constant 4 : i32
    %137 = tpu.dynamic_rotate %136 by %c4_i32_168 dim 1 : vector<32x128xf32>, i32 -> vector<32x128xf32>
    %c0_169 = arith.constant 0 : index
    %c384_170 = arith.constant 384 : index
    %138 = vector.load %arg5[%c0_169, %c384_170] : memref<288x512xf32, #tpu.memory_space<vmem>>, vector<32x128xf32>
    tpu.vector_store %arg5[%c0_169, %c384_170], %137 {strides = array<i32>} : memref<288x512xf32, #tpu.memory_space<vmem>>, vector<32x128xf32>,
    %c3_i32_171 = arith.constant 3 : i32
    %139 = tpu.dynamic_rotate %136 by %c3_i32_171 dim 1 : vector<32x128xf32>, i32 -> vector<32x128xf32>
    %c32_172 = arith.constant 32 : index
    %c384_173 = arith.constant 384 : index
    %140 = vector.load %arg5[%c32_172, %c384_173] : memref<288x512xf32, #tpu.memory_space<vmem>>, vector<32x128xf32>
    tpu.vector_store %arg5[%c32_172, %c384_173], %139 {strides = array<i32>} : memref<288x512xf32, #tpu.memory_space<vmem>>, vector<32x128xf32>,
    %c2_i32_174 = arith.constant 2 : i32
    %141 = tpu.dynamic_rotate %136 by %c2_i32_174 dim 1 : vector<32x128xf32>, i32 -> vector<32x128xf32>
    %c64_175 = arith.constant 64 : index
    %c384_176 = arith.constant 384 : index
    %142 = vector.load %arg5[%c64_175, %c384_176] : memref<288x512xf32, #tpu.memory_space<vmem>>, vector<32x128xf32>
    tpu.vector_store %arg5[%c64_175, %c384_176], %141 {strides = array<i32>} : memref<288x512xf32, #tpu.memory_space<vmem>>, vector<32x128xf32>,
    %c1_i32_177 = arith.constant 1 : i32
    %143 = tpu.dynamic_rotate %136 by %c1_i32_177 dim 1 : vector<32x128xf32>, i32 -> vector<32x128xf32>
    %c96_178 = arith.constant 96 : index
    %c384_179 = arith.constant 384 : index
    %144 = vector.load %arg5[%c96_178, %c384_179] : memref<288x512xf32, #tpu.memory_space<vmem>>, vector<32x128xf32>
    tpu.vector_store %arg5[%c96_178, %c384_179], %143 {strides = array<i32>} : memref<288x512xf32, #tpu.memory_space<vmem>>, vector<32x128xf32>,
    %c128_180 = arith.constant 128 : index
    %c384_181 = arith.constant 384 : index
    %145 = vector.load %arg5[%c128_180, %c384_181] : memref<288x512xf32, #tpu.memory_space<vmem>>, vector<32x128xf32>
    tpu.vector_store %arg5[%c128_180, %c384_181], %136 {strides = array<i32>} : memref<288x512xf32, #tpu.memory_space<vmem>>, vector<32x128xf32>,
    %c127_i32_182 = arith.constant 127 : i32
    %146 = tpu.dynamic_rotate %136 by %c127_i32_182 dim 1 : vector<32x128xf32>, i32 -> vector<32x128xf32>
    %c160_183 = arith.constant 160 : index
    %c384_184 = arith.constant 384 : index
    %147 = vector.load %arg5[%c160_183, %c384_184] : memref<288x512xf32, #tpu.memory_space<vmem>>, vector<32x128xf32>
    tpu.vector_store %arg5[%c160_183, %c384_184], %146 {strides = array<i32>} : memref<288x512xf32, #tpu.memory_space<vmem>>, vector<32x128xf32>,
    %c126_i32_185 = arith.constant 126 : i32
    %148 = tpu.dynamic_rotate %136 by %c126_i32_185 dim 1 : vector<32x128xf32>, i32 -> vector<32x128xf32>
    %c192_186 = arith.constant 192 : index
    %c384_187 = arith.constant 384 : index
    %149 = vector.load %arg5[%c192_186, %c384_187] : memref<288x512xf32, #tpu.memory_space<vmem>>, vector<32x128xf32>
    tpu.vector_store %arg5[%c192_186, %c384_187], %148 {strides = array<i32>} : memref<288x512xf32, #tpu.memory_space<vmem>>, vector<32x128xf32>,
    %c125_i32_188 = arith.constant 125 : i32
    %150 = tpu.dynamic_rotate %136 by %c125_i32_188 dim 1 : vector<32x128xf32>, i32 -> vector<32x128xf32>
    %c224_189 = arith.constant 224 : index
    %c384_190 = arith.constant 384 : index
    %151 = vector.load %arg5[%c224_189, %c384_190] : memref<288x512xf32, #tpu.memory_space<vmem>>, vector<32x128xf32>
    tpu.vector_store %arg5[%c224_189, %c384_190], %150 {strides = array<i32>} : memref<288x512xf32, #tpu.memory_space<vmem>>, vector<32x128xf32>,
    %c124_i32_191 = arith.constant 124 : i32
    %152 = tpu.dynamic_rotate %136 by %c124_i32_191 dim 1 : vector<32x128xf32>, i32 -> vector<32x128xf32>
    %c256_192 = arith.constant 256 : index
    %c384_193 = arith.constant 384 : index
    %153 = vector.load %arg5[%c256_192, %c384_193] : memref<288x512xf32, #tpu.memory_space<vmem>>, vector<32x128xf32>
    tpu.vector_store %arg5[%c256_192, %c384_193], %152 {strides = array<i32>} : memref<288x512xf32, #tpu.memory_space<vmem>>, vector<32x128xf32>,
    %c32_194 = arith.constant 32 : index
    %c0_195 = arith.constant 0 : index
    %154 = vector.load %arg3[%c32_194, %c0_195] : memref<400x288xf32, #tpu.memory_space<vmem>>, vector<32x288xf32>
    %c232 = arith.constant 232 : index
    %c0_196 = arith.constant 0 : index
    %155 = vector.load %arg3[%c232, %c0_196] : memref<400x288xf32, #tpu.memory_space<vmem>>, vector<32x1xf32>
    %c0_197 = arith.constant 0 : index
    %c0_198 = arith.constant 0 : index
    %156 = vector.load %arg5[%c0_197, %c0_198] : memref<288x512xf32, #tpu.memory_space<vmem>>, vector<288x512xf32>
    %cst_199 = arith.constant dense<0.000000e+00> : vector<32x512xf32>
    %157 = tpu.matmul %154, %156, %cst_199 {dimension_numbers = #tpu.dot_dimension_numbers<[1], [0], [0], [1], [0, 0, 1, 1], [], []>} : vector<32x288xf32>, vector<288x512xf32>, vector<32x512xf32> -> vector<32x512xf32>
    %158 = vector.broadcast %155 : vector<32x1xf32> to vector<32x512xf32>
    %159 = arith.addf %157, %158 : vector<32x512xf32>
    %cst_200 = arith.constant 0.000000e+00 : f32
    %160 = vector.broadcast %cst_200 : f32 to vector<32x512xf32>
    %161 = arith.maximumf %159, %160 : vector<32x512xf32>
    %162 = arith.addf %161, %80 : vector<32x512xf32>
    %c32_201 = arith.constant 32 : index
    %c0_202 = arith.constant 0 : index
    %163 = vector.load %arg6[%c32_201, %c0_202] : memref<128x512xf32, #tpu.memory_space<vmem>>, vector<32x512xf32>
    tpu.vector_store %arg6[%c32_201, %c0_202], %162 {strides = array<i32>} : memref<128x512xf32, #tpu.memory_space<vmem>>, vector<32x512xf32>,
    %164 = vector.extract_strided_slice %162 {offsets = [0, 0], sizes = [32, 128], strides = [1, 1]} : vector<32x512xf32> to vector<32x128xf32>
    %c4_i32_203 = arith.constant 4 : i32
    %165 = tpu.dynamic_rotate %164 by %c4_i32_203 dim 1 : vector<32x128xf32>, i32 -> vector<32x128xf32>
    %c0_204 = arith.constant 0 : index
    %c0_205 = arith.constant 0 : index
    %166 = vector.load %arg5[%c0_204, %c0_205] : memref<288x512xf32, #tpu.memory_space<vmem>>, vector<32x128xf32>
    tpu.vector_store %arg5[%c0_204, %c0_205], %165 {strides = array<i32>} : memref<288x512xf32, #tpu.memory_space<vmem>>, vector<32x128xf32>,
    %c3_i32_206 = arith.constant 3 : i32
    %167 = tpu.dynamic_rotate %164 by %c3_i32_206 dim 1 : vector<32x128xf32>, i32 -> vector<32x128xf32>
    %c32_207 = arith.constant 32 : index
    %c0_208 = arith.constant 0 : index
    %168 = vector.load %arg5[%c32_207, %c0_208] : memref<288x512xf32, #tpu.memory_space<vmem>>, vector<32x128xf32>
    tpu.vector_store %arg5[%c32_207, %c0_208], %167 {strides = array<i32>} : memref<288x512xf32, #tpu.memory_space<vmem>>, vector<32x128xf32>,
    %c2_i32_209 = arith.constant 2 : i32
    %169 = tpu.dynamic_rotate %164 by %c2_i32_209 dim 1 : vector<32x128xf32>, i32 -> vector<32x128xf32>
    %c64_210 = arith.constant 64 : index
    %c0_211 = arith.constant 0 : index
    %170 = vector.load %arg5[%c64_210, %c0_211] : memref<288x512xf32, #tpu.memory_space<vmem>>, vector<32x128xf32>
    tpu.vector_store %arg5[%c64_210, %c0_211], %169 {strides = array<i32>} : memref<288x512xf32, #tpu.memory_space<vmem>>, vector<32x128xf32>,
    %c1_i32_212 = arith.constant 1 : i32
    %171 = tpu.dynamic_rotate %164 by %c1_i32_212 dim 1 : vector<32x128xf32>, i32 -> vector<32x128xf32>
    %c96_213 = arith.constant 96 : index
    %c0_214 = arith.constant 0 : index
    %172 = vector.load %arg5[%c96_213, %c0_214] : memref<288x512xf32, #tpu.memory_space<vmem>>, vector<32x128xf32>
    tpu.vector_store %arg5[%c96_213, %c0_214], %171 {strides = array<i32>} : memref<288x512xf32, #tpu.memory_space<vmem>>, vector<32x128xf32>,
    %c128_215 = arith.constant 128 : index
    %c0_216 = arith.constant 0 : index
    %173 = vector.load %arg5[%c128_215, %c0_216] : memref<288x512xf32, #tpu.memory_space<vmem>>, vector<32x128xf32>
    tpu.vector_store %arg5[%c128_215, %c0_216], %164 {strides = array<i32>} : memref<288x512xf32, #tpu.memory_space<vmem>>, vector<32x128xf32>,
    %c127_i32_217 = arith.constant 127 : i32
    %174 = tpu.dynamic_rotate %164 by %c127_i32_217 dim 1 : vector<32x128xf32>, i32 -> vector<32x128xf32>
    %c160_218 = arith.constant 160 : index
    %c0_219 = arith.constant 0 : index
    %175 = vector.load %arg5[%c160_218, %c0_219] : memref<288x512xf32, #tpu.memory_space<vmem>>, vector<32x128xf32>
    tpu.vector_store %arg5[%c160_218, %c0_219], %174 {strides = array<i32>} : memref<288x512xf32, #tpu.memory_space<vmem>>, vector<32x128xf32>,
    %c126_i32_220 = arith.constant 126 : i32
    %176 = tpu.dynamic_rotate %164 by %c126_i32_220 dim 1 : vector<32x128xf32>, i32 -> vector<32x128xf32>
    %c192_221 = arith.constant 192 : index
    %c0_222 = arith.constant 0 : index
    %177 = vector.load %arg5[%c192_221, %c0_222] : memref<288x512xf32, #tpu.memory_space<vmem>>, vector<32x128xf32>
    tpu.vector_store %arg5[%c192_221, %c0_222], %176 {strides = array<i32>} : memref<288x512xf32, #tpu.memory_space<vmem>>, vector<32x128xf32>,
    %c125_i32_223 = arith.constant 125 : i32
    %178 = tpu.dynamic_rotate %164 by %c125_i32_223 dim 1 : vector<32x128xf32>, i32 -> vector<32x128xf32>
    %c224_224 = arith.constant 224 : index
    %c0_225 = arith.constant 0 : index
    %179 = vector.load %arg5[%c224_224, %c0_225] : memref<288x512xf32, #tpu.memory_space<vmem>>, vector<32x128xf32>
    tpu.vector_store %arg5[%c224_224, %c0_225], %178 {strides = array<i32>} : memref<288x512xf32, #tpu.memory_space<vmem>>, vector<32x128xf32>,
    %c124_i32_226 = arith.constant 124 : i32
    %180 = tpu.dynamic_rotate %164 by %c124_i32_226 dim 1 : vector<32x128xf32>, i32 -> vector<32x128xf32>
    %c256_227 = arith.constant 256 : index
    %c0_228 = arith.constant 0 : index
    %181 = vector.load %arg5[%c256_227, %c0_228] : memref<288x512xf32, #tpu.memory_space<vmem>>, vector<32x128xf32>
    tpu.vector_store %arg5[%c256_227, %c0_228], %180 {strides = array<i32>} : memref<288x512xf32, #tpu.memory_space<vmem>>, vector<32x128xf32>,
    %182 = vector.extract_strided_slice %162 {offsets = [0, 128], sizes = [32, 128], strides = [1, 1]} : vector<32x512xf32> to vector<32x128xf32>
    %c4_i32_229 = arith.constant 4 : i32
    %183 = tpu.dynamic_rotate %182 by %c4_i32_229 dim 1 : vector<32x128xf32>, i32 -> vector<32x128xf32>
    %c0_230 = arith.constant 0 : index
    %c128_231 = arith.constant 128 : index
    %184 = vector.load %arg5[%c0_230, %c128_231] : memref<288x512xf32, #tpu.memory_space<vmem>>, vector<32x128xf32>
    tpu.vector_store %arg5[%c0_230, %c128_231], %183 {strides = array<i32>} : memref<288x512xf32, #tpu.memory_space<vmem>>, vector<32x128xf32>,
    %c3_i32_232 = arith.constant 3 : i32
    %185 = tpu.dynamic_rotate %182 by %c3_i32_232 dim 1 : vector<32x128xf32>, i32 -> vector<32x128xf32>
    %c32_233 = arith.constant 32 : index
    %c128_234 = arith.constant 128 : index
    %186 = vector.load %arg5[%c32_233, %c128_234] : memref<288x512xf32, #tpu.memory_space<vmem>>, vector<32x128xf32>
    tpu.vector_store %arg5[%c32_233, %c128_234], %185 {strides = array<i32>} : memref<288x512xf32, #tpu.memory_space<vmem>>, vector<32x128xf32>,
    %c2_i32_235 = arith.constant 2 : i32
    %187 = tpu.dynamic_rotate %182 by %c2_i32_235 dim 1 : vector<32x128xf32>, i32 -> vector<32x128xf32>
    %c64_236 = arith.constant 64 : index
    %c128_237 = arith.constant 128 : index
    %188 = vector.load %arg5[%c64_236, %c128_237] : memref<288x512xf32, #tpu.memory_space<vmem>>, vector<32x128xf32>
    tpu.vector_store %arg5[%c64_236, %c128_237], %187 {strides = array<i32>} : memref<288x512xf32, #tpu.memory_space<vmem>>, vector<32x128xf32>,
    %c1_i32_238 = arith.constant 1 : i32
    %189 = tpu.dynamic_rotate %182 by %c1_i32_238 dim 1 : vector<32x128xf32>, i32 -> vector<32x128xf32>
    %c96_239 = arith.constant 96 : index
    %c128_240 = arith.constant 128 : index
    %190 = vector.load %arg5[%c96_239, %c128_240] : memref<288x512xf32, #tpu.memory_space<vmem>>, vector<32x128xf32>
    tpu.vector_store %arg5[%c96_239, %c128_240], %189 {strides = array<i32>} : memref<288x512xf32, #tpu.memory_space<vmem>>, vector<32x128xf32>,
    %c128_241 = arith.constant 128 : index
    %c128_242 = arith.constant 128 : index
    %191 = vector.load %arg5[%c128_241, %c128_242] : memref<288x512xf32, #tpu.memory_space<vmem>>, vector<32x128xf32>
    tpu.vector_store %arg5[%c128_241, %c128_242], %182 {strides = array<i32>} : memref<288x512xf32, #tpu.memory_space<vmem>>, vector<32x128xf32>,
    %c127_i32_243 = arith.constant 127 : i32
    %192 = tpu.dynamic_rotate %182 by %c127_i32_243 dim 1 : vector<32x128xf32>, i32 -> vector<32x128xf32>
    %c160_244 = arith.constant 160 : index
    %c128_245 = arith.constant 128 : index
    %193 = vector.load %arg5[%c160_244, %c128_245] : memref<288x512xf32, #tpu.memory_space<vmem>>, vector<32x128xf32>
    tpu.vector_store %arg5[%c160_244, %c128_245], %192 {strides = array<i32>} : memref<288x512xf32, #tpu.memory_space<vmem>>, vector<32x128xf32>,
    %c126_i32_246 = arith.constant 126 : i32
    %194 = tpu.dynamic_rotate %182 by %c126_i32_246 dim 1 : vector<32x128xf32>, i32 -> vector<32x128xf32>
    %c192_247 = arith.constant 192 : index
    %c128_248 = arith.constant 128 : index
    %195 = vector.load %arg5[%c192_247, %c128_248] : memref<288x512xf32, #tpu.memory_space<vmem>>, vector<32x128xf32>
    tpu.vector_store %arg5[%c192_247, %c128_248], %194 {strides = array<i32>} : memref<288x512xf32, #tpu.memory_space<vmem>>, vector<32x128xf32>,
    %c125_i32_249 = arith.constant 125 : i32
    %196 = tpu.dynamic_rotate %182 by %c125_i32_249 dim 1 : vector<32x128xf32>, i32 -> vector<32x128xf32>
    %c224_250 = arith.constant 224 : index
    %c128_251 = arith.constant 128 : index
    %197 = vector.load %arg5[%c224_250, %c128_251] : memref<288x512xf32, #tpu.memory_space<vmem>>, vector<32x128xf32>
    tpu.vector_store %arg5[%c224_250, %c128_251], %196 {strides = array<i32>} : memref<288x512xf32, #tpu.memory_space<vmem>>, vector<32x128xf32>,
    %c124_i32_252 = arith.constant 124 : i32
    %198 = tpu.dynamic_rotate %182 by %c124_i32_252 dim 1 : vector<32x128xf32>, i32 -> vector<32x128xf32>
    %c256_253 = arith.constant 256 : index
    %c128_254 = arith.constant 128 : index
    %199 = vector.load %arg5[%c256_253, %c128_254] : memref<288x512xf32, #tpu.memory_space<vmem>>, vector<32x128xf32>
    tpu.vector_store %arg5[%c256_253, %c128_254], %198 {strides = array<i32>} : memref<288x512xf32, #tpu.memory_space<vmem>>, vector<32x128xf32>,
    %200 = vector.extract_strided_slice %162 {offsets = [0, 256], sizes = [32, 128], strides = [1, 1]} : vector<32x512xf32> to vector<32x128xf32>
    %c4_i32_255 = arith.constant 4 : i32
    %201 = tpu.dynamic_rotate %200 by %c4_i32_255 dim 1 : vector<32x128xf32>, i32 -> vector<32x128xf32>
    %c0_256 = arith.constant 0 : index
    %c256_257 = arith.constant 256 : index
    %202 = vector.load %arg5[%c0_256, %c256_257] : memref<288x512xf32, #tpu.memory_space<vmem>>, vector<32x128xf32>
    tpu.vector_store %arg5[%c0_256, %c256_257], %201 {strides = array<i32>} : memref<288x512xf32, #tpu.memory_space<vmem>>, vector<32x128xf32>,
    %c3_i32_258 = arith.constant 3 : i32
    %203 = tpu.dynamic_rotate %200 by %c3_i32_258 dim 1 : vector<32x128xf32>, i32 -> vector<32x128xf32>
    %c32_259 = arith.constant 32 : index
    %c256_260 = arith.constant 256 : index
    %204 = vector.load %arg5[%c32_259, %c256_260] : memref<288x512xf32, #tpu.memory_space<vmem>>, vector<32x128xf32>
    tpu.vector_store %arg5[%c32_259, %c256_260], %203 {strides = array<i32>} : memref<288x512xf32, #tpu.memory_space<vmem>>, vector<32x128xf32>,
    %c2_i32_261 = arith.constant 2 : i32
    %205 = tpu.dynamic_rotate %200 by %c2_i32_261 dim 1 : vector<32x128xf32>, i32 -> vector<32x128xf32>
    %c64_262 = arith.constant 64 : index
    %c256_263 = arith.constant 256 : index
    %206 = vector.load %arg5[%c64_262, %c256_263] : memref<288x512xf32, #tpu.memory_space<vmem>>, vector<32x128xf32>
    tpu.vector_store %arg5[%c64_262, %c256_263], %205 {strides = array<i32>} : memref<288x512xf32, #tpu.memory_space<vmem>>, vector<32x128xf32>,
    %c1_i32_264 = arith.constant 1 : i32
    %207 = tpu.dynamic_rotate %200 by %c1_i32_264 dim 1 : vector<32x128xf32>, i32 -> vector<32x128xf32>
    %c96_265 = arith.constant 96 : index
    %c256_266 = arith.constant 256 : index
    %208 = vector.load %arg5[%c96_265, %c256_266] : memref<288x512xf32, #tpu.memory_space<vmem>>, vector<32x128xf32>
    tpu.vector_store %arg5[%c96_265, %c256_266], %207 {strides = array<i32>} : memref<288x512xf32, #tpu.memory_space<vmem>>, vector<32x128xf32>,
    %c128_267 = arith.constant 128 : index
    %c256_268 = arith.constant 256 : index
    %209 = vector.load %arg5[%c128_267, %c256_268] : memref<288x512xf32, #tpu.memory_space<vmem>>, vector<32x128xf32>
    tpu.vector_store %arg5[%c128_267, %c256_268], %200 {strides = array<i32>} : memref<288x512xf32, #tpu.memory_space<vmem>>, vector<32x128xf32>,
    %c127_i32_269 = arith.constant 127 : i32
    %210 = tpu.dynamic_rotate %200 by %c127_i32_269 dim 1 : vector<32x128xf32>, i32 -> vector<32x128xf32>
    %c160_270 = arith.constant 160 : index
    %c256_271 = arith.constant 256 : index
    %211 = vector.load %arg5[%c160_270, %c256_271] : memref<288x512xf32, #tpu.memory_space<vmem>>, vector<32x128xf32>
    tpu.vector_store %arg5[%c160_270, %c256_271], %210 {strides = array<i32>} : memref<288x512xf32, #tpu.memory_space<vmem>>, vector<32x128xf32>,
    %c126_i32_272 = arith.constant 126 : i32
    %212 = tpu.dynamic_rotate %200 by %c126_i32_272 dim 1 : vector<32x128xf32>, i32 -> vector<32x128xf32>
    %c192_273 = arith.constant 192 : index
    %c256_274 = arith.constant 256 : index
    %213 = vector.load %arg5[%c192_273, %c256_274] : memref<288x512xf32, #tpu.memory_space<vmem>>, vector<32x128xf32>
    tpu.vector_store %arg5[%c192_273, %c256_274], %212 {strides = array<i32>} : memref<288x512xf32, #tpu.memory_space<vmem>>, vector<32x128xf32>,
    %c125_i32_275 = arith.constant 125 : i32
    %214 = tpu.dynamic_rotate %200 by %c125_i32_275 dim 1 : vector<32x128xf32>, i32 -> vector<32x128xf32>
    %c224_276 = arith.constant 224 : index
    %c256_277 = arith.constant 256 : index
    %215 = vector.load %arg5[%c224_276, %c256_277] : memref<288x512xf32, #tpu.memory_space<vmem>>, vector<32x128xf32>
    tpu.vector_store %arg5[%c224_276, %c256_277], %214 {strides = array<i32>} : memref<288x512xf32, #tpu.memory_space<vmem>>, vector<32x128xf32>,
    %c124_i32_278 = arith.constant 124 : i32
    %216 = tpu.dynamic_rotate %200 by %c124_i32_278 dim 1 : vector<32x128xf32>, i32 -> vector<32x128xf32>
    %c256_279 = arith.constant 256 : index
    %c256_280 = arith.constant 256 : index
    %217 = vector.load %arg5[%c256_279, %c256_280] : memref<288x512xf32, #tpu.memory_space<vmem>>, vector<32x128xf32>
    tpu.vector_store %arg5[%c256_279, %c256_280], %216 {strides = array<i32>} : memref<288x512xf32, #tpu.memory_space<vmem>>, vector<32x128xf32>,
    %218 = vector.extract_strided_slice %162 {offsets = [0, 384], sizes = [32, 128], strides = [1, 1]} : vector<32x512xf32> to vector<32x128xf32>
    %c4_i32_281 = arith.constant 4 : i32
    %219 = tpu.dynamic_rotate %218 by %c4_i32_281 dim 1 : vector<32x128xf32>, i32 -> vector<32x128xf32>
    %c0_282 = arith.constant 0 : index
    %c384_283 = arith.constant 384 : index
    %220 = vector.load %arg5[%c0_282, %c384_283] : memref<288x512xf32, #tpu.memory_space<vmem>>, vector<32x128xf32>
    tpu.vector_store %arg5[%c0_282, %c384_283], %219 {strides = array<i32>} : memref<288x512xf32, #tpu.memory_space<vmem>>, vector<32x128xf32>,
    %c3_i32_284 = arith.constant 3 : i32
    %221 = tpu.dynamic_rotate %218 by %c3_i32_284 dim 1 : vector<32x128xf32>, i32 -> vector<32x128xf32>
    %c32_285 = arith.constant 32 : index
    %c384_286 = arith.constant 384 : index
    %222 = vector.load %arg5[%c32_285, %c384_286] : memref<288x512xf32, #tpu.memory_space<vmem>>, vector<32x128xf32>
    tpu.vector_store %arg5[%c32_285, %c384_286], %221 {strides = array<i32>} : memref<288x512xf32, #tpu.memory_space<vmem>>, vector<32x128xf32>,
    %c2_i32_287 = arith.constant 2 : i32
    %223 = tpu.dynamic_rotate %218 by %c2_i32_287 dim 1 : vector<32x128xf32>, i32 -> vector<32x128xf32>
    %c64_288 = arith.constant 64 : index
    %c384_289 = arith.constant 384 : index
    %224 = vector.load %arg5[%c64_288, %c384_289] : memref<288x512xf32, #tpu.memory_space<vmem>>, vector<32x128xf32>
    tpu.vector_store %arg5[%c64_288, %c384_289], %223 {strides = array<i32>} : memref<288x512xf32, #tpu.memory_space<vmem>>, vector<32x128xf32>,
    %c1_i32_290 = arith.constant 1 : i32
    %225 = tpu.dynamic_rotate %218 by %c1_i32_290 dim 1 : vector<32x128xf32>, i32 -> vector<32x128xf32>
    %c96_291 = arith.constant 96 : index
    %c384_292 = arith.constant 384 : index
    %226 = vector.load %arg5[%c96_291, %c384_292] : memref<288x512xf32, #tpu.memory_space<vmem>>, vector<32x128xf32>
    tpu.vector_store %arg5[%c96_291, %c384_292], %225 {strides = array<i32>} : memref<288x512xf32, #tpu.memory_space<vmem>>, vector<32x128xf32>,
    %c128_293 = arith.constant 128 : index
    %c384_294 = arith.constant 384 : index
    %227 = vector.load %arg5[%c128_293, %c384_294] : memref<288x512xf32, #tpu.memory_space<vmem>>, vector<32x128xf32>
    tpu.vector_store %arg5[%c128_293, %c384_294], %218 {strides = array<i32>} : memref<288x512xf32, #tpu.memory_space<vmem>>, vector<32x128xf32>,
    %c127_i32_295 = arith.constant 127 : i32
    %228 = tpu.dynamic_rotate %218 by %c127_i32_295 dim 1 : vector<32x128xf32>, i32 -> vector<32x128xf32>
    %c160_296 = arith.constant 160 : index
    %c384_297 = arith.constant 384 : index
    %229 = vector.load %arg5[%c160_296, %c384_297] : memref<288x512xf32, #tpu.memory_space<vmem>>, vector<32x128xf32>
    tpu.vector_store %arg5[%c160_296, %c384_297], %228 {strides = array<i32>} : memref<288x512xf32, #tpu.memory_space<vmem>>, vector<32x128xf32>,
    %c126_i32_298 = arith.constant 126 : i32
    %230 = tpu.dynamic_rotate %218 by %c126_i32_298 dim 1 : vector<32x128xf32>, i32 -> vector<32x128xf32>
    %c192_299 = arith.constant 192 : index
    %c384_300 = arith.constant 384 : index
    %231 = vector.load %arg5[%c192_299, %c384_300] : memref<288x512xf32, #tpu.memory_space<vmem>>, vector<32x128xf32>
    tpu.vector_store %arg5[%c192_299, %c384_300], %230 {strides = array<i32>} : memref<288x512xf32, #tpu.memory_space<vmem>>, vector<32x128xf32>,
    %c125_i32_301 = arith.constant 125 : i32
    %232 = tpu.dynamic_rotate %218 by %c125_i32_301 dim 1 : vector<32x128xf32>, i32 -> vector<32x128xf32>
    %c224_302 = arith.constant 224 : index
    %c384_303 = arith.constant 384 : index
    %233 = vector.load %arg5[%c224_302, %c384_303] : memref<288x512xf32, #tpu.memory_space<vmem>>, vector<32x128xf32>
    tpu.vector_store %arg5[%c224_302, %c384_303], %232 {strides = array<i32>} : memref<288x512xf32, #tpu.memory_space<vmem>>, vector<32x128xf32>,
    %c124_i32_304 = arith.constant 124 : i32
    %234 = tpu.dynamic_rotate %218 by %c124_i32_304 dim 1 : vector<32x128xf32>, i32 -> vector<32x128xf32>
    %c256_305 = arith.constant 256 : index
    %c384_306 = arith.constant 384 : index
    %235 = vector.load %arg5[%c256_305, %c384_306] : memref<288x512xf32, #tpu.memory_space<vmem>>, vector<32x128xf32>
    tpu.vector_store %arg5[%c256_305, %c384_306], %234 {strides = array<i32>} : memref<288x512xf32, #tpu.memory_space<vmem>>, vector<32x128xf32>,
    %c64_307 = arith.constant 64 : index
    %c0_308 = arith.constant 0 : index
    %236 = vector.load %arg3[%c64_307, %c0_308] : memref<400x288xf32, #tpu.memory_space<vmem>>, vector<32x288xf32>
    %c264 = arith.constant 264 : index
    %c0_309 = arith.constant 0 : index
    %237 = vector.load %arg3[%c264, %c0_309] : memref<400x288xf32, #tpu.memory_space<vmem>>, vector<32x1xf32>
    %c0_310 = arith.constant 0 : index
    %c0_311 = arith.constant 0 : index
    %238 = vector.load %arg5[%c0_310, %c0_311] : memref<288x512xf32, #tpu.memory_space<vmem>>, vector<288x512xf32>
    %cst_312 = arith.constant dense<0.000000e+00> : vector<32x512xf32>
    %239 = tpu.matmul %236, %238, %cst_312 {dimension_numbers = #tpu.dot_dimension_numbers<[1], [0], [0], [1], [0, 0, 1, 1], [], []>} : vector<32x288xf32>, vector<288x512xf32>, vector<32x512xf32> -> vector<32x512xf32>
    %240 = vector.broadcast %237 : vector<32x1xf32> to vector<32x512xf32>
    %241 = arith.addf %239, %240 : vector<32x512xf32>
    %cst_313 = arith.constant 0.000000e+00 : f32
    %242 = vector.broadcast %cst_313 : f32 to vector<32x512xf32>
    %243 = arith.maximumf %241, %242 : vector<32x512xf32>
    %244 = arith.addf %243, %162 : vector<32x512xf32>
    %c64_314 = arith.constant 64 : index
    %c0_315 = arith.constant 0 : index
    %245 = vector.load %arg6[%c64_314, %c0_315] : memref<128x512xf32, #tpu.memory_space<vmem>>, vector<32x512xf32>
    tpu.vector_store %arg6[%c64_314, %c0_315], %244 {strides = array<i32>} : memref<128x512xf32, #tpu.memory_space<vmem>>, vector<32x512xf32>,
    %c96_316 = arith.constant 96 : index
    %c0_317 = arith.constant 0 : index
    %246 = vector.load %arg3[%c96_316, %c0_317] : memref<400x288xf32, #tpu.memory_space<vmem>>, vector<32x96xf32>
    %c0_318 = arith.constant 0 : index
    %c0_319 = arith.constant 0 : index
    %247 = vector.load %arg6[%c0_318, %c0_319] : memref<128x512xf32, #tpu.memory_space<vmem>>, vector<96x512xf32>
    %cst_320 = arith.constant dense<0.000000e+00> : vector<32x512xf32>
    %248 = tpu.matmul %246, %247, %cst_320 {dimension_numbers = #tpu.dot_dimension_numbers<[1], [0], [0], [1], [0, 0, 1, 1], [], []>} : vector<32x96xf32>, vector<96x512xf32>, vector<32x512xf32> -> vector<32x512xf32>
    %c296 = arith.constant 296 : index
    %c0_321 = arith.constant 0 : index
    %249 = vector.load %arg3[%c296, %c0_321] : memref<400x288xf32, #tpu.memory_space<vmem>>, vector<32x1xf32>
    %250 = vector.broadcast %249 : vector<32x1xf32> to vector<32x512xf32>
    %251 = arith.addf %248, %250 : vector<32x512xf32>
    %252 = vector.extract_strided_slice %251 {offsets = [0, 0], sizes = [32, 128], strides = [1, 1]} : vector<32x512xf32> to vector<32x128xf32>
    %cst_322 = arith.constant dense<0xFF800000> : vector<32xf32>
    %253 = vector.multi_reduction <maximumf>, %252, %cst_322 [1] : vector<32x128xf32> to vector<32xf32>
    %254 = vector.shape_cast %253 : vector<32xf32> to vector<32x1xf32>
    %255 = vector.shape_cast %254 : vector<32x1xf32> to vector<32x1xf32>
    %256 = vector.broadcast %255 : vector<32x1xf32> to vector<32x128xf32>
    %c96_323 = arith.constant 96 : index
    %c0_324 = arith.constant 0 : index
    %257 = vector.load %arg6[%c96_323, %c0_324] : memref<128x512xf32, #tpu.memory_space<vmem>>, vector<32x128xf32>
    tpu.vector_store %arg6[%c96_323, %c0_324], %256 {strides = array<i32>} : memref<128x512xf32, #tpu.memory_space<vmem>>, vector<32x128xf32>,
    %258 = vector.extract_strided_slice %251 {offsets = [0, 128], sizes = [32, 128], strides = [1, 1]} : vector<32x512xf32> to vector<32x128xf32>
    %cst_325 = arith.constant dense<0xFF800000> : vector<32xf32>
    %259 = vector.multi_reduction <maximumf>, %258, %cst_325 [1] : vector<32x128xf32> to vector<32xf32>
    %260 = vector.shape_cast %259 : vector<32xf32> to vector<32x1xf32>
    %261 = vector.shape_cast %260 : vector<32x1xf32> to vector<32x1xf32>
    %262 = vector.broadcast %261 : vector<32x1xf32> to vector<32x128xf32>
    %c96_326 = arith.constant 96 : index
    %c128_327 = arith.constant 128 : index
    %263 = vector.load %arg6[%c96_326, %c128_327] : memref<128x512xf32, #tpu.memory_space<vmem>>, vector<32x128xf32>
    tpu.vector_store %arg6[%c96_326, %c128_327], %262 {strides = array<i32>} : memref<128x512xf32, #tpu.memory_space<vmem>>, vector<32x128xf32>,
    %264 = vector.extract_strided_slice %251 {offsets = [0, 256], sizes = [32, 128], strides = [1, 1]} : vector<32x512xf32> to vector<32x128xf32>
    %cst_328 = arith.constant dense<0xFF800000> : vector<32xf32>
    %265 = vector.multi_reduction <maximumf>, %264, %cst_328 [1] : vector<32x128xf32> to vector<32xf32>
    %266 = vector.shape_cast %265 : vector<32xf32> to vector<32x1xf32>
    %267 = vector.shape_cast %266 : vector<32x1xf32> to vector<32x1xf32>
    %268 = vector.broadcast %267 : vector<32x1xf32> to vector<32x128xf32>
    %c96_329 = arith.constant 96 : index
    %c256_330 = arith.constant 256 : index
    %269 = vector.load %arg6[%c96_329, %c256_330] : memref<128x512xf32, #tpu.memory_space<vmem>>, vector<32x128xf32>
    tpu.vector_store %arg6[%c96_329, %c256_330], %268 {strides = array<i32>} : memref<128x512xf32, #tpu.memory_space<vmem>>, vector<32x128xf32>,
    %270 = vector.extract_strided_slice %251 {offsets = [0, 384], sizes = [32, 128], strides = [1, 1]} : vector<32x512xf32> to vector<32x128xf32>
    %cst_331 = arith.constant dense<0xFF800000> : vector<32xf32>
    %271 = vector.multi_reduction <maximumf>, %270, %cst_331 [1] : vector<32x128xf32> to vector<32xf32>
    %272 = vector.shape_cast %271 : vector<32xf32> to vector<32x1xf32>
    %273 = vector.shape_cast %272 : vector<32x1xf32> to vector<32x1xf32>
    %274 = vector.broadcast %273 : vector<32x1xf32> to vector<32x128xf32>
    %c96_332 = arith.constant 96 : index
    %c384_333 = arith.constant 384 : index
    %275 = vector.load %arg6[%c96_332, %c384_333] : memref<128x512xf32, #tpu.memory_space<vmem>>, vector<32x128xf32>
    tpu.vector_store %arg6[%c96_332, %c384_333], %274 {strides = array<i32>} : memref<128x512xf32, #tpu.memory_space<vmem>>, vector<32x128xf32>,
    %c128_334 = arith.constant 128 : index
    %c0_335 = arith.constant 0 : index
    %276 = vector.load %arg3[%c128_334, %c0_335] : memref<400x288xf32, #tpu.memory_space<vmem>>, vector<64x128xf32>
    %c0_336 = arith.constant 0 : index
    %c0_337 = arith.constant 0 : index
    %277 = vector.load %arg6[%c0_336, %c0_337] : memref<128x512xf32, #tpu.memory_space<vmem>>, vector<128x512xf32>
    %cst_338 = arith.constant dense<0.000000e+00> : vector<64x512xf32>
    %278 = tpu.matmul %276, %277, %cst_338 {dimension_numbers = #tpu.dot_dimension_numbers<[1], [0], [0], [1], [0, 0, 1, 1], [], []>} : vector<64x128xf32>, vector<128x512xf32>, vector<64x512xf32> -> vector<64x512xf32>
    %c328 = arith.constant 328 : index
    %c0_339 = arith.constant 0 : index
    %279 = vector.load %arg3[%c328, %c0_339] : memref<400x288xf32, #tpu.memory_space<vmem>>, vector<64x1xf32>
    %280 = vector.broadcast %279 : vector<64x1xf32> to vector<64x512xf32>
    %281 = arith.addf %278, %280 : vector<64x512xf32>
    %cst_340 = arith.constant 0.000000e+00 : f32
    %282 = vector.broadcast %cst_340 : f32 to vector<64x512xf32>
    %283 = arith.maximumf %281, %282 : vector<64x512xf32>
    %c192_341 = arith.constant 192 : index
    %c0_342 = arith.constant 0 : index
    %284 = vector.load %arg3[%c192_341, %c0_342] : memref<400x288xf32, #tpu.memory_space<vmem>>, vector<2x64xf32>
    %cst_343 = arith.constant dense<0.000000e+00> : vector<2x512xf32>
    %285 = tpu.matmul %284, %283, %cst_343 {dimension_numbers = #tpu.dot_dimension_numbers<[1], [0], [0], [1], [0, 0, 1, 1], [], []>} : vector<2x64xf32>, vector<64x512xf32>, vector<2x512xf32> -> vector<2x512xf32>
    %c392 = arith.constant 392 : index
    %c0_344 = arith.constant 0 : index
    %286 = vector.load %arg3[%c392, %c0_344] : memref<400x288xf32, #tpu.memory_space<vmem>>, vector<2x1xf32>
    %287 = vector.broadcast %286 : vector<2x1xf32> to vector<2x512xf32>
    %288 = arith.addf %285, %287 : vector<2x512xf32>
    %c0_345 = arith.constant 0 : index
    %c0_346 = arith.constant 0 : index
    %289 = vector.load %arg2[%c0_345, %c0_346] : memref<2x512xf32, #tpu.memory_space<vmem>>, vector<2x512xf32>
    %cst_347 = arith.constant 4.000000e+00 : f32
    %290 = vector.broadcast %cst_347 : f32 to vector<2x512xf32>
    %291 = arith.mulf %289, %290 : vector<2x512xf32>
    %292 = arith.addf %291, %288 : vector<2x512xf32>
    %c0_348 = arith.constant 0 : index
    %c0_349 = arith.constant 0 : index
    %293 = vector.load %arg4[%c0_348, %c0_349] : memref<2x512xf32, #tpu.memory_space<vmem>>, vector<2x512xf32>
    tpu.vector_store %arg4[%c0_348, %c0_349], %292 {strides = array<i32>} : memref<2x512xf32, #tpu.memory_space<vmem>>, vector<2x512xf32>,
    return
  }
  func.func @transform_0(%arg0: i32) -> (i32, i32) {
    %c0_i32 = arith.constant 0 : i32
    %c0_i32_0 = arith.constant 0 : i32
    return %c0_i32, %arg0 : i32, i32
  }
  func.func @transform_1(%arg0: i32) -> (i32, i32) {
    %c0_i32 = arith.constant 0 : i32
    %c0_i32_0 = arith.constant 0 : i32
    return %c0_i32, %arg0 : i32, i32
  }
  func.func @transform_2(%arg0: i32) -> (i32, i32) {
    %c0_i32 = arith.constant 0 : i32
    %c0_i32_0 = arith.constant 0 : i32
    %c0_i32_1 = arith.constant 0 : i32
    return %c0_i32, %c0_i32_0 : i32, i32
  }
  func.func @transform_3(%arg0: i32) -> (i32, i32) {
    %c0_i32 = arith.constant 0 : i32
    %c0_i32_0 = arith.constant 0 : i32
    return %c0_i32, %arg0 : i32, i32
  }
}

</mosaic_0001>

<llo_original>
// kernel: evolution_ms_infer.3
$region0: #{evolution_ms_infer.3}
  #allocation0 [shape = 'u32[]', space=smem, size = 0x4, offset = 0x4, fixed_abs, tag = 'smem constant byte address 0x4 - core index']
  #allocation1 [shape = 'u32[72,128]{1,0:T(1,128)}', space=vmem, size = 0x9000, scoped, tag = 'internal scratch']
  #allocation2 [shape = 'f32[288,512]{1,0:T(8,128)}', space=vmem, size = 0x90000, scoped, tag = 'scratch operand']
  #allocation3 [shape = 'f32[128,512]{1,0:T(8,128)}', space=vmem, size = 0x40000, scoped, tag = 'scratch operand']
  %s0 = inlined_call_operand.vmem [shape: f32[8,512], index: 0, kind: input, shape index: {}]
  %s1 = inlined_call_operand.vmem [shape: f32[2,512], index: 1, kind: input, shape index: {}]
  %s2 = inlined_call_operand.vmem [shape: f32[400,288], index: 2, kind: input, shape index: {}]
  %s3 = inlined_call_operand.vmem [shape: f32[2,512], index: 3, kind: output, shape index: {}]
  %s4 = sld [smem:[#allocation0]]
  $region22: #{evolution_ms_infer.3} parent=0
    _
  %s6 = ssub.s32 1, %s4
  %s7 = scalar_select 0, %s6, %s4
  // Predicated region
  $region2: #{evolution_ms_infer.3} parent=0 // pred_check
    _
  $region3: #{evolution_ms_infer.3} parent=0 // pred_check_branch
    %9 = sbr.rel (0) target = $region5
  $region4: #{evolution_ms_infer.3} parent=0 // pred_region
    _
  $region5: #{evolution_ms_infer.3} parent=0 // pred_fallthru
    _
  // Predicated region
  $region6: #{evolution_ms_infer.3} parent=0 // pred_check
    _
  $region7: #{evolution_ms_infer.3} parent=0 // pred_check_branch
    %11 = sbr.rel (0) target = $region9
  $region8: #{evolution_ms_infer.3} parent=0 // pred_region
    _
  $region9: #{evolution_ms_infer.3} parent=0 // pred_fallthru
    _
  // Predicated region
  $region10: #{evolution_ms_infer.3} parent=0 // pred_check
    _
  $region11: #{evolution_ms_infer.3} parent=0 // pred_check_branch
    %13 = sbr.rel (0) target = $region13
  $region12: #{evolution_ms_infer.3} parent=0 // pred_region
    _
  $region13: #{evolution_ms_infer.3} parent=0 // pred_fallthru
    _
  %v14 = vld [vmem:[%s0] sm:$0xff]
  %v15 = vld [vmem:[%s0 + $0x8] sm:$0xff]
  %v16 = vld [vmem:[%s0 + $0x10] sm:$0xff]
  %v17 = vld [vmem:[%s0 + $0x18] sm:$0xff]
  %18 = vrot.lane.b32.xlu0 %v14, 4
  %v19 = vpop.permute.xlu0 %18
  %20 = vst [vmem:[#allocation2] sm:$0xff] %v19
  %21 = vrot.lane.b32.xlu0 %v14, 3
  %v22 = vpop.permute.xlu0 %21
  %23 = vst [vmem:[#allocation2 + $0x20] sm:$0xff] %v22
  %24 = vrot.lane.b32.xlu0 %v14, 2
  %v25 = vpop.permute.xlu0 %24
  %26 = vst [vmem:[#allocation2 + $0x40] sm:$0xff] %v25
  %27 = vrot.lane.b32.xlu0 %v14, 1
  %v28 = vpop.permute.xlu0 %27
  %29 = vst [vmem:[#allocation2 + $0x60] sm:$0xff] %v28
  %30 = vst [vmem:[#allocation2 + $0x80] sm:$0xff] %v14
  %31 = vrot.lane.b32.xlu0 %v14, 127
  %v32 = vpop.permute.xlu0 %31
  %33 = vst [vmem:[#allocation2 + $0xa0] sm:$0xff] %v32
  %34 = vrot.lane.b32.xlu0 %v14, 126
  %v35 = vpop.permute.xlu0 %34
  %36 = vst [vmem:[#allocation2 + $0xc0] sm:$0xff] %v35
  %37 = vrot.lane.b32.xlu0 %v14, 125
  %v38 = vpop.permute.xlu0 %37
  %39 = vst [vmem:[#allocation2 + $0xe0] sm:$0xff] %v38
  %40 = vrot.lane.b32.xlu0 %v14, 124
  %v41 = vpop.permute.xlu0 %40
  %42 = vst [vmem:[#allocation2 + $0x100] sm:$0xff] %v41
  %43 = vrot.lane.b32.xlu0 %v15, 4
  %v44 = vpop.permute.xlu0 %43
  %45 = vst [vmem:[#allocation2 + $0x8] sm:$0xff] %v44
  %46 = vrot.lane.b32.xlu0 %v15, 3
  %v47 = vpop.permute.xlu0 %46
  %48 = vst [vmem:[#allocation2 + $0x28] sm:$0xff] %v47
  %49 = vrot.lane.b32.xlu0 %v15, 2
  %v50 = vpop.permute.xlu0 %49
  %51 = vst [vmem:[#allocation2 + $0x48] sm:$0xff] %v50
  %52 = vrot.lane.b32.xlu0 %v15, 1
  %v53 = vpop.permute.xlu0 %52
  %54 = vst [vmem:[#allocation2 + $0x68] sm:$0xff] %v53
  %55 = vst [vmem:[#allocation2 + $0x88] sm:$0xff] %v15
  %56 = vrot.lane.b32.xlu0 %v15, 127
  %v57 = vpop.permute.xlu0 %56
  %58 = vst [vmem:[#allocation2 + $0xa8] sm:$0xff] %v57
  %59 = vrot.lane.b32.xlu0 %v15, 126
  %v60 = vpop.permute.xlu0 %59
  %61 = vst [vmem:[#allocation2 + $0xc8] sm:$0xff] %v60
  %62 = vrot.lane.b32.xlu0 %v15, 125
  %v63 = vpop.permute.xlu0 %62
  %64 = vst [vmem:[#allocation2 + $0xe8] sm:$0xff] %v63
  %65 = vrot.lane.b32.xlu0 %v15, 124
  %v66 = vpop.permute.xlu0 %65
  %67 = vst [vmem:[#allocation2 + $0x108] sm:$0xff] %v66
  %68 = vrot.lane.b32.xlu0 %v16, 4
  %v69 = vpop.permute.xlu0 %68
  %70 = vst [vmem:[#allocation2 + $0x10] sm:$0xff] %v69
  %71 = vrot.lane.b32.xlu0 %v16, 3
  %v72 = vpop.permute.xlu0 %71
  %73 = vst [vmem:[#allocation2 + $0x30] sm:$0xff] %v72
  %74 = vrot.lane.b32.xlu0 %v16, 2
  %v75 = vpop.permute.xlu0 %74
  %76 = vst [vmem:[#allocation2 + $0x50] sm:$0xff] %v75
  %77 = vrot.lane.b32.xlu0 %v16, 1
  %v78 = vpop.permute.xlu0 %77
  %79 = vst [vmem:[#allocation2 + $0x70] sm:$0xff] %v78
  %80 = vst [vmem:[#allocation2 + $0x90] sm:$0xff] %v16
  %81 = vrot.lane.b32.xlu0 %v16, 127
  %v82 = vpop.permute.xlu0 %81
  %83 = vst [vmem:[#allocation2 + $0xb0] sm:$0xff] %v82
  %84 = vrot.lane.b32.xlu0 %v16, 126
  %v85 = vpop.permute.xlu0 %84
  %86 = vst [vmem:[#allocation2 + $0xd0] sm:$0xff] %v85
  %87 = vrot.lane.b32.xlu0 %v16, 125
  %v88 = vpop.permute.xlu0 %87
  %89 = vst [vmem:[#allocation2 + $0xf0] sm:$0xff] %v88
  %90 = vrot.lane.b32.xlu0 %v16, 124
  %v91 = vpop.permute.xlu0 %90
  %92 = vst [vmem:[#allocation2 + $0x110] sm:$0xff] %v91
  %93 = vrot.lane.b32.xlu0 %v17, 4
  %v94 = vpop.permute.xlu0 %93
  %95 = vst [vmem:[#allocation2 + $0x18] sm:$0xff] %v94
  %96 = vrot.lane.b32.xlu0 %v17, 3
  %v97 = vpop.permute.xlu0 %96
  %98 = vst [vmem:[#allocation2 + $0x38] sm:$0xff] %v97
  %99 = vrot.lane.b32.xlu0 %v17, 2
  %v100 = vpop.permute.xlu0 %99
  %101 = vst [vmem:[#allocation2 + $0x58] sm:$0xff] %v100
  %102 = vrot.lane.b32.xlu0 %v17, 1
  %v103 = vpop.permute.xlu0 %102
  %104 = vst [vmem:[#allocation2 + $0x78] sm:$0xff] %v103
  %105 = vst [vmem:[#allocation2 + $0x98] sm:$0xff] %v17
  %106 = vrot.lane.b32.xlu0 %v17, 127
  %v107 = vpop.permute.xlu0 %106
  %108 = vst [vmem:[#allocation2 + $0xb8] sm:$0xff] %v107
  %109 = vrot.lane.b32.xlu0 %v17, 126
  %v110 = vpop.permute.xlu0 %109
  %111 = vst [vmem:[#allocation2 + $0xd8] sm:$0xff] %v110
  %112 = vrot.lane.b32.xlu0 %v17, 125
  %v113 = vpop.permute.xlu0 %112
  %114 = vst [vmem:[#allocation2 + $0xf8] sm:$0xff] %v113
  %115 = vrot.lane.b32.xlu0 %v17, 124
  %v116 = vpop.permute.xlu0 %115
  %117 = vst [vmem:[#allocation2 + $0x118] sm:$0xff] %v116
  %v118 = vld [vmem:[%s2] sm:$0xff]
  %v119 = vld [vmem:[%s2 + $0x18] sm:$0xff]
  %v120 = vld [vmem:[%s2 + $0x30] sm:$0xff]
  %v121 = vld [vmem:[%s2 + $0x48] sm:$0xff]
  %v122 = vld [vmem:[#allocation2] sm:$0xff]
  %v123 = vld [vmem:[#allocation2 + $0x8] sm:$0xff]
  %v124 = vld [vmem:[#allocation2 + $0x10] sm:$0xff]
  %v125 = vld [vmem:[#allocation2 + $0x18] sm:$0xff]
  %v126 = vld [vmem:[#allocation2 + $0x20] sm:$0xff]
  %v127 = vld [vmem:[#allocation2 + $0x28] sm:$0xff]
  %v128 = vld [vmem:[#allocation2 + $0x30] sm:$0xff]
  %v129 = vld [vmem:[#allocation2 + $0x38] sm:$0xff]
  %v130 = vld [vmem:[#allocation2 + $0x40] sm:$0xff]
  %v131 = vld [vmem:[#allocation2 + $0x48] sm:$0xff]
  %v132 = vld [vmem:[#allocation2 + $0x50] sm:$0xff]
  %v133 = vld [vmem:[#allocation2 + $0x58] sm:$0xff]
  %v134 = vld [vmem:[#allocation2 + $0x60] sm:$0xff]
  %v135 = vld [vmem:[#allocation2 + $0x68] sm:$0xff]
  %v136 = vld [vmem:[#allocation2 + $0x70] sm:$0xff]
  %v137 = vld [vmem:[#allocation2 + $0x78] sm:$0xff]
  %v138 = vld [vmem:[#allocation2 + $0x80] sm:$0xff]
  %v139 = vld [vmem:[#allocation2 + $0x88] sm:$0xff]
  %v140 = vld [vmem:[#allocation2 + $0x90] sm:$0xff]
  %v141 = vld [vmem:[#allocation2 + $0x98] sm:$0xff]
  %v142 = vld [vmem:[#allocation2 + $0xa0] sm:$0xff]
  %v143 = vld [vmem:[#allocation2 + $0xa8] sm:$0xff]
  %v144 = vld [vmem:[#allocation2 + $0xb0] sm:$0xff]
  %v145 = vld [vmem:[#allocation2 + $0xb8] sm:$0xff]
  %v146 = vld [vmem:[#allocation2 + $0xc0] sm:$0xff]
  %v147 = vld [vmem:[#allocation2 + $0xc8] sm:$0xff]
  %v148 = vld [vmem:[#allocation2 + $0xd0] sm:$0xff]
  %v149 = vld [vmem:[#allocation2 + $0xd8] sm:$0xff]
  %v150 = vld [vmem:[#allocation2 + $0xe0] sm:$0xff]
  %v151 = vld [vmem:[#allocation2 + $0xe8] sm:$0xff]
  %v152 = vld [vmem:[#allocation2 + $0xf0] sm:$0xff]
  %v153 = vld [vmem:[#allocation2 + $0xf8] sm:$0xff]
  %v154 = vld [vmem:[#allocation2 + $0x100] sm:$0xff]
  %v155 = vld [vmem:[#allocation2 + $0x108] sm:$0xff]
  %v156 = vld [vmem:[#allocation2 + $0x110] sm:$0xff]
  %v157 = vld [vmem:[#allocation2 + $0x118] sm:$0xff]
  %v158 = vld [vmem:[%s2 + $0x258] sm:$0xff]
  %v159 = vld [vmem:[%s2 + $0x270] sm:$0xff]
  %v160 = vld [vmem:[%s2 + $0x288] sm:$0xff]
  %v161 = vld [vmem:[%s2 + $0x2a0] sm:$0xff]
  %163 = vset.pattern.permute.xlu0 0
  %164 = vperm.xlu0 %163, %v158
  %v165 = vpop.permute.xlu0 %164
  %168 = vset.pattern.permute.xlu0 0
  %169 = vperm.xlu0 %168, %v159
  %v170 = vpop.permute.xlu0 %169
  %173 = vset.pattern.permute.xlu0 0
  %174 = vperm.xlu0 %173, %v160
  %v175 = vpop.permute.xlu0 %174
  %178 = vset.pattern.permute.xlu0 0
  %179 = vperm.xlu0 %178, %v161
  %v180 = vpop.permute.xlu0 %179
  %vm182 = vcmask 588800
  %v184 = vsel %vm182, %v118, 0
  %v187 = vsel %vm182, %v119, 0
  %v190 = vsel %vm182, %v120, 0
  %v193 = vsel %vm182, %v121, 0
  %195 = vmatpush.msra.mxu0 0.0
  %196 = vmatpush.msra.mxu0 0.0
  %197 = vmatpush.msra.mxu0 0.0
  %198 = vmatpush.msra.mxu0 0.0
  %199 = vmatpush.msra.mxu0 0.0
  %200 = vmatpush.msra.mxu0 0.0
  %201 = vmatpush.msra.mxu0 0.0
  %202 = vmatpush.msra.mxu0 %v154
  %203 = vmatpush.msra.mxu0 %v150
  %204 = vmatpush.msra.mxu0 %v146
  %205 = vmatpush.msra.mxu0 %v142
  %206 = vmatpush.msra.mxu0 %v138
  %207 = vmatpush.msra.mxu0 %v134
  %208 = vmatpush.msra.mxu0 %v130
  %209 = vmatpush.msra.mxu0 %v126
  %210 = vmatpush.msra.mxu0 %v122
  %211 = vmatmul.f32.gmra.mxu0 %v184
  %v212 = vpop.f32.mrf.mxu0
  %v213 = vadd.f32 %v165, %v212
  %214 = vmatmul.f32.gmra.mxu0 %v187
  %v215 = vpop.f32.mrf.mxu0
  %v216 = vadd.f32 %v170, %v215
  %217 = vmatmul.f32.gmra.mxu0 %v190
  %v218 = vpop.f32.mrf.mxu0
  %v219 = vadd.f32 %v175, %v218
  %220 = vmatmul.f32.gmra.mxu0 %v193
  %v221 = vpop.f32.mrf.mxu0
  %v222 = vadd.f32 %v180, %v221
  %223 = vdwg.mxu0
  %224 = vmatpush.msra.mxu0 0.0
  %225 = vmatpush.msra.mxu0 0.0
  %226 = vmatpush.msra.mxu0 0.0
  %227 = vmatpush.msra.mxu0 0.0
  %228 = vmatpush.msra.mxu0 0.0
  %229 = vmatpush.msra.mxu0 0.0
  %230 = vmatpush.msra.mxu0 0.0
  %231 = vmatpush.msra.mxu0 %v155
  %232 = vmatpush.msra.mxu0 %v151
  %233 = vmatpush.msra.mxu0 %v147
  %234 = vmatpush.msra.mxu0 %v143
  %235 = vmatpush.msra.mxu0 %v139
  %236 = vmatpush.msra.mxu0 %v135
  %237 = vmatpush.msra.mxu0 %v131
  %238 = vmatpush.msra.mxu0 %v127
  %239 = vmatpush.msra.mxu0 %v123
  %240 = vmatmul.f32.gmra.mxu0 %v184
  %v241 = vpop.f32.mrf.mxu0
  %v242 = vadd.f32 %v165, %v241
  %243 = vmatmul.f32.gmra.mxu0 %v187
  %v244 = vpop.f32.mrf.mxu0
  %v245 = vadd.f32 %v170, %v244
  %246 = vmatmul.f32.gmra.mxu0 %v190
  %v247 = vpop.f32.mrf.mxu0
  %v248 = vadd.f32 %v175, %v247
  %249 = vmatmul.f32.gmra.mxu0 %v193
  %v250 = vpop.f32.mrf.mxu0
  %v251 = vadd.f32 %v180, %v250
  %252 = vdwg.mxu0
  %253 = vmatpush.msra.mxu0 0.0
  %254 = vmatpush.msra.mxu0 0.0
  %255 = vmatpush.msra.mxu0 0.0
  %256 = vmatpush.msra.mxu0 0.0
  %257 = vmatpush.msra.mxu0 0.0
  %258 = vmatpush.msra.mxu0 0.0
  %259 = vmatpush.msra.mxu0 0.0
  %260 = vmatpush.msra.mxu0 %v156
  %261 = vmatpush.msra.mxu0 %v152
  %262 = vmatpush.msra.mxu0 %v148
  %263 = vmatpush.msra.mxu0 %v144
  %264 = vmatpush.msra.mxu0 %v140
  %265 = vmatpush.msra.mxu0 %v136
  %266 = vmatpush.msra.mxu0 %v132
  %267 = vmatpush.msra.mxu0 %v128
  %268 = vmatpush.msra.mxu0 %v124
  %269 = vmatmul.f32.gmra.mxu0 %v184
  %v270 = vpop.f32.mrf.mxu0
  %v271 = vadd.f32 %v165, %v270
  %272 = vmatmul.f32.gmra.mxu0 %v187
  %v273 = vpop.f32.mrf.mxu0
  %v274 = vadd.f32 %v170, %v273
  %275 = vmatmul.f32.gmra.mxu0 %v190
  %v276 = vpop.f32.mrf.mxu0
  %v277 = vadd.f32 %v175, %v276
  %278 = vmatmul.f32.gmra.mxu0 %v193
  %v279 = vpop.f32.mrf.mxu0
  %v280 = vadd.f32 %v180, %v279
  %281 = vdwg.mxu0
  %282 = vmatpush.msra.mxu0 0.0
  %283 = vmatpush.msra.mxu0 0.0
  %284 = vmatpush.msra.mxu0 0.0
  %285 = vmatpush.msra.mxu0 0.0
  %286 = vmatpush.msra.mxu0 0.0
  %287 = vmatpush.msra.mxu0 0.0
  %288 = vmatpush.msra.mxu0 0.0
  %289 = vmatpush.msra.mxu0 %v157
  %290 = vmatpush.msra.mxu0 %v153
  %291 = vmatpush.msra.mxu0 %v149
  %292 = vmatpush.msra.mxu0 %v145
  %293 = vmatpush.msra.mxu0 %v141
  %294 = vmatpush.msra.mxu0 %v137
  %295 = vmatpush.msra.mxu0 %v133
  %296 = vmatpush.msra.mxu0 %v129
  %297 = vmatpush.msra.mxu0 %v125
  %298 = vmatmul.f32.gmra.mxu0 %v184
  %v299 = vpop.f32.mrf.mxu0
  %v300 = vadd.f32 %v165, %v299
  %301 = vmatmul.f32.gmra.mxu0 %v187
  %v302 = vpop.f32.mrf.mxu0
  %v303 = vadd.f32 %v170, %v302
  %304 = vmatmul.f32.gmra.mxu0 %v190
  %v305 = vpop.f32.mrf.mxu0
  %v306 = vadd.f32 %v175, %v305
  %307 = vmatmul.f32.gmra.mxu0 %v193
  %v308 = vpop.f32.mrf.mxu0
  %v309 = vadd.f32 %v180, %v308
  %310 = vdwg.mxu0
  %v311 = vmax.f32 %v213, 0.0
  %v312 = vmax.f32 %v242, 0.0
  %v313 = vmax.f32 %v271, 0.0
  %v314 = vmax.f32 %v300, 0.0
  %v315 = vmax.f32 %v216, 0.0
  %v316 = vmax.f32 %v245, 0.0
  %v317 = vmax.f32 %v274, 0.0
  %v318 = vmax.f32 %v303, 0.0
  %v319 = vmax.f32 %v219, 0.0
  %v320 = vmax.f32 %v248, 0.0
  %v321 = vmax.f32 %v277, 0.0
  %v322 = vmax.f32 %v306, 0.0
  %v323 = vmax.f32 %v222, 0.0
  %v324 = vmax.f32 %v251, 0.0
  %v325 = vmax.f32 %v280, 0.0
  %v326 = vmax.f32 %v309, 0.0
  %327 = vst [vmem:[#allocation3] sm:$0xff] %v311
  %328 = vst [vmem:[#allocation3 + $0x8] sm:$0xff] %v312
  %329 = vst [vmem:[#allocation3 + $0x10] sm:$0xff] %v313
  %330 = vst [vmem:[#allocation3 + $0x18] sm:$0xff] %v314
  %331 = vst [vmem:[#allocation3 + $0x20] sm:$0xff] %v315
  %332 = vst [vmem:[#allocation3 + $0x28] sm:$0xff] %v316
  %333 = vst [vmem:[#allocation3 + $0x30] sm:$0xff] %v317
  %334 = vst [vmem:[#allocation3 + $0x38] sm:$0xff] %v318
  %335 = vst [vmem:[#allocation3 + $0x40] sm:$0xff] %v319
  %336 = vst [vmem:[#allocation3 + $0x48] sm:$0xff] %v320
  %337 = vst [vmem:[#allocation3 + $0x50] sm:$0xff] %v321
  %338 = vst [vmem:[#allocation3 + $0x58] sm:$0xff] %v322
  %339 = vst [vmem:[#allocation3 + $0x60] sm:$0xff] %v323
  %340 = vst [vmem:[#allocation3 + $0x68] sm:$0xff] %v324
  %341 = vst [vmem:[#allocation3 + $0x70] sm:$0xff] %v325
  %342 = vst [vmem:[#allocation3 + $0x78] sm:$0xff] %v326
  %343 = vrot.lane.b32.xlu0 %v311, 4
  %v344 = vpop.permute.xlu0 %343
  %345 = vrot.lane.b32.xlu0 %v315, 4
  %v346 = vpop.permute.xlu0 %345
  %347 = vrot.lane.b32.xlu0 %v319, 4
  %v348 = vpop.permute.xlu0 %347
  %349 = vrot.lane.b32.xlu0 %v323, 4
  %v350 = vpop.permute.xlu0 %349
  %351 = vst [vmem:[#allocation2] sm:$0xff] %v344
  %352 = vst [vmem:[#allocation2 + $0x20] sm:$0xff] %v346
  %353 = vst [vmem:[#allocation2 + $0x40] sm:$0xff] %v348
  %354 = vst [vmem:[#allocation2 + $0x60] sm:$0xff] %v350
  %355 = vrot.lane.b32.xlu0 %v311, 3
  %v356 = vpop.permute.xlu0 %355
  %357 = vrot.lane.b32.xlu0 %v315, 3
  %v358 = vpop.permute.xlu0 %357
  %359 = vrot.lane.b32.xlu0 %v319, 3
  %v360 = vpop.permute.xlu0 %359
  %361 = vrot.lane.b32.xlu0 %v323, 3
  %v362 = vpop.permute.xlu0 %361
  %363 = vst [vmem:[#allocation2 + $0x80] sm:$0xff] %v356
  %364 = vst [vmem:[#allocation2 + $0xa0] sm:$0xff] %v358
  %365 = vst [vmem:[#allocation2 + $0xc0] sm:$0xff] %v360
  %366 = vst [vmem:[#allocation2 + $0xe0] sm:$0xff] %v362
  %367 = vrot.lane.b32.xlu0 %v311, 2
  %v368 = vpop.permute.xlu0 %367
  %369 = vrot.lane.b32.xlu0 %v315, 2
  %v370 = vpop.permute.xlu0 %369
  %371 = vrot.lane.b32.xlu0 %v319, 2
  %v372 = vpop.permute.xlu0 %371
  %373 = vrot.lane.b32.xlu0 %v323, 2
  %v374 = vpop.permute.xlu0 %373
  %375 = vst [vmem:[#allocation2 + $0x100] sm:$0xff] %v368
  %376 = vst [vmem:[#allocation2 + $0x120] sm:$0xff] %v370
  %377 = vst [vmem:[#allocation2 + $0x140] sm:$0xff] %v372
  %378 = vst [vmem:[#allocation2 + $0x160] sm:$0xff] %v374
  %379 = vrot.lane.b32.xlu0 %v311, 1
  %v380 = vpop.permute.xlu0 %379
  %381 = vrot.lane.b32.xlu0 %v315, 1
  %v382 = vpop.permute.xlu0 %381
  %383 = vrot.lane.b32.xlu0 %v319, 1
  %v384 = vpop.permute.xlu0 %383
  %385 = vrot.lane.b32.xlu0 %v323, 1
  %v386 = vpop.permute.xlu0 %385
  %387 = vst [vmem:[#allocation2 + $0x180] sm:$0xff] %v380
  %388 = vst [vmem:[#allocation2 + $0x1a0] sm:$0xff] %v382
  %389 = vst [vmem:[#allocation2 + $0x1c0] sm:$0xff] %v384
  %390 = vst [vmem:[#allocation2 + $0x1e0] sm:$0xff] %v386
  %391 = vst [vmem:[#allocation2 + $0x200] sm:$0xff] %v311
  %392 = vst [vmem:[#allocation2 + $0x220] sm:$0xff] %v315
  %393 = vst [vmem:[#allocation2 + $0x240] sm:$0xff] %v319
  %394 = vst [vmem:[#allocation2 + $0x260] sm:$0xff] %v323
  %395 = vrot.lane.b32.xlu0 %v311, 127
  %v396 = vpop.permute.xlu0 %395
  %397 = vrot.lane.b32.xlu0 %v315, 127
  %v398 = vpop.permute.xlu0 %397
  %399 = vrot.lane.b32.xlu0 %v319, 127
  %v400 = vpop.permute.xlu0 %399
  %401 = vrot.lane.b32.xlu0 %v323, 127
  %v402 = vpop.permute.xlu0 %401
  %403 = vst [vmem:[#allocation2 + $0x280] sm:$0xff] %v396
  %404 = vst [vmem:[#allocation2 + $0x2a0] sm:$0xff] %v398
  %405 = vst [vmem:[#allocation2 + $0x2c0] sm:$0xff] %v400
  %406 = vst [vmem:[#allocation2 + $0x2e0] sm:$0xff] %v402
  %407 = vrot.lane.b32.xlu0 %v311, 126
  %v408 = vpop.permute.xlu0 %407
  %409 = vrot.lane.b32.xlu0 %v315, 126
  %v410 = vpop.permute.xlu0 %409
  %411 = vrot.lane.b32.xlu0 %v319, 126
  %v412 = vpop.permute.xlu0 %411
  %413 = vrot.lane.b32.xlu0 %v323, 126
  %v414 = vpop.permute.xlu0 %413
  %415 = vst [vmem:[#allocation2 + $0x300] sm:$0xff] %v408
  %416 = vst [vmem:[#allocation2 + $0x320] sm:$0xff] %v410
  %417 = vst [vmem:[#allocation2 + $0x340] sm:$0xff] %v412
  %418 = vst [vmem:[#allocation2 + $0x360] sm:$0xff] %v414
  %419 = vrot.lane.b32.xlu0 %v311, 125
  %v420 = vpop.permute.xlu0 %419
  %421 = vrot.lane.b32.xlu0 %v315, 125
  %v422 = vpop.permute.xlu0 %421
  %423 = vrot.lane.b32.xlu0 %v319, 125
  %v424 = vpop.permute.xlu0 %423
  %425 = vrot.lane.b32.xlu0 %v323, 125
  %v426 = vpop.permute.xlu0 %425
  %427 = vst [vmem:[#allocation2 + $0x380] sm:$0xff] %v420
  %428 = vst [vmem:[#allocation2 + $0x3a0] sm:$0xff] %v422
  %429 = vst [vmem:[#allocation2 + $0x3c0] sm:$0xff] %v424
  %430 = vst [vmem:[#allocation2 + $0x3e0] sm:$0xff] %v426
  %431 = vrot.lane.b32.xlu0 %v311, 124
  %v432 = vpop.permute.xlu0 %431
  %433 = vrot.lane.b32.xlu0 %v315, 124
  %v434 = vpop.permute.xlu0 %433
  %435 = vrot.lane.b32.xlu0 %v319, 124
  %v436 = vpop.permute.xlu0 %435
  %437 = vrot.lane.b32.xlu0 %v323, 124
  %v438 = vpop.permute.xlu0 %437
  %439 = vst [vmem:[#allocation2 + $0x400] sm:$0xff] %v432
  %440 = vst [vmem:[#allocation2 + $0x420] sm:$0xff] %v434
  %441 = vst [vmem:[#allocation2 + $0x440] sm:$0xff] %v436
  %442 = vst [vmem:[#allocation2 + $0x460] sm:$0xff] %v438
  %443 = vrot.lane.b32.xlu0 %v312, 4
  %v444 = vpop.permute.xlu0 %443
  %445 = vrot.lane.b32.xlu0 %v316, 4
  %v446 = vpop.permute.xlu0 %445
  %447 = vrot.lane.b32.xlu0 %v320, 4
  %v448 = vpop.permute.xlu0 %447
  %449 = vrot.lane.b32.xlu0 %v324, 4
  %v450 = vpop.permute.xlu0 %449
  %451 = vst [vmem:[#allocation2 + $0x8] sm:$0xff] %v444
  %452 = vst [vmem:[#allocation2 + $0x28] sm:$0xff] %v446
  %453 = vst [vmem:[#allocation2 + $0x48] sm:$0xff] %v448
  %454 = vst [vmem:[#allocation2 + $0x68] sm:$0xff] %v450
  %455 = vrot.lane.b32.xlu0 %v312, 3
  %v456 = vpop.permute.xlu0 %455
  %457 = vrot.lane.b32.xlu0 %v316, 3
  %v458 = vpop.permute.xlu0 %457
  %459 = vrot.lane.b32.xlu0 %v320, 3
  %v460 = vpop.permute.xlu0 %459
  %461 = vrot.lane.b32.xlu0 %v324, 3
  %v462 = vpop.permute.xlu0 %461
  %463 = vst [vmem:[#allocation2 + $0x88] sm:$0xff] %v456
  %464 = vst [vmem:[#allocation2 + $0xa8] sm:$0xff] %v458
  %465 = vst [vmem:[#allocation2 + $0xc8] sm:$0xff] %v460
  %466 = vst [vmem:[#allocation2 + $0xe8] sm:$0xff] %v462
  %467 = vrot.lane.b32.xlu0 %v312, 2
  %v468 = vpop.permute.xlu0 %467
  %469 = vrot.lane.b32.xlu0 %v316, 2
  %v470 = vpop.permute.xlu0 %469
  %471 = vrot.lane.b32.xlu0 %v320, 2
  %v472 = vpop.permute.xlu0 %471
  %473 = vrot.lane.b32.xlu0 %v324, 2
  %v474 = vpop.permute.xlu0 %473
  %475 = vst [vmem:[#allocation2 + $0x108] sm:$0xff] %v468
  %476 = vst [vmem:[#allocation2 + $0x128] sm:$0xff] %v470
  %477 = vst [vmem:[#allocation2 + $0x148] sm:$0xff] %v472
  %478 = vst [vmem:[#allocation2 + $0x168] sm:$0xff] %v474
  %479 = vrot.lane.b32.xlu0 %v312, 1
  %v480 = vpop.permute.xlu0 %479
  %481 = vrot.lane.b32.xlu0 %v316, 1
  %v482 = vpop.permute.xlu0 %481
  %483 = vrot.lane.b32.xlu0 %v320, 1
  %v484 = vpop.permute.xlu0 %483
  %485 = vrot.lane.b32.xlu0 %v324, 1
  %v486 = vpop.permute.xlu0 %485
  %487 = vst [vmem:[#allocation2 + $0x188] sm:$0xff] %v480
  %488 = vst [vmem:[#allocation2 + $0x1a8] sm:$0xff] %v482
  %489 = vst [vmem:[#allocation2 + $0x1c8] sm:$0xff] %v484
  %490 = vst [vmem:[#allocation2 + $0x1e8] sm:$0xff] %v486
  %491 = vst [vmem:[#allocation2 + $0x208] sm:$0xff] %v312
  %492 = vst [vmem:[#allocation2 + $0x228] sm:$0xff] %v316
  %493 = vst [vmem:[#allocation2 + $0x248] sm:$0xff] %v320
  %494 = vst [vmem:[#allocation2 + $0x268] sm:$0xff] %v324
  %495 = vrot.lane.b32.xlu0 %v312, 127
  %v496 = vpop.permute.xlu0 %495
  %497 = vrot.lane.b32.xlu0 %v316, 127
  %v498 = vpop.permute.xlu0 %497
  %499 = vrot.lane.b32.xlu0 %v320, 127
  %v500 = vpop.permute.xlu0 %499
  %501 = vrot.lane.b32.xlu0 %v324, 127
  %v502 = vpop.permute.xlu0 %501
  %503 = vst [vmem:[#allocation2 + $0x288] sm:$0xff] %v496
  %504 = vst [vmem:[#allocation2 + $0x2a8] sm:$0xff] %v498
  %505 = vst [vmem:[#allocation2 + $0x2c8] sm:$0xff] %v500
  %506 = vst [vmem:[#allocation2 + $0x2e8] sm:$0xff] %v502
  %507 = vrot.lane.b32.xlu0 %v312, 126
  %v508 = vpop.permute.xlu0 %507
  %509 = vrot.lane.b32.xlu0 %v316, 126
  %v510 = vpop.permute.xlu0 %509
  %511 = vrot.lane.b32.xlu0 %v320, 126
  %v512 = vpop.permute.xlu0 %511
  %513 = vrot.lane.b32.xlu0 %v324, 126
  %v514 = vpop.permute.xlu0 %513
  %515 = vst [vmem:[#allocation2 + $0x308] sm:$0xff] %v508
  %516 = vst [vmem:[#allocation2 + $0x328] sm:$0xff] %v510
  %517 = vst [vmem:[#allocation2 + $0x348] sm:$0xff] %v512
  %518 = vst [vmem:[#allocation2 + $0x368] sm:$0xff] %v514
  %519 = vrot.lane.b32.xlu0 %v312, 125
  %v520 = vpop.permute.xlu0 %519
  %521 = vrot.lane.b32.xlu0 %v316, 125
  %v522 = vpop.permute.xlu0 %521
  %523 = vrot.lane.b32.xlu0 %v320, 125
  %v524 = vpop.permute.xlu0 %523
  %525 = vrot.lane.b32.xlu0 %v324, 125
  %v526 = vpop.permute.xlu0 %525
  %527 = vst [vmem:[#allocation2 + $0x388] sm:$0xff] %v520
  %528 = vst [vmem:[#allocation2 + $0x3a8] sm:$0xff] %v522
  %529 = vst [vmem:[#allocation2 + $0x3c8] sm:$0xff] %v524
  %530 = vst [vmem:[#allocation2 + $0x3e8] sm:$0xff] %v526
  %531 = vrot.lane.b32.xlu0 %v312, 124
  %v532 = vpop.permute.xlu0 %531
  %533 = vrot.lane.b32.xlu0 %v316, 124
  %v534 = vpop.permute.xlu0 %533
  %535 = vrot.lane.b32.xlu0 %v320, 124
  %v536 = vpop.permute.xlu0 %535
  %537 = vrot.lane.b32.xlu0 %v324, 124
  %v538 = vpop.permute.xlu0 %537
  %539 = vst [vmem:[#allocation2 + $0x408] sm:$0xff] %v532
  %540 = vst [vmem:[#allocation2 + $0x428] sm:$0xff] %v534
  %541 = vst [vmem:[#allocation2 + $0x448] sm:$0xff] %v536
  %542 = vst [vmem:[#allocation2 + $0x468] sm:$0xff] %v538
  %543 = vrot.lane.b32.xlu0 %v313, 4
  %v544 = vpop.permute.xlu0 %543
  %545 = vrot.lane.b32.xlu0 %v317, 4
  %v546 = vpop.permute.xlu0 %545
  %547 = vrot.lane.b32.xlu0 %v321, 4
  %v548 = vpop.permute.xlu0 %547
  %549 = vrot.lane.b32.xlu0 %v325, 4
  %v550 = vpop.permute.xlu0 %549
  %551 = vst [vmem:[#allocation2 + $0x10] sm:$0xff] %v544
  %552 = vst [vmem:[#allocation2 + $0x30] sm:$0xff] %v546
  %553 = vst [vmem:[#allocation2 + $0x50] sm:$0xff] %v548
  %554 = vst [vmem:[#allocation2 + $0x70] sm:$0xff] %v550
  %555 = vrot.lane.b32.xlu0 %v313, 3
  %v556 = vpop.permute.xlu0 %555
  %557 = vrot.lane.b32.xlu0 %v317, 3
  %v558 = vpop.permute.xlu0 %557
  %559 = vrot.lane.b32.xlu0 %v321, 3
  %v560 = vpop.permute.xlu0 %559
  %561 = vrot.lane.b32.xlu0 %v325, 3
  %v562 = vpop.permute.xlu0 %561
  %563 = vst [vmem:[#allocation2 + $0x90] sm:$0xff] %v556
  %564 = vst [vmem:[#allocation2 + $0xb0] sm:$0xff] %v558
  %565 = vst [vmem:[#allocation2 + $0xd0] sm:$0xff] %v560
  %566 = vst [vmem:[#allocation2 + $0xf0] sm:$0xff] %v562
  %567 = vrot.lane.b32.xlu0 %v313, 2
  %v568 = vpop.permute.xlu0 %567
  %569 = vrot.lane.b32.xlu0 %v317, 2
  %v570 = vpop.permute.xlu0 %569
  %571 = vrot.lane.b32.xlu0 %v321, 2
  %v572 = vpop.permute.xlu0 %571
  %573 = vrot.lane.b32.xlu0 %v325, 2
  %v574 = vpop.permute.xlu0 %573
  %575 = vst [vmem:[#allocation2 + $0x110] sm:$0xff] %v568
  %576 = vst [vmem:[#allocation2 + $0x130] sm:$0xff] %v570
  %577 = vst [vmem:[#allocation2 + $0x150] sm:$0xff] %v572
  %578 = vst [vmem:[#allocation2 + $0x170] sm:$0xff] %v574
  %579 = vrot.lane.b32.xlu0 %v313, 1
  %v580 = vpop.permute.xlu0 %579
  %581 = vrot.lane.b32.xlu0 %v317, 1
  %v582 = vpop.permute.xlu0 %581
  %583 = vrot.lane.b32.xlu0 %v321, 1
  %v584 = vpop.permute.xlu0 %583
  %585 = vrot.lane.b32.xlu0 %v325, 1
  %v586 = vpop.permute.xlu0 %585
  %587 = vst [vmem:[#allocation2 + $0x190] sm:$0xff] %v580
  %588 = vst [vmem:[#allocation2 + $0x1b0] sm:$0xff] %v582
  %589 = vst [vmem:[#allocation2 + $0x1d0] sm:$0xff] %v584
  %590 = vst [vmem:[#allocation2 + $0x1f0] sm:$0xff] %v586
  %591 = vst [vmem:[#allocation2 + $0x210] sm:$0xff] %v313
  %592 = vst [vmem:[#allocation2 + $0x230] sm:$0xff] %v317
  %593 = vst [vmem:[#allocation2 + $0x250] sm:$0xff] %v321
  %594 = vst [vmem:[#allocation2 + $0x270] sm:$0xff] %v325
  %595 = vrot.lane.b32.xlu0 %v313, 127
  %v596 = vpop.permute.xlu0 %595
  %597 = vrot.lane.b32.xlu0 %v317, 127
  %v598 = vpop.permute.xlu0 %597
  %599 = vrot.lane.b32.xlu0 %v321, 127
  %v600 = vpop.permute.xlu0 %599
  %601 = vrot.lane.b32.xlu0 %v325, 127
  %v602 = vpop.permute.xlu0 %601
  %603 = vst [vmem:[#allocation2 + $0x290] sm:$0xff] %v596
  %604 = vst [vmem:[#allocation2 + $0x2b0] sm:$0xff] %v598
  %605 = vst [vmem:[#allocation2 + $0x2d0] sm:$0xff] %v600
  %606 = vst [vmem:[#allocation2 + $0x2f0] sm:$0xff] %v602
  %607 = vrot.lane.b32.xlu0 %v313, 126
  %v608 = vpop.permute.xlu0 %607
  %609 = vrot.lane.b32.xlu0 %v317, 126
  %v610 = vpop.permute.xlu0 %609
  %611 = vrot.lane.b32.xlu0 %v321, 126
  %v612 = vpop.permute.xlu0 %611
  %613 = vrot.lane.b32.xlu0 %v325, 126
  %v614 = vpop.permute.xlu0 %613
  %615 = vst [vmem:[#allocation2 + $0x310] sm:$0xff] %v608
  %616 = vst [vmem:[#allocation2 + $0x330] sm:$0xff] %v610
  %617 = vst [vmem:[#allocation2 + $0x350] sm:$0xff] %v612
  %618 = vst [vmem:[#allocation2 + $0x370] sm:$0xff] %v614
  %619 = vrot.lane.b32.xlu0 %v313, 125
  %v620 = vpop.permute.xlu0 %619
  %621 = vrot.lane.b32.xlu0 %v317, 125
  %v622 = vpop.permute.xlu0 %621
  %623 = vrot.lane.b32.xlu0 %v321, 125
  %v624 = vpop.permute.xlu0 %623
  %625 = vrot.lane.b32.xlu0 %v325, 125
  %v626 = vpop.permute.xlu0 %625
  %627 = vst [vmem:[#allocation2 + $0x390] sm:$0xff] %v620
  %628 = vst [vmem:[#allocation2 + $0x3b0] sm:$0xff] %v622
  %629 = vst [vmem:[#allocation2 + $0x3d0] sm:$0xff] %v624
  %630 = vst [vmem:[#allocation2 + $0x3f0] sm:$0xff] %v626
  %631 = vrot.lane.b32.xlu0 %v313, 124
  %v632 = vpop.permute.xlu0 %631
  %633 = vrot.lane.b32.xlu0 %v317, 124
  %v634 = vpop.permute.xlu0 %633
  %635 = vrot.lane.b32.xlu0 %v321, 124
  %v636 = vpop.permute.xlu0 %635
  %637 = vrot.lane.b32.xlu0 %v325, 124
  %v638 = vpop.permute.xlu0 %637
  %639 = vst [vmem:[#allocation2 + $0x410] sm:$0xff] %v632
  %640 = vst [vmem:[#allocation2 + $0x430] sm:$0xff] %v634
  %641 = vst [vmem:[#allocation2 + $0x450] sm:$0xff] %v636
  %642 = vst [vmem:[#allocation2 + $0x470] sm:$0xff] %v638
  %643 = vrot.lane.b32.xlu0 %v314, 4
  %v644 = vpop.permute.xlu0 %643
  %645 = vrot.lane.b32.xlu0 %v318, 4
  %v646 = vpop.permute.xlu0 %645
  %647 = vrot.lane.b32.xlu0 %v322, 4
  %v648 = vpop.permute.xlu0 %647
  %649 = vrot.lane.b32.xlu0 %v326, 4
  %v650 = vpop.permute.xlu0 %649
  %651 = vst [vmem:[#allocation2 + $0x18] sm:$0xff] %v644
  %652 = vst [vmem:[#allocation2 + $0x38] sm:$0xff] %v646
  %653 = vst [vmem:[#allocation2 + $0x58] sm:$0xff] %v648
  %654 = vst [vmem:[#allocation2 + $0x78] sm:$0xff] %v650
  %655 = vrot.lane.b32.xlu0 %v314, 3
  %v656 = vpop.permute.xlu0 %655
  %657 = vrot.lane.b32.xlu0 %v318, 3
  %v658 = vpop.permute.xlu0 %657
  %659 = vrot.lane.b32.xlu0 %v322, 3
  %v660 = vpop.permute.xlu0 %659
  %661 = vrot.lane.b32.xlu0 %v326, 3
  %v662 = vpop.permute.xlu0 %661
  %663 = vst [vmem:[#allocation2 + $0x98] sm:$0xff] %v656
  %664 = vst [vmem:[#allocation2 + $0xb8] sm:$0xff] %v658
  %665 = vst [vmem:[#allocation2 + $0xd8] sm:$0xff] %v660
  %666 = vst [vmem:[#allocation2 + $0xf8] sm:$0xff] %v662
  %667 = vrot.lane.b32.xlu0 %v314, 2
  %v668 = vpop.permute.xlu0 %667
  %669 = vrot.lane.b32.xlu0 %v318, 2
  %v670 = vpop.permute.xlu0 %669
  %671 = vrot.lane.b32.xlu0 %v322, 2
  %v672 = vpop.permute.xlu0 %671
  %673 = vrot.lane.b32.xlu0 %v326, 2
  %v674 = vpop.permute.xlu0 %673
  %675 = vst [vmem:[#allocation2 + $0x118] sm:$0xff] %v668
  %676 = vst [vmem:[#allocation2 + $0x138] sm:$0xff] %v670
  %677 = vst [vmem:[#allocation2 + $0x158] sm:$0xff] %v672
  %678 = vst [vmem:[#allocation2 + $0x178] sm:$0xff] %v674
  %679 = vrot.lane.b32.xlu0 %v314, 1
  %v680 = vpop.permute.xlu0 %679
  %681 = vrot.lane.b32.xlu0 %v318, 1
  %v682 = vpop.permute.xlu0 %681
  %683 = vrot.lane.b32.xlu0 %v322, 1
  %v684 = vpop.permute.xlu0 %683
  %685 = vrot.lane.b32.xlu0 %v326, 1
  %v686 = vpop.permute.xlu0 %685
  %687 = vst [vmem:[#allocation2 + $0x198] sm:$0xff] %v680
  %688 = vst [vmem:[#allocation2 + $0x1b8] sm:$0xff] %v682
  %689 = vst [vmem:[#allocation2 + $0x1d8] sm:$0xff] %v684
  %690 = vst [vmem:[#allocation2 + $0x1f8] sm:$0xff] %v686
  %691 = vst [vmem:[#allocation2 + $0x218] sm:$0xff] %v314
  %692 = vst [vmem:[#allocation2 + $0x238] sm:$0xff] %v318
  %693 = vst [vmem:[#allocation2 + $0x258] sm:$0xff] %v322
  %694 = vst [vmem:[#allocation2 + $0x278] sm:$0xff] %v326
  %695 = vrot.lane.b32.xlu0 %v314, 127
  %v696 = vpop.permute.xlu0 %695
  %697 = vrot.lane.b32.xlu0 %v318, 127
  %v698 = vpop.permute.xlu0 %697
  %699 = vrot.lane.b32.xlu0 %v322, 127
  %v700 = vpop.permute.xlu0 %699
  %701 = vrot.lane.b32.xlu0 %v326, 127
  %v702 = vpop.permute.xlu0 %701
  %703 = vst [vmem:[#allocation2 + $0x298] sm:$0xff] %v696
  %704 = vst [vmem:[#allocation2 + $0x2b8] sm:$0xff] %v698
  %705 = vst [vmem:[#allocation2 + $0x2d8] sm:$0xff] %v700
  %706 = vst [vmem:[#allocation2 + $0x2f8] sm:$0xff] %v702
  %707 = vrot.lane.b32.xlu0 %v314, 126
  %v708 = vpop.permute.xlu0 %707
  %709 = vrot.lane.b32.xlu0 %v318, 126
  %v710 = vpop.permute.xlu0 %709
  %711 = vrot.lane.b32.xlu0 %v322, 126
  %v712 = vpop.permute.xlu0 %711
  %713 = vrot.lane.b32.xlu0 %v326, 126
  %v714 = vpop.permute.xlu0 %713
  %715 = vst [vmem:[#allocation2 + $0x318] sm:$0xff] %v708
  %716 = vst [vmem:[#allocation2 + $0x338] sm:$0xff] %v710
  %717 = vst [vmem:[#allocation2 + $0x358] sm:$0xff] %v712
  %718 = vst [vmem:[#allocation2 + $0x378] sm:$0xff] %v714
  %719 = vrot.lane.b32.xlu0 %v314, 125
  %v720 = vpop.permute.xlu0 %719
  %721 = vrot.lane.b32.xlu0 %v318, 125
  %v722 = vpop.permute.xlu0 %721
  %723 = vrot.lane.b32.xlu0 %v322, 125
  %v724 = vpop.permute.xlu0 %723
  %725 = vrot.lane.b32.xlu0 %v326, 125
  %v726 = vpop.permute.xlu0 %725
  %727 = vst [vmem:[#allocation2 + $0x398] sm:$0xff] %v720
  %728 = vst [vmem:[#allocation2 + $0x3b8] sm:$0xff] %v722
  %729 = vst [vmem:[#allocation2 + $0x3d8] sm:$0xff] %v724
  %730 = vst [vmem:[#allocation2 + $0x3f8] sm:$0xff] %v726
  %731 = vrot.lane.b32.xlu0 %v314, 124
  %v732 = vpop.permute.xlu0 %731
  %733 = vrot.lane.b32.xlu0 %v318, 124
  %v734 = vpop.permute.xlu0 %733
  %735 = vrot.lane.b32.xlu0 %v322, 124
  %v736 = vpop.permute.xlu0 %735
  %737 = vrot.lane.b32.xlu0 %v326, 124
  %v738 = vpop.permute.xlu0 %737
  %739 = vst [vmem:[#allocation2 + $0x418] sm:$0xff] %v732
  %740 = vst [vmem:[#allocation2 + $0x438] sm:$0xff] %v734
  %741 = vst [vmem:[#allocation2 + $0x458] sm:$0xff] %v736
  %742 = vst [vmem:[#allocation2 + $0x478] sm:$0xff] %v738
  %v743 = vld [vmem:[%s2 + $0x60] sm:$0xff]
  %v744 = vld [vmem:[%s2 + $0x68] sm:$0xff]
  %v745 = vld [vmem:[%s2 + $0x70] sm:$0xff]
  %v746 = vld [vmem:[%s2 + $0x78] sm:$0xff]
  %v747 = vld [vmem:[%s2 + $0x80] sm:$0xff]
  %v748 = vld [vmem:[%s2 + $0x88] sm:$0xff]
  %v749 = vld [vmem:[%s2 + $0x90] sm:$0xff]
  %v750 = vld [vmem:[%s2 + $0x98] sm:$0xff]
  %v751 = vld [vmem:[%s2 + $0xa0] sm:$0xff]
  %v752 = vld [vmem:[%s2 + $0xa8] sm:$0xff]
  %v753 = vld [vmem:[%s2 + $0xb0] sm:$0xff]
  %v754 = vld [vmem:[%s2 + $0xb8] sm:$0xff]
  %v755 = vld [vmem:[%s2 + $0x2b8] sm:$0xff]
  %v756 = vld [vmem:[%s2 + $0x2d0] sm:$0xff]
  %v757 = vld [vmem:[%s2 + $0x2e8] sm:$0xff]
  %v758 = vld [vmem:[%s2 + $0x300] sm:$0xff]
  %v759 = vld [vmem:[#allocation2] sm:$0xff]
  %v760 = vld [vmem:[#allocation2 + $0x8] sm:$0xff]
  %v761 = vld [vmem:[#allocation2 + $0x10] sm:$0xff]
  %v762 = vld [vmem:[#allocation2 + $0x18] sm:$0xff]
  %v763 = vld [vmem:[#allocation2 + $0x20] sm:$0xff]
  %v764 = vld [vmem:[#allocation2 + $0x28] sm:$0xff]
  %v765 = vld [vmem:[#allocation2 + $0x30] sm:$0xff]
  %v766 = vld [vmem:[#allocation2 + $0x38] sm:$0xff]
  %v767 = vld [vmem:[#allocation2 + $0x40] sm:$0xff]
  %v768 = vld [vmem:[#allocation2 + $0x48] sm:$0xff]
  %v769 = vld [vmem:[#allocation2 + $0x50] sm:$0xff]
  %v770 = vld [vmem:[#allocation2 + $0x58] sm:$0xff]
  %v771 = vld [vmem:[#allocation2 + $0x60] sm:$0xff]
  %v772 = vld [vmem:[#allocation2 + $0x68] sm:$0xff]
  %v773 = vld [vmem:[#allocation2 + $0x70] sm:$0xff]
  %v774 = vld [vmem:[#allocation2 + $0x78] sm:$0xff]
  %v775 = vld [vmem:[#allocation2 + $0x80] sm:$0xff]
  %v776 = vld [vmem:[#allocation2 + $0x88] sm:$0xff]
  %v777 = vld [vmem:[#allocation2 + $0x90] sm:$0xff]
  %v778 = vld [vmem:[#allocation2 + $0x98] sm:$0xff]
  %v779 = vld [vmem:[#allocation2 + $0xa0] sm:$0xff]
  %v780 = vld [vmem:[#allocation2 + $0xa8] sm:$0xff]
  %v781 = vld [vmem:[#allocation2 + $0xb0] sm:$0xff]
  %v782 = vld [vmem:[#allocation2 + $0xb8] sm:$0xff]
  %v783 = vld [vmem:[#allocation2 + $0xc0] sm:$0xff]
  %v784 = vld [vmem:[#allocation2 + $0xc8] sm:$0xff]
  %v785 = vld [vmem:[#allocation2 + $0xd0] sm:$0xff]
  %v786 = vld [vmem:[#allocation2 + $0xd8] sm:$0xff]
  %v787 = vld [vmem:[#allocation2 + $0xe0] sm:$0xff]
  %v788 = vld [vmem:[#allocation2 + $0xe8] sm:$0xff]
  %v789 = vld [vmem:[#allocation2 + $0xf0] sm:$0xff]
  %v790 = vld [vmem:[#allocation2 + $0xf8] sm:$0xff]
  %v791 = vld [vmem:[#allocation2 + $0x100] sm:$0xff]
  %v792 = vld [vmem:[#allocation2 + $0x108] sm:$0xff]
  %v793 = vld [vmem:[#allocation2 + $0x110] sm:$0xff]
  %v794 = vld [vmem:[#allocation2 + $0x118] sm:$0xff]
  %v795 = vld [vmem:[#allocation2 + $0x120] sm:$0xff]
  %v796 = vld [vmem:[#allocation2 + $0x128] sm:$0xff]
  %v797 = vld [vmem:[#allocation2 + $0x130] sm:$0xff]
  %v798 = vld [vmem:[#allocation2 + $0x138] sm:$0xff]
  %v799 = vld [vmem:[#allocation2 + $0x140] sm:$0xff]
  %v800 = vld [vmem:[#allocation2 + $0x148] sm:$0xff]
  %v801 = vld [vmem:[#allocation2 + $0x150] sm:$0xff]
  %v802 = vld [vmem:[#allocation2 + $0x158] sm:$0xff]
  %v803 = vld [vmem:[#allocation2 + $0x160] sm:$0xff]
  %v804 = vld [vmem:[#allocation2 + $0x168] sm:$0xff]
  %v805 = vld [vmem:[#allocation2 + $0x170] sm:$0xff]
  %v806 = vld [vmem:[#allocation2 + $0x178] sm:$0xff]
  %v807 = vld [vmem:[#allocation2 + $0x180] sm:$0xff]
  %v808 = vld [vmem:[#allocation2 + $0x188] sm:$0xff]
  %v809 = vld [vmem:[#allocation2 + $0x190] sm:$0xff]
  %v810 = vld [vmem:[#allocation2 + $0x198] sm:$0xff]
  %v811 = vld [vmem:[#allocation2 + $0x1a0] sm:$0xff]
  %v812 = vld [vmem:[#allocation2 + $0x1a8] sm:$0xff]
  %v813 = vld [vmem:[#allocation2 + $0x1b0] sm:$0xff]
  %v814 = vld [vmem:[#allocation2 + $0x1b8] sm:$0xff]
  %v815 = vld [vmem:[#allocation2 + $0x1c0] sm:$0xff]
  %v816 = vld [vmem:[#allocation2 + $0x1c8] sm:$0xff]
  %v817 = vld [vmem:[#allocation2 + $0x1d0] sm:$0xff]
  %v818 = vld [vmem:[#allocation2 + $0x1d8] sm:$0xff]
  %v819 = vld [vmem:[#allocation2 + $0x1e0] sm:$0xff]
  %v820 = vld [vmem:[#allocation2 + $0x1e8] sm:$0xff]
  %v821 = vld [vmem:[#allocation2 + $0x1f0] sm:$0xff]
  %v822 = vld [vmem:[#allocation2 + $0x1f8] sm:$0xff]
  %v823 = vld [vmem:[#allocation2 + $0x200] sm:$0xff]
  %v824 = vld [vmem:[#allocation2 + $0x208] sm:$0xff]
  %v825 = vld [vmem:[#allocation2 + $0x210] sm:$0xff]
  %v826 = vld [vmem:[#allocation2 + $0x218] sm:$0xff]
  %v827 = vld [vmem:[#allocation2 + $0x220] sm:$0xff]
  %v828 = vld [vmem:[#allocation2 + $0x228] sm:$0xff]
  %v829 = vld [vmem:[#allocation2 + $0x230] sm:$0xff]
  %v830 = vld [vmem:[#allocation2 + $0x238] sm:$0xff]
  %v831 = vld [vmem:[#allocation2 + $0x240] sm:$0xff]
  %v832 = vld [vmem:[#allocation2 + $0x248] sm:$0xff]
  %v833 = vld [vmem:[#allocation2 + $0x250] sm:$0xff]
  %v834 = vld [vmem:[#allocation2 + $0x258] sm:$0xff]
  %v835 = vld [vmem:[#allocation2 + $0x260] sm:$0xff]
  %v836 = vld [vmem:[#allocation2 + $0x268] sm:$0xff]
  %v837 = vld [vmem:[#allocation2 + $0x270] sm:$0xff]
  %v838 = vld [vmem:[#allocation2 + $0x278] sm:$0xff]
  %v839 = vld [vmem:[#allocation2 + $0x280] sm:$0xff]
  %v840 = vld [vmem:[#allocation2 + $0x288] sm:$0xff]
  %v841 = vld [vmem:[#allocation2 + $0x290] sm:$0xff]
  %v842 = vld [vmem:[#allocation2 + $0x298] sm:$0xff]
  %v843 = vld [vmem:[#allocation2 + $0x2a0] sm:$0xff]
  %v844 = vld [vmem:[#allocation2 + $0x2a8] sm:$0xff]
  %v845 = vld [vmem:[#allocation2 + $0x2b0] sm:$0xff]
  %v846 = vld [vmem:[#allocation2 + $0x2b8] sm:$0xff]
  %v847 = vld [vmem:[#allocation2 + $0x2c0] sm:$0xff]
  %v848 = vld [vmem:[#allocation2 + $0x2c8] sm:$0xff]
  %v849 = vld [vmem:[#allocation2 + $0x2d0] sm:$0xff]
  %v850 = vld [vmem:[#allocation2 + $0x2d8] sm:$0xff]
  %v851 = vld [vmem:[#allocation2 + $0x2e0] sm:$0xff]
  %v852 = vld [vmem:[#allocation2 + $0x2e8] sm:$0xff]
  %v853 = vld [vmem:[#allocation2 + $0x2f0] sm:$0xff]
  %v854 = vld [vmem:[#allocation2 + $0x2f8] sm:$0xff]
  %v855 = vld [vmem:[#allocation2 + $0x300] sm:$0xff]
  %v856 = vld [vmem:[#allocation2 + $0x308] sm:$0xff]
  %v857 = vld [vmem:[#allocation2 + $0x310] sm:$0xff]
  %v858 = vld [vmem:[#allocation2 + $0x318] sm:$0xff]
  %v859 = vld [vmem:[#allocation2 + $0x320] sm:$0xff]
  %v860 = vld [vmem:[#allocation2 + $0x328] sm:$0xff]
  %v861 = vld [vmem:[#allocation2 + $0x330] sm:$0xff]
  %v862 = vld [vmem:[#allocation2 + $0x338] sm:$0xff]
  %v863 = vld [vmem:[#allocation2 + $0x340] sm:$0xff]
  %v864 = vld [vmem:[#allocation2 + $0x348] sm:$0xff]
  %v865 = vld [vmem:[#allocation2 + $0x350] sm:$0xff]
  %v866 = vld [vmem:[#allocation2 + $0x358] sm:$0xff]
  %v867 = vld [vmem:[#allocation2 + $0x360] sm:$0xff]
  %v868 = vld [vmem:[#allocation2 + $0x368] sm:$0xff]
  %v869 = vld [vmem:[#allocation2 + $0x370] sm:$0xff]
  %v870 = vld [vmem:[#allocation2 + $0x378] sm:$0xff]
  %v871 = vld [vmem:[#allocation2 + $0x380] sm:$0xff]
  %v872 = vld [vmem:[#allocation2 + $0x388] sm:$0xff]
  %v873 = vld [vmem:[#allocation2 + $0x390] sm:$0xff]
  %v874 = vld [vmem:[#allocation2 + $0x398] sm:$0xff]
  %v875 = vld [vmem:[#allocation2 + $0x3a0] sm:$0xff]
  %v876 = vld [vmem:[#allocation2 + $0x3a8] sm:$0xff]
  %v877 = vld [vmem:[#allocation2 + $0x3b0] sm:$0xff]
  %v878 = vld [vmem:[#allocation2 + $0x3b8] sm:$0xff]
  %v879 = vld [vmem:[#allocation2 + $0x3c0] sm:$0xff]
  %v880 = vld [vmem:[#allocation2 + $0x3c8] sm:$0xff]
  %v881 = vld [vmem:[#allocation2 + $0x3d0] sm:$0xff]
  %v882 = vld [vmem:[#allocation2 + $0x3d8] sm:$0xff]
  %v883 = vld [vmem:[#allocation2 + $0x3e0] sm:$0xff]
  %v884 = vld [vmem:[#allocation2 + $0x3e8] sm:$0xff]
  %v885 = vld [vmem:[#allocation2 + $0x3f0] sm:$0xff]
  %v886 = vld [vmem:[#allocation2 + $0x3f8] sm:$0xff]
  %v887 = vld [vmem:[#allocation2 + $0x400] sm:$0xff]
  %v888 = vld [vmem:[#allocation2 + $0x408] sm:$0xff]
  %v889 = vld [vmem:[#allocation2 + $0x410] sm:$0xff]
  %v890 = vld [vmem:[#allocation2 + $0x418] sm:$0xff]
  %v891 = vld [vmem:[#allocation2 + $0x420] sm:$0xff]
  %v892 = vld [vmem:[#allocation2 + $0x428] sm:$0xff]
  %v893 = vld [vmem:[#allocation2 + $0x430] sm:$0xff]
  %v894 = vld [vmem:[#allocation2 + $0x438] sm:$0xff]
  %v895 = vld [vmem:[#allocation2 + $0x440] sm:$0xff]
  %v896 = vld [vmem:[#allocation2 + $0x448] sm:$0xff]
  %v897 = vld [vmem:[#allocation2 + $0x450] sm:$0xff]
  %v898 = vld [vmem:[#allocation2 + $0x458] sm:$0xff]
  %v899 = vld [vmem:[#allocation2 + $0x460] sm:$0xff]
  %v900 = vld [vmem:[#allocation2 + $0x468] sm:$0xff]
  %v901 = vld [vmem:[#allocation2 + $0x470] sm:$0xff]
  %v902 = vld [vmem:[#allocation2 + $0x478] sm:$0xff]
  %904 = vset.pattern.permute.xlu0 0
  %905 = vperm.xlu0 %904, %v755
  %v906 = vpop.permute.xlu0 %905
  %909 = vset.pattern.permute.xlu0 0
  %910 = vperm.xlu0 %909, %v756
  %v911 = vpop.permute.xlu0 %910
  %914 = vset.pattern.permute.xlu0 0
  %915 = vperm.xlu0 %914, %v757
  %v916 = vpop.permute.xlu0 %915
  %919 = vset.pattern.permute.xlu0 0
  %920 = vperm.xlu0 %919, %v758
  %v921 = vpop.permute.xlu0 %920
  %vm923 = vcmask 261120
  %v925 = vsel %vm923, %v745, 0
  %v928 = vsel %vm923, %v748, 0
  %v931 = vsel %vm923, %v751, 0
  %v934 = vsel %vm923, %v754, 0
  %936 = vmatpush.msra.mxu0 %v819
  %937 = vmatpush.msra.mxu0 %v815
  %938 = vmatpush.msra.mxu0 %v811
  %939 = vmatpush.msra.mxu0 %v807
  %940 = vmatpush.msra.mxu0 %v803
  %941 = vmatpush.msra.mxu0 %v799
  %942 = vmatpush.msra.mxu0 %v795
  %943 = vmatpush.msra.mxu0 %v791
  %944 = vmatpush.msra.mxu0 %v787
  %945 = vmatpush.msra.mxu0 %v783
  %946 = vmatpush.msra.mxu0 %v779
  %947 = vmatpush.msra.mxu0 %v775
  %948 = vmatpush.msra.mxu0 %v771
  %949 = vmatpush.msra.mxu0 %v767
  %950 = vmatpush.msra.mxu0 %v763
  %951 = vmatpush.msra.mxu0 %v759
  %952 = vmatmul.f32.gmra.mxu0 %v743
  %v953 = vpop.f32.mrf.mxu0
  %v954 = vadd.f32 %v906, %v953
  %955 = vmatmul.f32.gmra.mxu0 %v746
  %v956 = vpop.f32.mrf.mxu0
  %v957 = vadd.f32 %v911, %v956
  %958 = vmatmul.f32.gmra.mxu0 %v749
  %v959 = vpop.f32.mrf.mxu0
  %v960 = vadd.f32 %v916, %v959
  %961 = vmatmul.f32.gmra.mxu0 %v752
  %v962 = vpop.f32.mrf.mxu0
  %v963 = vadd.f32 %v921, %v962
  %964 = vdwg.mxu0
  %965 = vmatpush.msra.mxu0 %v883
  %966 = vmatpush.msra.mxu0 %v879
  %967 = vmatpush.msra.mxu0 %v875
  %968 = vmatpush.msra.mxu0 %v871
  %969 = vmatpush.msra.mxu0 %v867
  %970 = vmatpush.msra.mxu0 %v863
  %971 = vmatpush.msra.mxu0 %v859
  %972 = vmatpush.msra.mxu0 %v855
  %973 = vmatpush.msra.mxu0 %v851
  %974 = vmatpush.msra.mxu0 %v847
  %975 = vmatpush.msra.mxu0 %v843
  %976 = vmatpush.msra.mxu0 %v839
  %977 = vmatpush.msra.mxu0 %v835
  %978 = vmatpush.msra.mxu0 %v831
  %979 = vmatpush.msra.mxu0 %v827
  %980 = vmatpush.msra.mxu0 %v823
  %981 = vmatmul.f32.gmra.mxu0 %v744
  %v982 = vpop.f32.mrf.mxu0
  %v983 = vadd.f32 %v954, %v982
  %984 = vmatmul.f32.gmra.mxu0 %v747
  %v985 = vpop.f32.mrf.mxu0
  %v986 = vadd.f32 %v957, %v985
  %987 = vmatmul.f32.gmra.mxu0 %v750
  %v988 = vpop.f32.mrf.mxu0
  %v989 = vadd.f32 %v960, %v988
  %990 = vmatmul.f32.gmra.mxu0 %v753
  %v991 = vpop.f32.mrf.mxu0
  %v992 = vadd.f32 %v963, %v991
  %993 = vdwg.mxu0
  %994 = vmatpush.msra.mxu0 0.0
  %995 = vmatpush.msra.mxu0 0.0
  %996 = vmatpush.msra.mxu0 0.0
  %997 = vmatpush.msra.mxu0 0.0
  %998 = vmatpush.msra.mxu0 0.0
  %999 = vmatpush.msra.mxu0 0.0
  %1000 = vmatpush.msra.mxu0 0.0
  %1001 = vmatpush.msra.mxu0 0.0
  %1002 = vmatpush.msra.mxu0 0.0
  %1003 = vmatpush.msra.mxu0 0.0
  %1004 = vmatpush.msra.mxu0 0.0
  %1005 = vmatpush.msra.mxu0 0.0
  %1006 = vmatpush.msra.mxu0 %v899
  %1007 = vmatpush.msra.mxu0 %v895
  %1008 = vmatpush.msra.mxu0 %v891
  %1009 = vmatpush.msra.mxu0 %v887
  %1010 = vmatmul.f32.gmra.mxu0 %v925
  %v1011 = vpop.f32.mrf.mxu0
  %v1012 = vadd.f32 %v983, %v1011
  %1013 = vmatmul.f32.gmra.mxu0 %v928
  %v1014 = vpop.f32.mrf.mxu0
  %v1015 = vadd.f32 %v986, %v1014
  %1016 = vmatmul.f32.gmra.mxu0 %v931
  %v1017 = vpop.f32.mrf.mxu0
  %v1018 = vadd.f32 %v989, %v1017
  %1019 = vmatmul.f32.gmra.mxu0 %v934
  %v1020 = vpop.f32.mrf.mxu0
  %v1021 = vadd.f32 %v992, %v1020
  %1022 = vdwg.mxu0
  %1023 = vmatpush.msra.mxu0 %v820
  %1024 = vmatpush.msra.mxu0 %v816
  %1025 = vmatpush.msra.mxu0 %v812
  %1026 = vmatpush.msra.mxu0 %v808
  %1027 = vmatpush.msra.mxu0 %v804
  %1028 = vmatpush.msra.mxu0 %v800
  %1029 = vmatpush.msra.mxu0 %v796
  %1030 = vmatpush.msra.mxu0 %v792
  %1031 = vmatpush.msra.mxu0 %v788
  %1032 = vmatpush.msra.mxu0 %v784
  %1033 = vmatpush.msra.mxu0 %v780
  %1034 = vmatpush.msra.mxu0 %v776
  %1035 = vmatpush.msra.mxu0 %v772
  %1036 = vmatpush.msra.mxu0 %v768
  %1037 = vmatpush.msra.mxu0 %v764
  %1038 = vmatpush.msra.mxu0 %v760
  %1039 = vmatmul.f32.gmra.mxu0 %v743
  %v1040 = vpop.f32.mrf.mxu0
  %v1041 = vadd.f32 %v906, %v1040
  %1042 = vmatmul.f32.gmra.mxu0 %v746
  %v1043 = vpop.f32.mrf.mxu0
  %v1044 = vadd.f32 %v911, %v1043
  %1045 = vmatmul.f32.gmra.mxu0 %v749
  %v1046 = vpop.f32.mrf.mxu0
  %v1047 = vadd.f32 %v916, %v1046
  %1048 = vmatmul.f32.gmra.mxu0 %v752
  %v1049 = vpop.f32.mrf.mxu0
  %v1050 = vadd.f32 %v921, %v1049
  %1051 = vdwg.mxu0
  %1052 = vmatpush.msra.mxu0 %v884
  %1053 = vmatpush.msra.mxu0 %v880
  %1054 = vmatpush.msra.mxu0 %v876
  %1055 = vmatpush.msra.mxu0 %v872
  %1056 = vmatpush.msra.mxu0 %v868
  %1057 = vmatpush.msra.mxu0 %v864
  %1058 = vmatpush.msra.mxu0 %v860
  %1059 = vmatpush.msra.mxu0 %v856
  %1060 = vmatpush.msra.mxu0 %v852
  %1061 = vmatpush.msra.mxu0 %v848
  %1062 = vmatpush.msra.mxu0 %v844
  %1063 = vmatpush.msra.mxu0 %v840
  %1064 = vmatpush.msra.mxu0 %v836
  %1065 = vmatpush.msra.mxu0 %v832
  %1066 = vmatpush.msra.mxu0 %v828
  %1067 = vmatpush.msra.mxu0 %v824
  %1068 = vmatmul.f32.gmra.mxu0 %v744
  %v1069 = vpop.f32.mrf.mxu0
  %v1070 = vadd.f32 %v1041, %v1069
  %1071 = vmatmul.f32.gmra.mxu0 %v747
  %v1072 = vpop.f32.mrf.mxu0
  %v1073 = vadd.f32 %v1044, %v1072
  %1074 = vmatmul.f32.gmra.mxu0 %v750
  %v1075 = vpop.f32.mrf.mxu0
  %v1076 = vadd.f32 %v1047, %v1075
  %1077 = vmatmul.f32.gmra.mxu0 %v753
  %v1078 = vpop.f32.mrf.mxu0
  %v1079 = vadd.f32 %v1050, %v1078
  %1080 = vdwg.mxu0
  %1081 = vmatpush.msra.mxu0 0.0
  %1082 = vmatpush.msra.mxu0 0.0
  %1083 = vmatpush.msra.mxu0 0.0
  %1084 = vmatpush.msra.mxu0 0.0
  %1085 = vmatpush.msra.mxu0 0.0
  %1086 = vmatpush.msra.mxu0 0.0
  %1087 = vmatpush.msra.mxu0 0.0
  %1088 = vmatpush.msra.mxu0 0.0
  %1089 = vmatpush.msra.mxu0 0.0
  %1090 = vmatpush.msra.mxu0 0.0
  %1091 = vmatpush.msra.mxu0 0.0
  %1092 = vmatpush.msra.mxu0 0.0
  %1093 = vmatpush.msra.mxu0 %v900
  %1094 = vmatpush.msra.mxu0 %v896
  %1095 = vmatpush.msra.mxu0 %v892
  %1096 = vmatpush.msra.mxu0 %v888
  %1097 = vmatmul.f32.gmra.mxu0 %v925
  %v1098 = vpop.f32.mrf.mxu0
  %v1099 = vadd.f32 %v1070, %v1098
  %1100 = vmatmul.f32.gmra.mxu0 %v928
  %v1101 = vpop.f32.mrf.mxu0
  %v1102 = vadd.f32 %v1073, %v1101
  %1103 = vmatmul.f32.gmra.mxu0 %v931
  %v1104 = vpop.f32.mrf.mxu0
  %v1105 = vadd.f32 %v1076, %v1104
  %1106 = vmatmul.f32.gmra.mxu0 %v934
  %v1107 = vpop.f32.mrf.mxu0
  %v1108 = vadd.f32 %v1079, %v1107
  %1109 = vdwg.mxu0
  %1110 = vmatpush.msra.mxu0 %v821
  %1111 = vmatpush.msra.mxu0 %v817
  %1112 = vmatpush.msra.mxu0 %v813
  %1113 = vmatpush.msra.mxu0 %v809
  %1114 = vmatpush.msra.mxu0 %v805
  %1115 = vmatpush.msra.mxu0 %v801
  %1116 = vmatpush.msra.mxu0 %v797
  %1117 = vmatpush.msra.mxu0 %v793
  %1118 = vmatpush.msra.mxu0 %v789
  %1119 = vmatpush.msra.mxu0 %v785
  %1120 = vmatpush.msra.mxu0 %v781
  %1121 = vmatpush.msra.mxu0 %v777
  %1122 = vmatpush.msra.mxu0 %v773
  %1123 = vmatpush.msra.mxu0 %v769
  %1124 = vmatpush.msra.mxu0 %v765
  %1125 = vmatpush.msra.mxu0 %v761
  %1126 = vmatmul.f32.gmra.mxu0 %v743
  %v1127 = vpop.f32.mrf.mxu0
  %v1128 = vadd.f32 %v906, %v1127
  %1129 = vmatmul.f32.gmra.mxu0 %v746
  %v1130 = vpop.f32.mrf.mxu0
  %v1131 = vadd.f32 %v911, %v1130
  %1132 = vmatmul.f32.gmra.mxu0 %v749
  %v1133 = vpop.f32.mrf.mxu0
  %v1134 = vadd.f32 %v916, %v1133
  %1135 = vmatmul.f32.gmra.mxu0 %v752
  %v1136 = vpop.f32.mrf.mxu0
  %v1137 = vadd.f32 %v921, %v1136
  %1138 = vdwg.mxu0
  %1139 = vmatpush.msra.mxu0 %v885
  %1140 = vmatpush.msra.mxu0 %v881
  %1141 = vmatpush.msra.mxu0 %v877
  %1142 = vmatpush.msra.mxu0 %v873
  %1143 = vmatpush.msra.mxu0 %v869
  %1144 = vmatpush.msra.mxu0 %v865
  %1145 = vmatpush.msra.mxu0 %v861
  %1146 = vmatpush.msra.mxu0 %v857
  %1147 = vmatpush.msra.mxu0 %v853
  %1148 = vmatpush.msra.mxu0 %v849
  %1149 = vmatpush.msra.mxu0 %v845
  %1150 = vmatpush.msra.mxu0 %v841
  %1151 = vmatpush.msra.mxu0 %v837
  %1152 = vmatpush.msra.mxu0 %v833
  %1153 = vmatpush.msra.mxu0 %v829
  %1154 = vmatpush.msra.mxu0 %v825
  %1155 = vmatmul.f32.gmra.mxu0 %v744
  %v1156 = vpop.f32.mrf.mxu0
  %v1157 = vadd.f32 %v1128, %v1156
  %1158 = vmatmul.f32.gmra.mxu0 %v747
  %v1159 = vpop.f32.mrf.mxu0
  %v1160 = vadd.f32 %v1131, %v1159
  %1161 = vmatmul.f32.gmra.mxu0 %v750
  %v1162 = vpop.f32.mrf.mxu0
  %v1163 = vadd.f32 %v1134, %v1162
  %1164 = vmatmul.f32.gmra.mxu0 %v753
  %v1165 = vpop.f32.mrf.mxu0
  %v1166 = vadd.f32 %v1137, %v1165
  %1167 = vdwg.mxu0
  %1168 = vmatpush.msra.mxu0 0.0
  %1169 = vmatpush.msra.mxu0 0.0
  %1170 = vmatpush.msra.mxu0 0.0
  %1171 = vmatpush.msra.mxu0 0.0
  %1172 = vmatpush.msra.mxu0 0.0
  %1173 = vmatpush.msra.mxu0 0.0
  %1174 = vmatpush.msra.mxu0 0.0
  %1175 = vmatpush.msra.mxu0 0.0
  %1176 = vmatpush.msra.mxu0 0.0
  %1177 = vmatpush.msra.mxu0 0.0
  %1178 = vmatpush.msra.mxu0 0.0
  %1179 = vmatpush.msra.mxu0 0.0
  %1180 = vmatpush.msra.mxu0 %v901
  %1181 = vmatpush.msra.mxu0 %v897
  %1182 = vmatpush.msra.mxu0 %v893
  %1183 = vmatpush.msra.mxu0 %v889
  %1184 = vmatmul.f32.gmra.mxu0 %v925
  %v1185 = vpop.f32.mrf.mxu0
  %v1186 = vadd.f32 %v1157, %v1185
  %1187 = vmatmul.f32.gmra.mxu0 %v928
  %v1188 = vpop.f32.mrf.mxu0
  %v1189 = vadd.f32 %v1160, %v1188
  %1190 = vmatmul.f32.gmra.mxu0 %v931
  %v1191 = vpop.f32.mrf.mxu0
  %v1192 = vadd.f32 %v1163, %v1191
  %1193 = vmatmul.f32.gmra.mxu0 %v934
  %v1194 = vpop.f32.mrf.mxu0
  %v1195 = vadd.f32 %v1166, %v1194
  %1196 = vdwg.mxu0
  %1197 = vmatpush.msra.mxu0 %v822
  %1198 = vmatpush.msra.mxu0 %v818
  %1199 = vmatpush.msra.mxu0 %v814
  %1200 = vmatpush.msra.mxu0 %v810
  %1201 = vmatpush.msra.mxu0 %v806
  %1202 = vmatpush.msra.mxu0 %v802
  %1203 = vmatpush.msra.mxu0 %v798
  %1204 = vmatpush.msra.mxu0 %v794
  %1205 = vmatpush.msra.mxu0 %v790
  %1206 = vmatpush.msra.mxu0 %v786
  %1207 = vmatpush.msra.mxu0 %v782
  %1208 = vmatpush.msra.mxu0 %v778
  %1209 = vmatpush.msra.mxu0 %v774
  %1210 = vmatpush.msra.mxu0 %v770
  %1211 = vmatpush.msra.mxu0 %v766
  %1212 = vmatpush.msra.mxu0 %v762
  %1213 = vmatmul.f32.gmra.mxu0 %v743
  %v1214 = vpop.f32.mrf.mxu0
  %v1215 = vadd.f32 %v906, %v1214
  %1216 = vmatmul.f32.gmra.mxu0 %v746
  %v1217 = vpop.f32.mrf.mxu0
  %v1218 = vadd.f32 %v911, %v1217
  %1219 = vmatmul.f32.gmra.mxu0 %v749
  %v1220 = vpop.f32.mrf.mxu0
  %v1221 = vadd.f32 %v916, %v1220
  %1222 = vmatmul.f32.gmra.mxu0 %v752
  %v1223 = vpop.f32.mrf.mxu0
  %v1224 = vadd.f32 %v921, %v1223
  %1225 = vdwg.mxu0
  %1226 = vmatpush.msra.mxu0 %v886
  %1227 = vmatpush.msra.mxu0 %v882
  %1228 = vmatpush.msra.mxu0 %v878
  %1229 = vmatpush.msra.mxu0 %v874
  %1230 = vmatpush.msra.mxu0 %v870
  %1231 = vmatpush.msra.mxu0 %v866
  %1232 = vmatpush.msra.mxu0 %v862
  %1233 = vmatpush.msra.mxu0 %v858
  %1234 = vmatpush.msra.mxu0 %v854
  %1235 = vmatpush.msra.mxu0 %v850
  %1236 = vmatpush.msra.mxu0 %v846
  %1237 = vmatpush.msra.mxu0 %v842
  %1238 = vmatpush.msra.mxu0 %v838
  %1239 = vmatpush.msra.mxu0 %v834
  %1240 = vmatpush.msra.mxu0 %v830
  %1241 = vmatpush.msra.mxu0 %v826
  %1242 = vmatmul.f32.gmra.mxu0 %v744
  %v1243 = vpop.f32.mrf.mxu0
  %v1244 = vadd.f32 %v1215, %v1243
  %1245 = vmatmul.f32.gmra.mxu0 %v747
  %v1246 = vpop.f32.mrf.mxu0
  %v1247 = vadd.f32 %v1218, %v1246
  %1248 = vmatmul.f32.gmra.mxu0 %v750
  %v1249 = vpop.f32.mrf.mxu0
  %v1250 = vadd.f32 %v1221, %v1249
  %1251 = vmatmul.f32.gmra.mxu0 %v753
  %v1252 = vpop.f32.mrf.mxu0
  %v1253 = vadd.f32 %v1224, %v1252
  %1254 = vdwg.mxu0
  %1255 = vmatpush.msra.mxu0 0.0
  %1256 = vmatpush.msra.mxu0 0.0
  %1257 = vmatpush.msra.mxu0 0.0
  %1258 = vmatpush.msra.mxu0 0.0
  %1259 = vmatpush.msra.mxu0 0.0
  %1260 = vmatpush.msra.mxu0 0.0
  %1261 = vmatpush.msra.mxu0 0.0
  %1262 = vmatpush.msra.mxu0 0.0
  %1263 = vmatpush.msra.mxu0 0.0
  %1264 = vmatpush.msra.mxu0 0.0
  %1265 = vmatpush.msra.mxu0 0.0
  %1266 = vmatpush.msra.mxu0 0.0
  %1267 = vmatpush.msra.mxu0 %v902
  %1268 = vmatpush.msra.mxu0 %v898
  %1269 = vmatpush.msra.mxu0 %v894
  %1270 = vmatpush.msra.mxu0 %v890
  %1271 = vmatmul.f32.gmra.mxu0 %v925
  %v1272 = vpop.f32.mrf.mxu0
  %v1273 = vadd.f32 %v1244, %v1272
  %1274 = vmatmul.f32.gmra.mxu0 %v928
  %v1275 = vpop.f32.mrf.mxu0
  %v1276 = vadd.f32 %v1247, %v1275
  %1277 = vmatmul.f32.gmra.mxu0 %v931
  %v1278 = vpop.f32.mrf.mxu0
  %v1279 = vadd.f32 %v1250, %v1278
  %1280 = vmatmul.f32.gmra.mxu0 %v934
  %v1281 = vpop.f32.mrf.mxu0
  %v1282 = vadd.f32 %v1253, %v1281
  %1283 = vdwg.mxu0
  %v1284 = vmax.f32 %v1012, 0.0
  %v1285 = vmax.f32 %v1099, 0.0
  %v1286 = vmax.f32 %v1186, 0.0
  %v1287 = vmax.f32 %v1273, 0.0
  %v1288 = vmax.f32 %v1015, 0.0
  %v1289 = vmax.f32 %v1102, 0.0
  %v1290 = vmax.f32 %v1189, 0.0
  %v1291 = vmax.f32 %v1276, 0.0
  %v1292 = vmax.f32 %v1018, 0.0
  %v1293 = vmax.f32 %v1105, 0.0
  %v1294 = vmax.f32 %v1192, 0.0
  %v1295 = vmax.f32 %v1279, 0.0
  %v1296 = vmax.f32 %v1021, 0.0
  %v1297 = vmax.f32 %v1108, 0.0
  %v1298 = vmax.f32 %v1195, 0.0
  %v1299 = vmax.f32 %v1282, 0.0
  %v1300 = vadd.f32 %v1284, %v311
  %v1301 = vadd.f32 %v1285, %v312
  %v1302 = vadd.f32 %v1286, %v313
  %v1303 = vadd.f32 %v1287, %v314
  %v1304 = vadd.f32 %v1288, %v315
  %v1305 = vadd.f32 %v1289, %v316
  %v1306 = vadd.f32 %v1290, %v317
  %v1307 = vadd.f32 %v1291, %v318
  %v1308 = vadd.f32 %v1292, %v319
  %v1309 = vadd.f32 %v1293, %v320
  %v1310 = vadd.f32 %v1294, %v321
  %v1311 = vadd.f32 %v1295, %v322
  %v1312 = vadd.f32 %v1296, %v323
  %v1313 = vadd.f32 %v1297, %v324
  %v1314 = vadd.f32 %v1298, %v325
  %v1315 = vadd.f32 %v1299, %v326
  %1316 = vst [vmem:[#allocation3 + $0x80] sm:$0xff] %v1300
  %1317 = vst [vmem:[#allocation3 + $0x88] sm:$0xff] %v1301
  %1318 = vst [vmem:[#allocation3 + $0x90] sm:$0xff] %v1302
  %1319 = vst [vmem:[#allocation3 + $0x98] sm:$0xff] %v1303
  %1320 = vst [vmem:[#allocation3 + $0xa0] sm:$0xff] %v1304
  %1321 = vst [vmem:[#allocation3 + $0xa8] sm:$0xff] %v1305
  %1322 = vst [vmem:[#allocation3 + $0xb0] sm:$0xff] %v1306
  %1323 = vst [vmem:[#allocation3 + $0xb8] sm:$0xff] %v1307
  %1324 = vst [vmem:[#allocation3 + $0xc0] sm:$0xff] %v1308
  %1325 = vst [vmem:[#allocation3 + $0xc8] sm:$0xff] %v1309
  %1326 = vst [vmem:[#allocation3 + $0xd0] sm:$0xff] %v1310
  %1327 = vst [vmem:[#allocation3 + $0xd8] sm:$0xff] %v1311
  %1328 = vst [vmem:[#allocation3 + $0xe0] sm:$0xff] %v1312
  %1329 = vst [vmem:[#allocation3 + $0xe8] sm:$0xff] %v1313
  %1330 = vst [vmem:[#allocation3 + $0xf0] sm:$0xff] %v1314
  %1331 = vst [vmem:[#allocation3 + $0xf8] sm:$0xff] %v1315
  %1332 = vrot.lane.b32.xlu0 %v1300, 4
  %v1333 = vpop.permute.xlu0 %1332
  %1334 = vrot.lane.b32.xlu0 %v1304, 4
  %v1335 = vpop.permute.xlu0 %1334
  %1336 = vrot.lane.b32.xlu0 %v1308, 4
  %v1337 = vpop.permute.xlu0 %1336
  %1338 = vrot.lane.b32.xlu0 %v1312, 4
  %v1339 = vpop.permute.xlu0 %1338
  %1340 = vst [vmem:[#allocation2] sm:$0xff] %v1333
  %1341 = vst [vmem:[#allocation2 + $0x20] sm:$0xff] %v1335
  %1342 = vst [vmem:[#allocation2 + $0x40] sm:$0xff] %v1337
  %1343 = vst [vmem:[#allocation2 + $0x60] sm:$0xff] %v1339
  %1344 = vrot.lane.b32.xlu0 %v1300, 3
  %v1345 = vpop.permute.xlu0 %1344
  %1346 = vrot.lane.b32.xlu0 %v1304, 3
  %v1347 = vpop.permute.xlu0 %1346
  %1348 = vrot.lane.b32.xlu0 %v1308, 3
  %v1349 = vpop.permute.xlu0 %1348
  %1350 = vrot.lane.b32.xlu0 %v1312, 3
  %v1351 = vpop.permute.xlu0 %1350
  %1352 = vst [vmem:[#allocation2 + $0x80] sm:$0xff] %v1345
  %1353 = vst [vmem:[#allocation2 + $0xa0] sm:$0xff] %v1347
  %1354 = vst [vmem:[#allocation2 + $0xc0] sm:$0xff] %v1349
  %1355 = vst [vmem:[#allocation2 + $0xe0] sm:$0xff] %v1351
  %1356 = vrot.lane.b32.xlu0 %v1300, 2
  %v1357 = vpop.permute.xlu0 %1356
  %1358 = vrot.lane.b32.xlu0 %v1304, 2
  %v1359 = vpop.permute.xlu0 %1358
  %1360 = vrot.lane.b32.xlu0 %v1308, 2
  %v1361 = vpop.permute.xlu0 %1360
  %1362 = vrot.lane.b32.xlu0 %v1312, 2
  %v1363 = vpop.permute.xlu0 %1362
  %1364 = vst [vmem:[#allocation2 + $0x100] sm:$0xff] %v1357
  %1365 = vst [vmem:[#allocation2 + $0x120] sm:$0xff] %v1359
  %1366 = vst [vmem:[#allocation2 + $0x140] sm:$0xff] %v1361
  %1367 = vst [vmem:[#allocation2 + $0x160] sm:$0xff] %v1363
  %1368 = vrot.lane.b32.xlu0 %v1300, 1
  %v1369 = vpop.permute.xlu0 %1368
  %1370 = vrot.lane.b32.xlu0 %v1304, 1
  %v1371 = vpop.permute.xlu0 %1370
  %1372 = vrot.lane.b32.xlu0 %v1308, 1
  %v1373 = vpop.permute.xlu0 %1372
  %1374 = vrot.lane.b32.xlu0 %v1312, 1
  %v1375 = vpop.permute.xlu0 %1374
  %1376 = vst [vmem:[#allocation2 + $0x180] sm:$0xff] %v1369
  %1377 = vst [vmem:[#allocation2 + $0x1a0] sm:$0xff] %v1371
  %1378 = vst [vmem:[#allocation2 + $0x1c0] sm:$0xff] %v1373
  %1379 = vst [vmem:[#allocation2 + $0x1e0] sm:$0xff] %v1375
  %1380 = vst [vmem:[#allocation2 + $0x200] sm:$0xff] %v1300
  %1381 = vst [vmem:[#allocation2 + $0x220] sm:$0xff] %v1304
  %1382 = vst [vmem:[#allocation2 + $0x240] sm:$0xff] %v1308
  %1383 = vst [vmem:[#allocation2 + $0x260] sm:$0xff] %v1312
  %1384 = vrot.lane.b32.xlu0 %v1300, 127
  %v1385 = vpop.permute.xlu0 %1384
  %1386 = vrot.lane.b32.xlu0 %v1304, 127
  %v1387 = vpop.permute.xlu0 %1386
  %1388 = vrot.lane.b32.xlu0 %v1308, 127
  %v1389 = vpop.permute.xlu0 %1388
  %1390 = vrot.lane.b32.xlu0 %v1312, 127
  %v1391 = vpop.permute.xlu0 %1390
  %1392 = vst [vmem:[#allocation2 + $0x280] sm:$0xff] %v1385
  %1393 = vst [vmem:[#allocation2 + $0x2a0] sm:$0xff] %v1387
  %1394 = vst [vmem:[#allocation2 + $0x2c0] sm:$0xff] %v1389
  %1395 = vst [vmem:[#allocation2 + $0x2e0] sm:$0xff] %v1391
  %1396 = vrot.lane.b32.xlu0 %v1300, 126
  %v1397 = vpop.permute.xlu0 %1396
  %1398 = vrot.lane.b32.xlu0 %v1304, 126
  %v1399 = vpop.permute.xlu0 %1398
  %1400 = vrot.lane.b32.xlu0 %v1308, 126
  %v1401 = vpop.permute.xlu0 %1400
  %1402 = vrot.lane.b32.xlu0 %v1312, 126
  %v1403 = vpop.permute.xlu0 %1402
  %1404 = vst [vmem:[#allocation2 + $0x300] sm:$0xff] %v1397
  %1405 = vst [vmem:[#allocation2 + $0x320] sm:$0xff] %v1399
  %1406 = vst [vmem:[#allocation2 + $0x340] sm:$0xff] %v1401
  %1407 = vst [vmem:[#allocation2 + $0x360] sm:$0xff] %v1403
  %1408 = vrot.lane.b32.xlu0 %v1300, 125
  %v1409 = vpop.permute.xlu0 %1408
  %1410 = vrot.lane.b32.xlu0 %v1304, 125
  %v1411 = vpop.permute.xlu0 %1410
  %1412 = vrot.lane.b32.xlu0 %v1308, 125
  %v1413 = vpop.permute.xlu0 %1412
  %1414 = vrot.lane.b32.xlu0 %v1312, 125
  %v1415 = vpop.permute.xlu0 %1414
  %1416 = vst [vmem:[#allocation2 + $0x380] sm:$0xff] %v1409
  %1417 = vst [vmem:[#allocation2 + $0x3a0] sm:$0xff] %v1411
  %1418 = vst [vmem:[#allocation2 + $0x3c0] sm:$0xff] %v1413
  %1419 = vst [vmem:[#allocation2 + $0x3e0] sm:$0xff] %v1415
  %1420 = vrot.lane.b32.xlu0 %v1300, 124
  %v1421 = vpop.permute.xlu0 %1420
  %1422 = vrot.lane.b32.xlu0 %v1304, 124
  %v1423 = vpop.permute.xlu0 %1422
  %1424 = vrot.lane.b32.xlu0 %v1308, 124
  %v1425 = vpop.permute.xlu0 %1424
  %1426 = vrot.lane.b32.xlu0 %v1312, 124
  %v1427 = vpop.permute.xlu0 %1426
  %1428 = vst [vmem:[#allocation2 + $0x400] sm:$0xff] %v1421
  %1429 = vst [vmem:[#allocation2 + $0x420] sm:$0xff] %v1423
  %1430 = vst [vmem:[#allocation2 + $0x440] sm:$0xff] %v1425
  %1431 = vst [vmem:[#allocation2 + $0x460] sm:$0xff] %v1427
  %1432 = vrot.lane.b32.xlu0 %v1301, 4
  %v1433 = vpop.permute.xlu0 %1432
  %1434 = vrot.lane.b32.xlu0 %v1305, 4
  %v1435 = vpop.permute.xlu0 %1434
  %1436 = vrot.lane.b32.xlu0 %v1309, 4
  %v1437 = vpop.permute.xlu0 %1436
  %1438 = vrot.lane.b32.xlu0 %v1313, 4
  %v1439 = vpop.permute.xlu0 %1438
  %1440 = vst [vmem:[#allocation2 + $0x8] sm:$0xff] %v1433
  %1441 = vst [vmem:[#allocation2 + $0x28] sm:$0xff] %v1435
  %1442 = vst [vmem:[#allocation2 + $0x48] sm:$0xff] %v1437
  %1443 = vst [vmem:[#allocation2 + $0x68] sm:$0xff] %v1439
  %1444 = vrot.lane.b32.xlu0 %v1301, 3
  %v1445 = vpop.permute.xlu0 %1444
  %1446 = vrot.lane.b32.xlu0 %v1305, 3
  %v1447 = vpop.permute.xlu0 %1446
  %1448 = vrot.lane.b32.xlu0 %v1309, 3
  %v1449 = vpop.permute.xlu0 %1448
  %1450 = vrot.lane.b32.xlu0 %v1313, 3
  %v1451 = vpop.permute.xlu0 %1450
  %1452 = vst [vmem:[#allocation2 + $0x88] sm:$0xff] %v1445
  %1453 = vst [vmem:[#allocation2 + $0xa8] sm:$0xff] %v1447
  %1454 = vst [vmem:[#allocation2 + $0xc8] sm:$0xff] %v1449
  %1455 = vst [vmem:[#allocation2 + $0xe8] sm:$0xff] %v1451
  %1456 = vrot.lane.b32.xlu0 %v1301, 2
  %v1457 = vpop.permute.xlu0 %1456
  %1458 = vrot.lane.b32.xlu0 %v1305, 2
  %v1459 = vpop.permute.xlu0 %1458
  %1460 = vrot.lane.b32.xlu0 %v1309, 2
  %v1461 = vpop.permute.xlu0 %1460
  %1462 = vrot.lane.b32.xlu0 %v1313, 2
  %v1463 = vpop.permute.xlu0 %1462
  %1464 = vst [vmem:[#allocation2 + $0x108] sm:$0xff] %v1457
  %1465 = vst [vmem:[#allocation2 + $0x128] sm:$0xff] %v1459
  %1466 = vst [vmem:[#allocation2 + $0x148] sm:$0xff] %v1461
  %1467 = vst [vmem:[#allocation2 + $0x168] sm:$0xff] %v1463
  %1468 = vrot.lane.b32.xlu0 %v1301, 1
  %v1469 = vpop.permute.xlu0 %1468
  %1470 = vrot.lane.b32.xlu0 %v1305, 1
  %v1471 = vpop.permute.xlu0 %1470
  %1472 = vrot.lane.b32.xlu0 %v1309, 1
  %v1473 = vpop.permute.xlu0 %1472
  %1474 = vrot.lane.b32.xlu0 %v1313, 1
  %v1475 = vpop.permute.xlu0 %1474
  %1476 = vst [vmem:[#allocation2 + $0x188] sm:$0xff] %v1469
  %1477 = vst [vmem:[#allocation2 + $0x1a8] sm:$0xff] %v1471
  %1478 = vst [vmem:[#allocation2 + $0x1c8] sm:$0xff] %v1473
  %1479 = vst [vmem:[#allocation2 + $0x1e8] sm:$0xff] %v1475
  %1480 = vst [vmem:[#allocation2 + $0x208] sm:$0xff] %v1301
  %1481 = vst [vmem:[#allocation2 + $0x228] sm:$0xff] %v1305
  %1482 = vst [vmem:[#allocation2 + $0x248] sm:$0xff] %v1309
  %1483 = vst [vmem:[#allocation2 + $0x268] sm:$0xff] %v1313
  %1484 = vrot.lane.b32.xlu0 %v1301, 127
  %v1485 = vpop.permute.xlu0 %1484
  %1486 = vrot.lane.b32.xlu0 %v1305, 127
  %v1487 = vpop.permute.xlu0 %1486
  %1488 = vrot.lane.b32.xlu0 %v1309, 127
  %v1489 = vpop.permute.xlu0 %1488
  %1490 = vrot.lane.b32.xlu0 %v1313, 127
  %v1491 = vpop.permute.xlu0 %1490
  %1492 = vst [vmem:[#allocation2 + $0x288] sm:$0xff] %v1485
  %1493 = vst [vmem:[#allocation2 + $0x2a8] sm:$0xff] %v1487
  %1494 = vst [vmem:[#allocation2 + $0x2c8] sm:$0xff] %v1489
  %1495 = vst [vmem:[#allocation2 + $0x2e8] sm:$0xff] %v1491
  %1496 = vrot.lane.b32.xlu0 %v1301, 126
  %v1497 = vpop.permute.xlu0 %1496
  %1498 = vrot.lane.b32.xlu0 %v1305, 126
  %v1499 = vpop.permute.xlu0 %1498
  %1500 = vrot.lane.b32.xlu0 %v1309, 126
  %v1501 = vpop.permute.xlu0 %1500
  %1502 = vrot.lane.b32.xlu0 %v1313, 126
  %v1503 = vpop.permute.xlu0 %1502
  %1504 = vst [vmem:[#allocation2 + $0x308] sm:$0xff] %v1497
  %1505 = vst [vmem:[#allocation2 + $0x328] sm:$0xff] %v1499
  %1506 = vst [vmem:[#allocation2 + $0x348] sm:$0xff] %v1501
  %1507 = vst [vmem:[#allocation2 + $0x368] sm:$0xff] %v1503
  %1508 = vrot.lane.b32.xlu0 %v1301, 125
  %v1509 = vpop.permute.xlu0 %1508
  %1510 = vrot.lane.b32.xlu0 %v1305, 125
  %v1511 = vpop.permute.xlu0 %1510
  %1512 = vrot.lane.b32.xlu0 %v1309, 125
  %v1513 = vpop.permute.xlu0 %1512
  %1514 = vrot.lane.b32.xlu0 %v1313, 125
  %v1515 = vpop.permute.xlu0 %1514
  %1516 = vst [vmem:[#allocation2 + $0x388] sm:$0xff] %v1509
  %1517 = vst [vmem:[#allocation2 + $0x3a8] sm:$0xff] %v1511
  %1518 = vst [vmem:[#allocation2 + $0x3c8] sm:$0xff] %v1513
  %1519 = vst [vmem:[#allocation2 + $0x3e8] sm:$0xff] %v1515
  %1520 = vrot.lane.b32.xlu0 %v1301, 124
  %v1521 = vpop.permute.xlu0 %1520
  %1522 = vrot.lane.b32.xlu0 %v1305, 124
  %v1523 = vpop.permute.xlu0 %1522
  %1524 = vrot.lane.b32.xlu0 %v1309, 124
  %v1525 = vpop.permute.xlu0 %1524
  %1526 = vrot.lane.b32.xlu0 %v1313, 124
  %v1527 = vpop.permute.xlu0 %1526
  %1528 = vst [vmem:[#allocation2 + $0x408] sm:$0xff] %v1521
  %1529 = vst [vmem:[#allocation2 + $0x428] sm:$0xff] %v1523
  %1530 = vst [vmem:[#allocation2 + $0x448] sm:$0xff] %v1525
  %1531 = vst [vmem:[#allocation2 + $0x468] sm:$0xff] %v1527
  %1532 = vrot.lane.b32.xlu0 %v1302, 4
  %v1533 = vpop.permute.xlu0 %1532
  %1534 = vrot.lane.b32.xlu0 %v1306, 4
  %v1535 = vpop.permute.xlu0 %1534
  %1536 = vrot.lane.b32.xlu0 %v1310, 4
  %v1537 = vpop.permute.xlu0 %1536
  %1538 = vrot.lane.b32.xlu0 %v1314, 4
  %v1539 = vpop.permute.xlu0 %1538
  %1540 = vst [vmem:[#allocation2 + $0x10] sm:$0xff] %v1533
  %1541 = vst [vmem:[#allocation2 + $0x30] sm:$0xff] %v1535
  %1542 = vst [vmem:[#allocation2 + $0x50] sm:$0xff] %v1537
  %1543 = vst [vmem:[#allocation2 + $0x70] sm:$0xff] %v1539
  %1544 = vrot.lane.b32.xlu0 %v1302, 3
  %v1545 = vpop.permute.xlu0 %1544
  %1546 = vrot.lane.b32.xlu0 %v1306, 3
  %v1547 = vpop.permute.xlu0 %1546
  %1548 = vrot.lane.b32.xlu0 %v1310, 3
  %v1549 = vpop.permute.xlu0 %1548
  %1550 = vrot.lane.b32.xlu0 %v1314, 3
  %v1551 = vpop.permute.xlu0 %1550
  %1552 = vst [vmem:[#allocation2 + $0x90] sm:$0xff] %v1545
  %1553 = vst [vmem:[#allocation2 + $0xb0] sm:$0xff] %v1547
  %1554 = vst [vmem:[#allocation2 + $0xd0] sm:$0xff] %v1549
  %1555 = vst [vmem:[#allocation2 + $0xf0] sm:$0xff] %v1551
  %1556 = vrot.lane.b32.xlu0 %v1302, 2
  %v1557 = vpop.permute.xlu0 %1556
  %1558 = vrot.lane.b32.xlu0 %v1306, 2
  %v1559 = vpop.permute.xlu0 %1558
  %1560 = vrot.lane.b32.xlu0 %v1310, 2
  %v1561 = vpop.permute.xlu0 %1560
  %1562 = vrot.lane.b32.xlu0 %v1314, 2
  %v1563 = vpop.permute.xlu0 %1562
  %1564 = vst [vmem:[#allocation2 + $0x110] sm:$0xff] %v1557
  %1565 = vst [vmem:[#allocation2 + $0x130] sm:$0xff] %v1559
  %1566 = vst [vmem:[#allocation2 + $0x150] sm:$0xff] %v1561
  %1567 = vst [vmem:[#allocation2 + $0x170] sm:$0xff] %v1563
  %1568 = vrot.lane.b32.xlu0 %v1302, 1
  %v1569 = vpop.permute.xlu0 %1568
  %1570 = vrot.lane.b32.xlu0 %v1306, 1
  %v1571 = vpop.permute.xlu0 %1570
  %1572 = vrot.lane.b32.xlu0 %v1310, 1
  %v1573 = vpop.permute.xlu0 %1572
  %1574 = vrot.lane.b32.xlu0 %v1314, 1
  %v1575 = vpop.permute.xlu0 %1574
  %1576 = vst [vmem:[#allocation2 + $0x190] sm:$0xff] %v1569
  %1577 = vst [vmem:[#allocation2 + $0x1b0] sm:$0xff] %v1571
  %1578 = vst [vmem:[#allocation2 + $0x1d0] sm:$0xff] %v1573
  %1579 = vst [vmem:[#allocation2 + $0x1f0] sm:$0xff] %v1575
  %1580 = vst [vmem:[#allocation2 + $0x210] sm:$0xff] %v1302
  %1581 = vst [vmem:[#allocation2 + $0x230] sm:$0xff] %v1306
  %1582 = vst [vmem:[#allocation2 + $0x250] sm:$0xff] %v1310
  %1583 = vst [vmem:[#allocation2 + $0x270] sm:$0xff] %v1314
  %1584 = vrot.lane.b32.xlu0 %v1302, 127
  %v1585 = vpop.permute.xlu0 %1584
  %1586 = vrot.lane.b32.xlu0 %v1306, 127
  %v1587 = vpop.permute.xlu0 %1586
  %1588 = vrot.lane.b32.xlu0 %v1310, 127
  %v1589 = vpop.permute.xlu0 %1588
  %1590 = vrot.lane.b32.xlu0 %v1314, 127
  %v1591 = vpop.permute.xlu0 %1590
  %1592 = vst [vmem:[#allocation2 + $0x290] sm:$0xff] %v1585
  %1593 = vst [vmem:[#allocation2 + $0x2b0] sm:$0xff] %v1587
  %1594 = vst [vmem:[#allocation2 + $0x2d0] sm:$0xff] %v1589
  %1595 = vst [vmem:[#allocation2 + $0x2f0] sm:$0xff] %v1591
  %1596 = vrot.lane.b32.xlu0 %v1302, 126
  %v1597 = vpop.permute.xlu0 %1596
  %1598 = vrot.lane.b32.xlu0 %v1306, 126
  %v1599 = vpop.permute.xlu0 %1598
  %1600 = vrot.lane.b32.xlu0 %v1310, 126
  %v1601 = vpop.permute.xlu0 %1600
  %1602 = vrot.lane.b32.xlu0 %v1314, 126
  %v1603 = vpop.permute.xlu0 %1602
  %1604 = vst [vmem:[#allocation2 + $0x310] sm:$0xff] %v1597
  %1605 = vst [vmem:[#allocation2 + $0x330] sm:$0xff] %v1599
  %1606 = vst [vmem:[#allocation2 + $0x350] sm:$0xff] %v1601
  %1607 = vst [vmem:[#allocation2 + $0x370] sm:$0xff] %v1603
  %1608 = vrot.lane.b32.xlu0 %v1302, 125
  %v1609 = vpop.permute.xlu0 %1608
  %1610 = vrot.lane.b32.xlu0 %v1306, 125
  %v1611 = vpop.permute.xlu0 %1610
  %1612 = vrot.lane.b32.xlu0 %v1310, 125
  %v1613 = vpop.permute.xlu0 %1612
  %1614 = vrot.lane.b32.xlu0 %v1314, 125
  %v1615 = vpop.permute.xlu0 %1614
  %1616 = vst [vmem:[#allocation2 + $0x390] sm:$0xff] %v1609
  %1617 = vst [vmem:[#allocation2 + $0x3b0] sm:$0xff] %v1611
  %1618 = vst [vmem:[#allocation2 + $0x3d0] sm:$0xff] %v1613
  %1619 = vst [vmem:[#allocation2 + $0x3f0] sm:$0xff] %v1615
  %1620 = vrot.lane.b32.xlu0 %v1302, 124
  %v1621 = vpop.permute.xlu0 %1620
  %1622 = vrot.lane.b32.xlu0 %v1306, 124
  %v1623 = vpop.permute.xlu0 %1622
  %1624 = vrot.lane.b32.xlu0 %v1310, 124
  %v1625 = vpop.permute.xlu0 %1624
  %1626 = vrot.lane.b32.xlu0 %v1314, 124
  %v1627 = vpop.permute.xlu0 %1626
  %1628 = vst [vmem:[#allocation2 + $0x410] sm:$0xff] %v1621
  %1629 = vst [vmem:[#allocation2 + $0x430] sm:$0xff] %v1623
  %1630 = vst [vmem:[#allocation2 + $0x450] sm:$0xff] %v1625
  %1631 = vst [vmem:[#allocation2 + $0x470] sm:$0xff] %v1627
  %1632 = vrot.lane.b32.xlu0 %v1303, 4
  %v1633 = vpop.permute.xlu0 %1632
  %1634 = vrot.lane.b32.xlu0 %v1307, 4
  %v1635 = vpop.permute.xlu0 %1634
  %1636 = vrot.lane.b32.xlu0 %v1311, 4
  %v1637 = vpop.permute.xlu0 %1636
  %1638 = vrot.lane.b32.xlu0 %v1315, 4
  %v1639 = vpop.permute.xlu0 %1638
  %1640 = vst [vmem:[#allocation2 + $0x18] sm:$0xff] %v1633
  %1641 = vst [vmem:[#allocation2 + $0x38] sm:$0xff] %v1635
  %1642 = vst [vmem:[#allocation2 + $0x58] sm:$0xff] %v1637
  %1643 = vst [vmem:[#allocation2 + $0x78] sm:$0xff] %v1639
  %1644 = vrot.lane.b32.xlu0 %v1303, 3
  %v1645 = vpop.permute.xlu0 %1644
  %1646 = vrot.lane.b32.xlu0 %v1307, 3
  %v1647 = vpop.permute.xlu0 %1646
  %1648 = vrot.lane.b32.xlu0 %v1311, 3
  %v1649 = vpop.permute.xlu0 %1648
  %1650 = vrot.lane.b32.xlu0 %v1315, 3
  %v1651 = vpop.permute.xlu0 %1650
  %1652 = vst [vmem:[#allocation2 + $0x98] sm:$0xff] %v1645
  %1653 = vst [vmem:[#allocation2 + $0xb8] sm:$0xff] %v1647
  %1654 = vst [vmem:[#allocation2 + $0xd8] sm:$0xff] %v1649
  %1655 = vst [vmem:[#allocation2 + $0xf8] sm:$0xff] %v1651
  %1656 = vrot.lane.b32.xlu0 %v1303, 2
  %v1657 = vpop.permute.xlu0 %1656
  %1658 = vrot.lane.b32.xlu0 %v1307, 2
  %v1659 = vpop.permute.xlu0 %1658
  %1660 = vrot.lane.b32.xlu0 %v1311, 2
  %v1661 = vpop.permute.xlu0 %1660
  %1662 = vrot.lane.b32.xlu0 %v1315, 2
  %v1663 = vpop.permute.xlu0 %1662
  %1664 = vst [vmem:[#allocation2 + $0x118] sm:$0xff] %v1657
  %1665 = vst [vmem:[#allocation2 + $0x138] sm:$0xff] %v1659
  %1666 = vst [vmem:[#allocation2 + $0x158] sm:$0xff] %v1661
  %1667 = vst [vmem:[#allocation2 + $0x178] sm:$0xff] %v1663
  %1668 = vrot.lane.b32.xlu0 %v1303, 1
  %v1669 = vpop.permute.xlu0 %1668
  %1670 = vrot.lane.b32.xlu0 %v1307, 1
  %v1671 = vpop.permute.xlu0 %1670
  %1672 = vrot.lane.b32.xlu0 %v1311, 1
  %v1673 = vpop.permute.xlu0 %1672
  %1674 = vrot.lane.b32.xlu0 %v1315, 1
  %v1675 = vpop.permute.xlu0 %1674
  %1676 = vst [vmem:[#allocation2 + $0x198] sm:$0xff] %v1669
  %1677 = vst [vmem:[#allocation2 + $0x1b8] sm:$0xff] %v1671
  %1678 = vst [vmem:[#allocation2 + $0x1d8] sm:$0xff] %v1673
  %1679 = vst [vmem:[#allocation2 + $0x1f8] sm:$0xff] %v1675
  %1680 = vst [vmem:[#allocation2 + $0x218] sm:$0xff] %v1303
  %1681 = vst [vmem:[#allocation2 + $0x238] sm:$0xff] %v1307
  %1682 = vst [vmem:[#allocation2 + $0x258] sm:$0xff] %v1311
  %1683 = vst [vmem:[#allocation2 + $0x278] sm:$0xff] %v1315
  %1684 = vrot.lane.b32.xlu0 %v1303, 127
  %v1685 = vpop.permute.xlu0 %1684
  %1686 = vrot.lane.b32.xlu0 %v1307, 127
  %v1687 = vpop.permute.xlu0 %1686
  %1688 = vrot.lane.b32.xlu0 %v1311, 127
  %v1689 = vpop.permute.xlu0 %1688
  %1690 = vrot.lane.b32.xlu0 %v1315, 127
  %v1691 = vpop.permute.xlu0 %1690
  %1692 = vst [vmem:[#allocation2 + $0x298] sm:$0xff] %v1685
  %1693 = vst [vmem:[#allocation2 + $0x2b8] sm:$0xff] %v1687
  %1694 = vst [vmem:[#allocation2 + $0x2d8] sm:$0xff] %v1689
  %1695 = vst [vmem:[#allocation2 + $0x2f8] sm:$0xff] %v1691
  %1696 = vrot.lane.b32.xlu0 %v1303, 126
  %v1697 = vpop.permute.xlu0 %1696
  %1698 = vrot.lane.b32.xlu0 %v1307, 126
  %v1699 = vpop.permute.xlu0 %1698
  %1700 = vrot.lane.b32.xlu0 %v1311, 126
  %v1701 = vpop.permute.xlu0 %1700
  %1702 = vrot.lane.b32.xlu0 %v1315, 126
  %v1703 = vpop.permute.xlu0 %1702
  %1704 = vst [vmem:[#allocation2 + $0x318] sm:$0xff] %v1697
  %1705 = vst [vmem:[#allocation2 + $0x338] sm:$0xff] %v1699
  %1706 = vst [vmem:[#allocation2 + $0x358] sm:$0xff] %v1701
  %1707 = vst [vmem:[#allocation2 + $0x378] sm:$0xff] %v1703
  %1708 = vrot.lane.b32.xlu0 %v1303, 125
  %v1709 = vpop.permute.xlu0 %1708
  %1710 = vrot.lane.b32.xlu0 %v1307, 125
  %v1711 = vpop.permute.xlu0 %1710
  %1712 = vrot.lane.b32.xlu0 %v1311, 125
  %v1713 = vpop.permute.xlu0 %1712
  %1714 = vrot.lane.b32.xlu0 %v1315, 125
  %v1715 = vpop.permute.xlu0 %1714
  %1716 = vst [vmem:[#allocation2 + $0x398] sm:$0xff] %v1709
  %1717 = vst [vmem:[#allocation2 + $0x3b8] sm:$0xff] %v1711
  %1718 = vst [vmem:[#allocation2 + $0x3d8] sm:$0xff] %v1713
  %1719 = vst [vmem:[#allocation2 + $0x3f8] sm:$0xff] %v1715
  %1720 = vrot.lane.b32.xlu0 %v1303, 124
  %v1721 = vpop.permute.xlu0 %1720
  %1722 = vrot.lane.b32.xlu0 %v1307, 124
  %v1723 = vpop.permute.xlu0 %1722
  %1724 = vrot.lane.b32.xlu0 %v1311, 124
  %v1725 = vpop.permute.xlu0 %1724
  %1726 = vrot.lane.b32.xlu0 %v1315, 124
  %v1727 = vpop.permute.xlu0 %1726
  %1728 = vst [vmem:[#allocation2 + $0x418] sm:$0xff] %v1721
  %1729 = vst [vmem:[#allocation2 + $0x438] sm:$0xff] %v1723
  %1730 = vst [vmem:[#allocation2 + $0x458] sm:$0xff] %v1725
  %1731 = vst [vmem:[#allocation2 + $0x478] sm:$0xff] %v1727
  %v1732 = vld [vmem:[%s2 + $0xc0] sm:$0xff]
  %v1733 = vld [vmem:[%s2 + $0xc8] sm:$0xff]
  %v1734 = vld [vmem:[%s2 + $0xd0] sm:$0xff]
  %v1735 = vld [vmem:[%s2 + $0xd8] sm:$0xff]
  %v1736 = vld [vmem:[%s2 + $0xe0] sm:$0xff]
  %v1737 = vld [vmem:[%s2 + $0xe8] sm:$0xff]
  %v1738 = vld [vmem:[%s2 + $0xf0] sm:$0xff]
  %v1739 = vld [vmem:[%s2 + $0xf8] sm:$0xff]
  %v1740 = vld [vmem:[%s2 + $0x100] sm:$0xff]
  %v1741 = vld [vmem:[%s2 + $0x108] sm:$0xff]
  %v1742 = vld [vmem:[%s2 + $0x110] sm:$0xff]
  %v1743 = vld [vmem:[%s2 + $0x118] sm:$0xff]
  %v1744 = vld [vmem:[%s2 + $0x318] sm:$0xff]
  %v1745 = vld [vmem:[%s2 + $0x330] sm:$0xff]
  %v1746 = vld [vmem:[%s2 + $0x348] sm:$0xff]
  %v1747 = vld [vmem:[%s2 + $0x360] sm:$0xff]
  %v1748 = vld [vmem:[#allocation2] sm:$0xff]
  %v1749 = vld [vmem:[#allocation2 + $0x8] sm:$0xff]
  %v1750 = vld [vmem:[#allocation2 + $0x10] sm:$0xff]
  %v1751 = vld [vmem:[#allocation2 + $0x18] sm:$0xff]
  %v1752 = vld [vmem:[#allocation2 + $0x20] sm:$0xff]
  %v1753 = vld [vmem:[#allocation2 + $0x28] sm:$0xff]
  %v1754 = vld [vmem:[#allocation2 + $0x30] sm:$0xff]
  %v1755 = vld [vmem:[#allocation2 + $0x38] sm:$0xff]
  %v1756 = vld [vmem:[#allocation2 + $0x40] sm:$0xff]
  %v1757 = vld [vmem:[#allocation2 + $0x48] sm:$0xff]
  %v1758 = vld [vmem:[#allocation2 + $0x50] sm:$0xff]
  %v1759 = vld [vmem:[#allocation2 + $0x58] sm:$0xff]
  %v1760 = vld [vmem:[#allocation2 + $0x60] sm:$0xff]
  %v1761 = vld [vmem:[#allocation2 + $0x68] sm:$0xff]
  %v1762 = vld [vmem:[#allocation2 + $0x70] sm:$0xff]
  %v1763 = vld [vmem:[#allocation2 + $0x78] sm:$0xff]
  %v1764 = vld [vmem:[#allocation2 + $0x80] sm:$0xff]
  %v1765 = vld [vmem:[#allocation2 + $0x88] sm:$0xff]
  %v1766 = vld [vmem:[#allocation2 + $0x90] sm:$0xff]
  %v1767 = vld [vmem:[#allocation2 + $0x98] sm:$0xff]
  %v1768 = vld [vmem:[#allocation2 + $0xa0] sm:$0xff]
  %v1769 = vld [vmem:[#allocation2 + $0xa8] sm:$0xff]
  %v1770 = vld [vmem:[#allocation2 + $0xb0] sm:$0xff]
  %v1771 = vld [vmem:[#allocation2 + $0xb8] sm:$0xff]
  %v1772 = vld [vmem:[#allocation2 + $0xc0] sm:$0xff]
  %v1773 = vld [vmem:[#allocation2 + $0xc8] sm:$0xff]
  %v1774 = vld [vmem:[#allocation2 + $0xd0] sm:$0xff]
  %v1775 = vld [vmem:[#allocation2 + $0xd8] sm:$0xff]
  %v1776 = vld [vmem:[#allocation2 + $0xe0] sm:$0xff]
  %v1777 = vld [vmem:[#allocation2 + $0xe8] sm:$0xff]
  %v1778 = vld [vmem:[#allocation2 + $0xf0] sm:$0xff]
  %v1779 = vld [vmem:[#allocation2 + $0xf8] sm:$0xff]
  %v1780 = vld [vmem:[#allocation2 + $0x100] sm:$0xff]
  %v1781 = vld [vmem:[#allocation2 + $0x108] sm:$0xff]
  %v1782 = vld [vmem:[#allocation2 + $0x110] sm:$0xff]
  %v1783 = vld [vmem:[#allocation2 + $0x118] sm:$0xff]
  %v1784 = vld [vmem:[#allocation2 + $0x120] sm:$0xff]
  %v1785 = vld [vmem:[#allocation2 + $0x128] sm:$0xff]
  %v1786 = vld [vmem:[#allocation2 + $0x130] sm:$0xff]
  %v1787 = vld [vmem:[#allocation2 + $0x138] sm:$0xff]
  %v1788 = vld [vmem:[#allocation2 + $0x140] sm:$0xff]
  %v1789 = vld [vmem:[#allocation2 + $0x148] sm:$0xff]
  %v1790 = vld [vmem:[#allocation2 + $0x150] sm:$0xff]
  %v1791 = vld [vmem:[#allocation2 + $0x158] sm:$0xff]
  %v1792 = vld [vmem:[#allocation2 + $0x160] sm:$0xff]
  %v1793 = vld [vmem:[#allocation2 + $0x168] sm:$0xff]
  %v1794 = vld [vmem:[#allocation2 + $0x170] sm:$0xff]
  %v1795 = vld [vmem:[#allocation2 + $0x178] sm:$0xff]
  %v1796 = vld [vmem:[#allocation2 + $0x180] sm:$0xff]
  %v1797 = vld [vmem:[#allocation2 + $0x188] sm:$0xff]
  %v1798 = vld [vmem:[#allocation2 + $0x190] sm:$0xff]
  %v1799 = vld [vmem:[#allocation2 + $0x198] sm:$0xff]
  %v1800 = vld [vmem:[#allocation2 + $0x1a0] sm:$0xff]
  %v1801 = vld [vmem:[#allocation2 + $0x1a8] sm:$0xff]
  %v1802 = vld [vmem:[#allocation2 + $0x1b0] sm:$0xff]
  %v1803 = vld [vmem:[#allocation2 + $0x1b8] sm:$0xff]
  %v1804 = vld [vmem:[#allocation2 + $0x1c0] sm:$0xff]
  %v1805 = vld [vmem:[#allocation2 + $0x1c8] sm:$0xff]
  %v1806 = vld [vmem:[#allocation2 + $0x1d0] sm:$0xff]
  %v1807 = vld [vmem:[#allocation2 + $0x1d8] sm:$0xff]
  %v1808 = vld [vmem:[#allocation2 + $0x1e0] sm:$0xff]
  %v1809 = vld [vmem:[#allocation2 + $0x1e8] sm:$0xff]
  %v1810 = vld [vmem:[#allocation2 + $0x1f0] sm:$0xff]
  %v1811 = vld [vmem:[#allocation2 + $0x1f8] sm:$0xff]
  %v1812 = vld [vmem:[#allocation2 + $0x200] sm:$0xff]
  %v1813 = vld [vmem:[#allocation2 + $0x208] sm:$0xff]
  %v1814 = vld [vmem:[#allocation2 + $0x210] sm:$0xff]
  %v1815 = vld [vmem:[#allocation2 + $0x218] sm:$0xff]
  %v1816 = vld [vmem:[#allocation2 + $0x220] sm:$0xff]
  %v1817 = vld [vmem:[#allocation2 + $0x228] sm:$0xff]
  %v1818 = vld [vmem:[#allocation2 + $0x230] sm:$0xff]
  %v1819 = vld [vmem:[#allocation2 + $0x238] sm:$0xff]
  %v1820 = vld [vmem:[#allocation2 + $0x240] sm:$0xff]
  %v1821 = vld [vmem:[#allocation2 + $0x248] sm:$0xff]
  %v1822 = vld [vmem:[#allocation2 + $0x250] sm:$0xff]
  %v1823 = vld [vmem:[#allocation2 + $0x258] sm:$0xff]
  %v1824 = vld [vmem:[#allocation2 + $0x260] sm:$0xff]
  %v1825 = vld [vmem:[#allocation2 + $0x268] sm:$0xff]
  %v1826 = vld [vmem:[#allocation2 + $0x270] sm:$0xff]
  %v1827 = vld [vmem:[#allocation2 + $0x278] sm:$0xff]
  %v1828 = vld [vmem:[#allocation2 + $0x280] sm:$0xff]
  %v1829 = vld [vmem:[#allocation2 + $0x288] sm:$0xff]
  %v1830 = vld [vmem:[#allocation2 + $0x290] sm:$0xff]
  %v1831 = vld [vmem:[#allocation2 + $0x298] sm:$0xff]
  %v1832 = vld [vmem:[#allocation2 + $0x2a0] sm:$0xff]
  %v1833 = vld [vmem:[#allocation2 + $0x2a8] sm:$0xff]
  %v1834 = vld [vmem:[#allocation2 + $0x2b0] sm:$0xff]
  %v1835 = vld [vmem:[#allocation2 + $0x2b8] sm:$0xff]
  %v1836 = vld [vmem:[#allocation2 + $0x2c0] sm:$0xff]
  %v1837 = vld [vmem:[#allocation2 + $0x2c8] sm:$0xff]
  %v1838 = vld [vmem:[#allocation2 + $0x2d0] sm:$0xff]
  %v1839 = vld [vmem:[#allocation2 + $0x2d8] sm:$0xff]
  %v1840 = vld [vmem:[#allocation2 + $0x2e0] sm:$0xff]
  %v1841 = vld [vmem:[#allocation2 + $0x2e8] sm:$0xff]
  %v1842 = vld [vmem:[#allocation2 + $0x2f0] sm:$0xff]
  %v1843 = vld [vmem:[#allocation2 + $0x2f8] sm:$0xff]
  %v1844 = vld [vmem:[#allocation2 + $0x300] sm:$0xff]
  %v1845 = vld [vmem:[#allocation2 + $0x308] sm:$0xff]
  %v1846 = vld [vmem:[#allocation2 + $0x310] sm:$0xff]
  %v1847 = vld [vmem:[#allocation2 + $0x318] sm:$0xff]
  %v1848 = vld [vmem:[#allocation2 + $0x320] sm:$0xff]
  %v1849 = vld [vmem:[#allocation2 + $0x328] sm:$0xff]
  %v1850 = vld [vmem:[#allocation2 + $0x330] sm:$0xff]
  %v1851 = vld [vmem:[#allocation2 + $0x338] sm:$0xff]
  %v1852 = vld [vmem:[#allocation2 + $0x340] sm:$0xff]
  %v1853 = vld [vmem:[#allocation2 + $0x348] sm:$0xff]
  %v1854 = vld [vmem:[#allocation2 + $0x350] sm:$0xff]
  %v1855 = vld [vmem:[#allocation2 + $0x358] sm:$0xff]
  %v1856 = vld [vmem:[#allocation2 + $0x360] sm:$0xff]
  %v1857 = vld [vmem:[#allocation2 + $0x368] sm:$0xff]
  %v1858 = vld [vmem:[#allocation2 + $0x370] sm:$0xff]
  %v1859 = vld [vmem:[#allocation2 + $0x378] sm:$0xff]
  %v1860 = vld [vmem:[#allocation2 + $0x380] sm:$0xff]
  %v1861 = vld [vmem:[#allocation2 + $0x388] sm:$0xff]
  %v1862 = vld [vmem:[#allocation2 + $0x390] sm:$0xff]
  %v1863 = vld [vmem:[#allocation2 + $0x398] sm:$0xff]
  %v1864 = vld [vmem:[#allocation2 + $0x3a0] sm:$0xff]
  %v1865 = vld [vmem:[#allocation2 + $0x3a8] sm:$0xff]
  %v1866 = vld [vmem:[#allocation2 + $0x3b0] sm:$0xff]
  %v1867 = vld [vmem:[#allocation2 + $0x3b8] sm:$0xff]
  %v1868 = vld [vmem:[#allocation2 + $0x3c0] sm:$0xff]
  %v1869 = vld [vmem:[#allocation2 + $0x3c8] sm:$0xff]
  %v1870 = vld [vmem:[#allocation2 + $0x3d0] sm:$0xff]
  %v1871 = vld [vmem:[#allocation2 + $0x3d8] sm:$0xff]
  %v1872 = vld [vmem:[#allocation2 + $0x3e0] sm:$0xff]
  %v1873 = vld [vmem:[#allocation2 + $0x3e8] sm:$0xff]
  %v1874 = vld [vmem:[#allocation2 + $0x3f0] sm:$0xff]
  %v1875 = vld [vmem:[#allocation2 + $0x3f8] sm:$0xff]
  %v1876 = vld [vmem:[#allocation2 + $0x400] sm:$0xff]
  %v1877 = vld [vmem:[#allocation2 + $0x408] sm:$0xff]
  %v1878 = vld [vmem:[#allocation2 + $0x410] sm:$0xff]
  %v1879 = vld [vmem:[#allocation2 + $0x418] sm:$0xff]
  %v1880 = vld [vmem:[#allocation2 + $0x420] sm:$0xff]
  %v1881 = vld [vmem:[#allocation2 + $0x428] sm:$0xff]
  %v1882 = vld [vmem:[#allocation2 + $0x430] sm:$0xff]
  %v1883 = vld [vmem:[#allocation2 + $0x438] sm:$0xff]
  %v1884 = vld [vmem:[#allocation2 + $0x440] sm:$0xff]
  %v1885 = vld [vmem:[#allocation2 + $0x448] sm:$0xff]
  %v1886 = vld [vmem:[#allocation2 + $0x450] sm:$0xff]
  %v1887 = vld [vmem:[#allocation2 + $0x458] sm:$0xff]
  %v1888 = vld [vmem:[#allocation2 + $0x460] sm:$0xff]
  %v1889 = vld [vmem:[#allocation2 + $0x468] sm:$0xff]
  %v1890 = vld [vmem:[#allocation2 + $0x470] sm:$0xff]
  %v1891 = vld [vmem:[#allocation2 + $0x478] sm:$0xff]
  %1893 = vset.pattern.permute.xlu0 0
  %1894 = vperm.xlu0 %1893, %v1744
  %v1895 = vpop.permute.xlu0 %1894
  %1898 = vset.pattern.permute.xlu0 0
  %1899 = vperm.xlu0 %1898, %v1745
  %v1900 = vpop.permute.xlu0 %1899
  %1903 = vset.pattern.permute.xlu0 0
  %1904 = vperm.xlu0 %1903, %v1746
  %v1905 = vpop.permute.xlu0 %1904
  %1908 = vset.pattern.permute.xlu0 0
  %1909 = vperm.xlu0 %1908, %v1747
  %v1910 = vpop.permute.xlu0 %1909
  %v1913 = vsel %vm923, %v1734, 0
  %v1916 = vsel %vm923, %v1737, 0
  %v1919 = vsel %vm923, %v1740, 0
  %v1922 = vsel %vm923, %v1743, 0
  %1924 = vmatpush.msra.mxu0 %v1808
  %1925 = vmatpush.msra.mxu0 %v1804
  %1926 = vmatpush.msra.mxu0 %v1800
  %1927 = vmatpush.msra.mxu0 %v1796
  %1928 = vmatpush.msra.mxu0 %v1792
  %1929 = vmatpush.msra.mxu0 %v1788
  %1930 = vmatpush.msra.mxu0 %v1784
  %1931 = vmatpush.msra.mxu0 %v1780
  %1932 = vmatpush.msra.mxu0 %v1776
  %1933 = vmatpush.msra.mxu0 %v1772
  %1934 = vmatpush.msra.mxu0 %v1768
  %1935 = vmatpush.msra.mxu0 %v1764
  %1936 = vmatpush.msra.mxu0 %v1760
  %1937 = vmatpush.msra.mxu0 %v1756
  %1938 = vmatpush.msra.mxu0 %v1752
  %1939 = vmatpush.msra.mxu0 %v1748
  %1940 = vmatmul.f32.gmra.mxu0 %v1732
  %v1941 = vpop.f32.mrf.mxu0
  %v1942 = vadd.f32 %v1895, %v1941
  %1943 = vmatmul.f32.gmra.mxu0 %v1735
  %v1944 = vpop.f32.mrf.mxu0
  %v1945 = vadd.f32 %v1900, %v1944
  %1946 = vmatmul.f32.gmra.mxu0 %v1738
  %v1947 = vpop.f32.mrf.mxu0
  %v1948 = vadd.f32 %v1905, %v1947
  %1949 = vmatmul.f32.gmra.mxu0 %v1741
  %v1950 = vpop.f32.mrf.mxu0
  %v1951 = vadd.f32 %v1910, %v1950
  %1952 = vdwg.mxu0
  %1953 = vmatpush.msra.mxu0 %v1872
  %1954 = vmatpush.msra.mxu0 %v1868
  %1955 = vmatpush.msra.mxu0 %v1864
  %1956 = vmatpush.msra.mxu0 %v1860
  %1957 = vmatpush.msra.mxu0 %v1856
  %1958 = vmatpush.msra.mxu0 %v1852
  %1959 = vmatpush.msra.mxu0 %v1848
  %1960 = vmatpush.msra.mxu0 %v1844
  %1961 = vmatpush.msra.mxu0 %v1840
  %1962 = vmatpush.msra.mxu0 %v1836
  %1963 = vmatpush.msra.mxu0 %v1832
  %1964 = vmatpush.msra.mxu0 %v1828
  %1965 = vmatpush.msra.mxu0 %v1824
  %1966 = vmatpush.msra.mxu0 %v1820
  %1967 = vmatpush.msra.mxu0 %v1816
  %1968 = vmatpush.msra.mxu0 %v1812
  %1969 = vmatmul.f32.gmra.mxu0 %v1733
  %v1970 = vpop.f32.mrf.mxu0
  %v1971 = vadd.f32 %v1942, %v1970
  %1972 = vmatmul.f32.gmra.mxu0 %v1736
  %v1973 = vpop.f32.mrf.mxu0
  %v1974 = vadd.f32 %v1945, %v1973
  %1975 = vmatmul.f32.gmra.mxu0 %v1739
  %v1976 = vpop.f32.mrf.mxu0
  %v1977 = vadd.f32 %v1948, %v1976
  %1978 = vmatmul.f32.gmra.mxu0 %v1742
  %v1979 = vpop.f32.mrf.mxu0
  %v1980 = vadd.f32 %v1951, %v1979
  %1981 = vdwg.mxu0
  %1982 = vmatpush.msra.mxu0 0.0
  %1983 = vmatpush.msra.mxu0 0.0
  %1984 = vmatpush.msra.mxu0 0.0
  %1985 = vmatpush.msra.mxu0 0.0
  %1986 = vmatpush.msra.mxu0 0.0
  %1987 = vmatpush.msra.mxu0 0.0
  %1988 = vmatpush.msra.mxu0 0.0
  %1989 = vmatpush.msra.mxu0 0.0
  %1990 = vmatpush.msra.mxu0 0.0
  %1991 = vmatpush.msra.mxu0 0.0
  %1992 = vmatpush.msra.mxu0 0.0
  %1993 = vmatpush.msra.mxu0 0.0
  %1994 = vmatpush.msra.mxu0 %v1888
  %1995 = vmatpush.msra.mxu0 %v1884
  %1996 = vmatpush.msra.mxu0 %v1880
  %1997 = vmatpush.msra.mxu0 %v1876
  %1998 = vmatmul.f32.gmra.mxu0 %v1913
  %v1999 = vpop.f32.mrf.mxu0
  %v2000 = vadd.f32 %v1971, %v1999
  %2001 = vmatmul.f32.gmra.mxu0 %v1916
  %v2002 = vpop.f32.mrf.mxu0
  %v2003 = vadd.f32 %v1974, %v2002
  %2004 = vmatmul.f32.gmra.mxu0 %v1919
  %v2005 = vpop.f32.mrf.mxu0
  %v2006 = vadd.f32 %v1977, %v2005
  %2007 = vmatmul.f32.gmra.mxu0 %v1922
  %v2008 = vpop.f32.mrf.mxu0
  %v2009 = vadd.f32 %v1980, %v2008
  %2010 = vdwg.mxu0
  %2011 = vmatpush.msra.mxu0 %v1809
  %2012 = vmatpush.msra.mxu0 %v1805
  %2013 = vmatpush.msra.mxu0 %v1801
  %2014 = vmatpush.msra.mxu0 %v1797
  %2015 = vmatpush.msra.mxu0 %v1793
  %2016 = vmatpush.msra.mxu0 %v1789
  %2017 = vmatpush.msra.mxu0 %v1785
  %2018 = vmatpush.msra.mxu0 %v1781
  %2019 = vmatpush.msra.mxu0 %v1777
  %2020 = vmatpush.msra.mxu0 %v1773
  %2021 = vmatpush.msra.mxu0 %v1769
  %2022 = vmatpush.msra.mxu0 %v1765
  %2023 = vmatpush.msra.mxu0 %v1761
  %2024 = vmatpush.msra.mxu0 %v1757
  %2025 = vmatpush.msra.mxu0 %v1753
  %2026 = vmatpush.msra.mxu0 %v1749
  %2027 = vmatmul.f32.gmra.mxu0 %v1732
  %v2028 = vpop.f32.mrf.mxu0
  %v2029 = vadd.f32 %v1895, %v2028
  %2030 = vmatmul.f32.gmra.mxu0 %v1735
  %v2031 = vpop.f32.mrf.mxu0
  %v2032 = vadd.f32 %v1900, %v2031
  %2033 = vmatmul.f32.gmra.mxu0 %v1738
  %v2034 = vpop.f32.mrf.mxu0
  %v2035 = vadd.f32 %v1905, %v2034
  %2036 = vmatmul.f32.gmra.mxu0 %v1741
  %v2037 = vpop.f32.mrf.mxu0
  %v2038 = vadd.f32 %v1910, %v2037
  %2039 = vdwg.mxu0
  %2040 = vmatpush.msra.mxu0 %v1873
  %2041 = vmatpush.msra.mxu0 %v1869
  %2042 = vmatpush.msra.mxu0 %v1865
  %2043 = vmatpush.msra.mxu0 %v1861
  %2044 = vmatpush.msra.mxu0 %v1857
  %2045 = vmatpush.msra.mxu0 %v1853
  %2046 = vmatpush.msra.mxu0 %v1849
  %2047 = vmatpush.msra.mxu0 %v1845
  %2048 = vmatpush.msra.mxu0 %v1841
  %2049 = vmatpush.msra.mxu0 %v1837
  %2050 = vmatpush.msra.mxu0 %v1833
  %2051 = vmatpush.msra.mxu0 %v1829
  %2052 = vmatpush.msra.mxu0 %v1825
  %2053 = vmatpush.msra.mxu0 %v1821
  %2054 = vmatpush.msra.mxu0 %v1817
  %2055 = vmatpush.msra.mxu0 %v1813
  %2056 = vmatmul.f32.gmra.mxu0 %v1733
  %v2057 = vpop.f32.mrf.mxu0
  %v2058 = vadd.f32 %v2029, %v2057
  %2059 = vmatmul.f32.gmra.mxu0 %v1736
  %v2060 = vpop.f32.mrf.mxu0
  %v2061 = vadd.f32 %v2032, %v2060
  %2062 = vmatmul.f32.gmra.mxu0 %v1739
  %v2063 = vpop.f32.mrf.mxu0
  %v2064 = vadd.f32 %v2035, %v2063
  %2065 = vmatmul.f32.gmra.mxu0 %v1742
  %v2066 = vpop.f32.mrf.mxu0
  %v2067 = vadd.f32 %v2038, %v2066
  %2068 = vdwg.mxu0
  %2069 = vmatpush.msra.mxu0 0.0
  %2070 = vmatpush.msra.mxu0 0.0
  %2071 = vmatpush.msra.mxu0 0.0
  %2072 = vmatpush.msra.mxu0 0.0
  %2073 = vmatpush.msra.mxu0 0.0
  %2074 = vmatpush.msra.mxu0 0.0
  %2075 = vmatpush.msra.mxu0 0.0
  %2076 = vmatpush.msra.mxu0 0.0
  %2077 = vmatpush.msra.mxu0 0.0
  %2078 = vmatpush.msra.mxu0 0.0
  %2079 = vmatpush.msra.mxu0 0.0
  %2080 = vmatpush.msra.mxu0 0.0
  %2081 = vmatpush.msra.mxu0 %v1889
  %2082 = vmatpush.msra.mxu0 %v1885
  %2083 = vmatpush.msra.mxu0 %v1881
  %2084 = vmatpush.msra.mxu0 %v1877
  %2085 = vmatmul.f32.gmra.mxu0 %v1913
  %v2086 = vpop.f32.mrf.mxu0
  %v2087 = vadd.f32 %v2058, %v2086
  %2088 = vmatmul.f32.gmra.mxu0 %v1916
  %v2089 = vpop.f32.mrf.mxu0
  %v2090 = vadd.f32 %v2061, %v2089
  %2091 = vmatmul.f32.gmra.mxu0 %v1919
  %v2092 = vpop.f32.mrf.mxu0
  %v2093 = vadd.f32 %v2064, %v2092
  %2094 = vmatmul.f32.gmra.mxu0 %v1922
  %v2095 = vpop.f32.mrf.mxu0
  %v2096 = vadd.f32 %v2067, %v2095
  %2097 = vdwg.mxu0
  %2098 = vmatpush.msra.mxu0 %v1810
  %2099 = vmatpush.msra.mxu0 %v1806
  %2100 = vmatpush.msra.mxu0 %v1802
  %2101 = vmatpush.msra.mxu0 %v1798
  %2102 = vmatpush.msra.mxu0 %v1794
  %2103 = vmatpush.msra.mxu0 %v1790
  %2104 = vmatpush.msra.mxu0 %v1786
  %2105 = vmatpush.msra.mxu0 %v1782
  %2106 = vmatpush.msra.mxu0 %v1778
  %2107 = vmatpush.msra.mxu0 %v1774
  %2108 = vmatpush.msra.mxu0 %v1770
  %2109 = vmatpush.msra.mxu0 %v1766
  %2110 = vmatpush.msra.mxu0 %v1762
  %2111 = vmatpush.msra.mxu0 %v1758
  %2112 = vmatpush.msra.mxu0 %v1754
  %2113 = vmatpush.msra.mxu0 %v1750
  %2114 = vmatmul.f32.gmra.mxu0 %v1732
  %v2115 = vpop.f32.mrf.mxu0
  %v2116 = vadd.f32 %v1895, %v2115
  %2117 = vmatmul.f32.gmra.mxu0 %v1735
  %v2118 = vpop.f32.mrf.mxu0
  %v2119 = vadd.f32 %v1900, %v2118
  %2120 = vmatmul.f32.gmra.mxu0 %v1738
  %v2121 = vpop.f32.mrf.mxu0
  %v2122 = vadd.f32 %v1905, %v2121
  %2123 = vmatmul.f32.gmra.mxu0 %v1741
  %v2124 = vpop.f32.mrf.mxu0
  %v2125 = vadd.f32 %v1910, %v2124
  %2126 = vdwg.mxu0
  %2127 = vmatpush.msra.mxu0 %v1874
  %2128 = vmatpush.msra.mxu0 %v1870
  %2129 = vmatpush.msra.mxu0 %v1866
  %2130 = vmatpush.msra.mxu0 %v1862
  %2131 = vmatpush.msra.mxu0 %v1858
  %2132 = vmatpush.msra.mxu0 %v1854
  %2133 = vmatpush.msra.mxu0 %v1850
  %2134 = vmatpush.msra.mxu0 %v1846
  %2135 = vmatpush.msra.mxu0 %v1842
  %2136 = vmatpush.msra.mxu0 %v1838
  %2137 = vmatpush.msra.mxu0 %v1834
  %2138 = vmatpush.msra.mxu0 %v1830
  %2139 = vmatpush.msra.mxu0 %v1826
  %2140 = vmatpush.msra.mxu0 %v1822
  %2141 = vmatpush.msra.mxu0 %v1818
  %2142 = vmatpush.msra.mxu0 %v1814
  %2143 = vmatmul.f32.gmra.mxu0 %v1733
  %v2144 = vpop.f32.mrf.mxu0
  %v2145 = vadd.f32 %v2116, %v2144
  %2146 = vmatmul.f32.gmra.mxu0 %v1736
  %v2147 = vpop.f32.mrf.mxu0
  %v2148 = vadd.f32 %v2119, %v2147
  %2149 = vmatmul.f32.gmra.mxu0 %v1739
  %v2150 = vpop.f32.mrf.mxu0
  %v2151 = vadd.f32 %v2122, %v2150
  %2152 = vmatmul.f32.gmra.mxu0 %v1742
  %v2153 = vpop.f32.mrf.mxu0
  %v2154 = vadd.f32 %v2125, %v2153
  %2155 = vdwg.mxu0
  %2156 = vmatpush.msra.mxu0 0.0
  %2157 = vmatpush.msra.mxu0 0.0
  %2158 = vmatpush.msra.mxu0 0.0
  %2159 = vmatpush.msra.mxu0 0.0
  %2160 = vmatpush.msra.mxu0 0.0
  %2161 = vmatpush.msra.mxu0 0.0
  %2162 = vmatpush.msra.mxu0 0.0
  %2163 = vmatpush.msra.mxu0 0.0
  %2164 = vmatpush.msra.mxu0 0.0
  %2165 = vmatpush.msra.mxu0 0.0
  %2166 = vmatpush.msra.mxu0 0.0
  %2167 = vmatpush.msra.mxu0 0.0
  %2168 = vmatpush.msra.mxu0 %v1890
  %2169 = vmatpush.msra.mxu0 %v1886
  %2170 = vmatpush.msra.mxu0 %v1882
  %2171 = vmatpush.msra.mxu0 %v1878
  %2172 = vmatmul.f32.gmra.mxu0 %v1913
  %v2173 = vpop.f32.mrf.mxu0
  %v2174 = vadd.f32 %v2145, %v2173
  %2175 = vmatmul.f32.gmra.mxu0 %v1916
  %v2176 = vpop.f32.mrf.mxu0
  %v2177 = vadd.f32 %v2148, %v2176
  %2178 = vmatmul.f32.gmra.mxu0 %v1919
  %v2179 = vpop.f32.mrf.mxu0
  %v2180 = vadd.f32 %v2151, %v2179
  %2181 = vmatmul.f32.gmra.mxu0 %v1922
  %v2182 = vpop.f32.mrf.mxu0
  %v2183 = vadd.f32 %v2154, %v2182
  %2184 = vdwg.mxu0
  %2185 = vmatpush.msra.mxu0 %v1811
  %2186 = vmatpush.msra.mxu0 %v1807
  %2187 = vmatpush.msra.mxu0 %v1803
  %2188 = vmatpush.msra.mxu0 %v1799
  %2189 = vmatpush.msra.mxu0 %v1795
  %2190 = vmatpush.msra.mxu0 %v1791
  %2191 = vmatpush.msra.mxu0 %v1787
  %2192 = vmatpush.msra.mxu0 %v1783
  %2193 = vmatpush.msra.mxu0 %v1779
  %2194 = vmatpush.msra.mxu0 %v1775
  %2195 = vmatpush.msra.mxu0 %v1771
  %2196 = vmatpush.msra.mxu0 %v1767
  %2197 = vmatpush.msra.mxu0 %v1763
  %2198 = vmatpush.msra.mxu0 %v1759
  %2199 = vmatpush.msra.mxu0 %v1755
  %2200 = vmatpush.msra.mxu0 %v1751
  %2201 = vmatmul.f32.gmra.mxu0 %v1732
  %v2202 = vpop.f32.mrf.mxu0
  %v2203 = vadd.f32 %v1895, %v2202
  %2204 = vmatmul.f32.gmra.mxu0 %v1735
  %v2205 = vpop.f32.mrf.mxu0
  %v2206 = vadd.f32 %v1900, %v2205
  %2207 = vmatmul.f32.gmra.mxu0 %v1738
  %v2208 = vpop.f32.mrf.mxu0
  %v2209 = vadd.f32 %v1905, %v2208
  %2210 = vmatmul.f32.gmra.mxu0 %v1741
  %v2211 = vpop.f32.mrf.mxu0
  %v2212 = vadd.f32 %v1910, %v2211
  %2213 = vdwg.mxu0
  %2214 = vmatpush.msra.mxu0 %v1875
  %2215 = vmatpush.msra.mxu0 %v1871
  %2216 = vmatpush.msra.mxu0 %v1867
  %2217 = vmatpush.msra.mxu0 %v1863
  %2218 = vmatpush.msra.mxu0 %v1859
  %2219 = vmatpush.msra.mxu0 %v1855
  %2220 = vmatpush.msra.mxu0 %v1851
  %2221 = vmatpush.msra.mxu0 %v1847
  %2222 = vmatpush.msra.mxu0 %v1843
  %2223 = vmatpush.msra.mxu0 %v1839
  %2224 = vmatpush.msra.mxu0 %v1835
  %2225 = vmatpush.msra.mxu0 %v1831
  %2226 = vmatpush.msra.mxu0 %v1827
  %2227 = vmatpush.msra.mxu0 %v1823
  %2228 = vmatpush.msra.mxu0 %v1819
  %2229 = vmatpush.msra.mxu0 %v1815
  %2230 = vmatmul.f32.gmra.mxu0 %v1733
  %v2231 = vpop.f32.mrf.mxu0
  %v2232 = vadd.f32 %v2203, %v2231
  %2233 = vmatmul.f32.gmra.mxu0 %v1736
  %v2234 = vpop.f32.mrf.mxu0
  %v2235 = vadd.f32 %v2206, %v2234
  %2236 = vmatmul.f32.gmra.mxu0 %v1739
  %v2237 = vpop.f32.mrf.mxu0
  %v2238 = vadd.f32 %v2209, %v2237
  %2239 = vmatmul.f32.gmra.mxu0 %v1742
  %v2240 = vpop.f32.mrf.mxu0
  %v2241 = vadd.f32 %v2212, %v2240
  %2242 = vdwg.mxu0
  %2243 = vmatpush.msra.mxu0 0.0
  %2244 = vmatpush.msra.mxu0 0.0
  %2245 = vmatpush.msra.mxu0 0.0
  %2246 = vmatpush.msra.mxu0 0.0
  %2247 = vmatpush.msra.mxu0 0.0
  %2248 = vmatpush.msra.mxu0 0.0
  %2249 = vmatpush.msra.mxu0 0.0
  %2250 = vmatpush.msra.mxu0 0.0
  %2251 = vmatpush.msra.mxu0 0.0
  %2252 = vmatpush.msra.mxu0 0.0
  %2253 = vmatpush.msra.mxu0 0.0
  %2254 = vmatpush.msra.mxu0 0.0
  %2255 = vmatpush.msra.mxu0 %v1891
  %2256 = vmatpush.msra.mxu0 %v1887
  %2257 = vmatpush.msra.mxu0 %v1883
  %2258 = vmatpush.msra.mxu0 %v1879
  %2259 = vmatmul.f32.gmra.mxu0 %v1913
  %v2260 = vpop.f32.mrf.mxu0
  %v2261 = vadd.f32 %v2232, %v2260
  %2262 = vmatmul.f32.gmra.mxu0 %v1916
  %v2263 = vpop.f32.mrf.mxu0
  %v2264 = vadd.f32 %v2235, %v2263
  %2265 = vmatmul.f32.gmra.mxu0 %v1919
  %v2266 = vpop.f32.mrf.mxu0
  %v2267 = vadd.f32 %v2238, %v2266
  %2268 = vmatmul.f32.gmra.mxu0 %v1922
  %v2269 = vpop.f32.mrf.mxu0
  %v2270 = vadd.f32 %v2241, %v2269
  %2271 = vdwg.mxu0
  %v2272 = vmax.f32 %v2000, 0.0
  %v2273 = vmax.f32 %v2087, 0.0
  %v2274 = vmax.f32 %v2174, 0.0
  %v2275 = vmax.f32 %v2261, 0.0
  %v2276 = vmax.f32 %v2003, 0.0
  %v2277 = vmax.f32 %v2090, 0.0
  %v2278 = vmax.f32 %v2177, 0.0
  %v2279 = vmax.f32 %v2264, 0.0
  %v2280 = vmax.f32 %v2006, 0.0
  %v2281 = vmax.f32 %v2093, 0.0
  %v2282 = vmax.f32 %v2180, 0.0
  %v2283 = vmax.f32 %v2267, 0.0
  %v2284 = vmax.f32 %v2009, 0.0
  %v2285 = vmax.f32 %v2096, 0.0
  %v2286 = vmax.f32 %v2183, 0.0
  %v2287 = vmax.f32 %v2270, 0.0
  %v2288 = vadd.f32 %v2272, %v1300
  %v2289 = vadd.f32 %v2273, %v1301
  %v2290 = vadd.f32 %v2274, %v1302
  %v2291 = vadd.f32 %v2275, %v1303
  %v2292 = vadd.f32 %v2276, %v1304
  %v2293 = vadd.f32 %v2277, %v1305
  %v2294 = vadd.f32 %v2278, %v1306
  %v2295 = vadd.f32 %v2279, %v1307
  %v2296 = vadd.f32 %v2280, %v1308
  %v2297 = vadd.f32 %v2281, %v1309
  %v2298 = vadd.f32 %v2282, %v1310
  %v2299 = vadd.f32 %v2283, %v1311
  %v2300 = vadd.f32 %v2284, %v1312
  %v2301 = vadd.f32 %v2285, %v1313
  %v2302 = vadd.f32 %v2286, %v1314
  %v2303 = vadd.f32 %v2287, %v1315
  %2304 = vst [vmem:[#allocation3 + $0x100] sm:$0xff] %v2288
  %2305 = vst [vmem:[#allocation3 + $0x108] sm:$0xff] %v2289
  %2306 = vst [vmem:[#allocation3 + $0x110] sm:$0xff] %v2290
  %2307 = vst [vmem:[#allocation3 + $0x118] sm:$0xff] %v2291
  %2308 = vst [vmem:[#allocation3 + $0x120] sm:$0xff] %v2292
  %2309 = vst [vmem:[#allocation3 + $0x128] sm:$0xff] %v2293
  %2310 = vst [vmem:[#allocation3 + $0x130] sm:$0xff] %v2294
  %2311 = vst [vmem:[#allocation3 + $0x138] sm:$0xff] %v2295
  %2312 = vst [vmem:[#allocation3 + $0x140] sm:$0xff] %v2296
  %2313 = vst [vmem:[#allocation3 + $0x148] sm:$0xff] %v2297
  %2314 = vst [vmem:[#allocation3 + $0x150] sm:$0xff] %v2298
  %2315 = vst [vmem:[#allocation3 + $0x158] sm:$0xff] %v2299
  %2316 = vst [vmem:[#allocation3 + $0x160] sm:$0xff] %v2300
  %2317 = vst [vmem:[#allocation3 + $0x168] sm:$0xff] %v2301
  %2318 = vst [vmem:[#allocation3 + $0x170] sm:$0xff] %v2302
  %2319 = vst [vmem:[#allocation3 + $0x178] sm:$0xff] %v2303
  %v2320 = vld [vmem:[%s2 + $0x120] sm:$0xff]
  %v2321 = vld [vmem:[%s2 + $0x138] sm:$0xff]
  %v2322 = vld [vmem:[%s2 + $0x150] sm:$0xff]
  %v2323 = vld [vmem:[%s2 + $0x168] sm:$0xff]
  %v2324 = vld [vmem:[#allocation3] sm:$0xff]
  %v2325 = vld [vmem:[#allocation3 + $0x8] sm:$0xff]
  %v2326 = vld [vmem:[#allocation3 + $0x10] sm:$0xff]
  %v2327 = vld [vmem:[#allocation3 + $0x18] sm:$0xff]
  %v2328 = vld [vmem:[#allocation3 + $0x20] sm:$0xff]
  %v2329 = vld [vmem:[#allocation3 + $0x28] sm:$0xff]
  %v2330 = vld [vmem:[#allocation3 + $0x30] sm:$0xff]
  %v2331 = vld [vmem:[#allocation3 + $0x38] sm:$0xff]
  %v2332 = vld [vmem:[#allocation3 + $0x40] sm:$0xff]
  %v2333 = vld [vmem:[#allocation3 + $0x48] sm:$0xff]
  %v2334 = vld [vmem:[#allocation3 + $0x50] sm:$0xff]
  %v2335 = vld [vmem:[#allocation3 + $0x58] sm:$0xff]
  %v2336 = vld [vmem:[#allocation3 + $0x60] sm:$0xff]
  %v2337 = vld [vmem:[#allocation3 + $0x68] sm:$0xff]
  %v2338 = vld [vmem:[#allocation3 + $0x70] sm:$0xff]
  %v2339 = vld [vmem:[#allocation3 + $0x78] sm:$0xff]
  %v2340 = vld [vmem:[#allocation3 + $0x80] sm:$0xff]
  %v2341 = vld [vmem:[#allocation3 + $0x88] sm:$0xff]
  %v2342 = vld [vmem:[#allocation3 + $0x90] sm:$0xff]
  %v2343 = vld [vmem:[#allocation3 + $0x98] sm:$0xff]
  %v2344 = vld [vmem:[#allocation3 + $0xa0] sm:$0xff]
  %v2345 = vld [vmem:[#allocation3 + $0xa8] sm:$0xff]
  %v2346 = vld [vmem:[#allocation3 + $0xb0] sm:$0xff]
  %v2347 = vld [vmem:[#allocation3 + $0xb8] sm:$0xff]
  %v2348 = vld [vmem:[#allocation3 + $0xc0] sm:$0xff]
  %v2349 = vld [vmem:[#allocation3 + $0xc8] sm:$0xff]
  %v2350 = vld [vmem:[#allocation3 + $0xd0] sm:$0xff]
  %v2351 = vld [vmem:[#allocation3 + $0xd8] sm:$0xff]
  %v2352 = vld [vmem:[#allocation3 + $0xe0] sm:$0xff]
  %v2353 = vld [vmem:[#allocation3 + $0xe8] sm:$0xff]
  %v2354 = vld [vmem:[#allocation3 + $0xf0] sm:$0xff]
  %v2355 = vld [vmem:[#allocation3 + $0xf8] sm:$0xff]
  %v2356 = vld [vmem:[#allocation3 + $0x100] sm:$0xff]
  %v2357 = vld [vmem:[#allocation3 + $0x108] sm:$0xff]
  %v2358 = vld [vmem:[#allocation3 + $0x110] sm:$0xff]
  %v2359 = vld [vmem:[#allocation3 + $0x118] sm:$0xff]
  %v2360 = vld [vmem:[#allocation3 + $0x120] sm:$0xff]
  %v2361 = vld [vmem:[#allocation3 + $0x128] sm:$0xff]
  %v2362 = vld [vmem:[#allocation3 + $0x130] sm:$0xff]
  %v2363 = vld [vmem:[#allocation3 + $0x138] sm:$0xff]
  %v2364 = vld [vmem:[#allocation3 + $0x140] sm:$0xff]
  %v2365 = vld [vmem:[#allocation3 + $0x148] sm:$0xff]
  %v2366 = vld [vmem:[#allocation3 + $0x150] sm:$0xff]
  %v2367 = vld [vmem:[#allocation3 + $0x158] sm:$0xff]
  %v2368 = vld [vmem:[#allocation3 + $0x160] sm:$0xff]
  %v2369 = vld [vmem:[#allocation3 + $0x168] sm:$0xff]
  %v2370 = vld [vmem:[#allocation3 + $0x170] sm:$0xff]
  %v2371 = vld [vmem:[#allocation3 + $0x178] sm:$0xff]
  %v2372 = vld [vmem:[%s2 + $0x378] sm:$0xff]
  %v2373 = vld [vmem:[%s2 + $0x390] sm:$0xff]
  %v2374 = vld [vmem:[%s2 + $0x3a8] sm:$0xff]
  %v2375 = vld [vmem:[%s2 + $0x3c0] sm:$0xff]
  %2377 = vset.pattern.permute.xlu0 0
  %2378 = vperm.xlu0 %2377, %v2372
  %v2379 = vpop.permute.xlu0 %2378
  %2382 = vset.pattern.permute.xlu0 0
  %2383 = vperm.xlu0 %2382, %v2373
  %v2384 = vpop.permute.xlu0 %2383
  %2387 = vset.pattern.permute.xlu0 0
  %2388 = vperm.xlu0 %2387, %v2374
  %v2389 = vpop.permute.xlu0 %2388
  %2392 = vset.pattern.permute.xlu0 0
  %2393 = vperm.xlu0 %2392, %v2375
  %v2394 = vpop.permute.xlu0 %2393
  %vm2396 = vcmask 785408
  %v2398 = vsel %vm2396, %v2320, 0
  %v2401 = vsel %vm2396, %v2321, 0
  %v2404 = vsel %vm2396, %v2322, 0
  %v2407 = vsel %vm2396, %v2323, 0
  %2409 = vmatpush.msra.mxu0 0.0
  %2410 = vmatpush.msra.mxu0 0.0
  %2411 = vmatpush.msra.mxu0 0.0
  %2412 = vmatpush.msra.mxu0 0.0
  %2413 = vmatpush.msra.mxu0 %v2368
  %2414 = vmatpush.msra.mxu0 %v2364
  %2415 = vmatpush.msra.mxu0 %v2360
  %2416 = vmatpush.msra.mxu0 %v2356
  %2417 = vmatpush.msra.mxu0 %v2352
  %2418 = vmatpush.msra.mxu0 %v2348
  %2419 = vmatpush.msra.mxu0 %v2344
  %2420 = vmatpush.msra.mxu0 %v2340
  %2421 = vmatpush.msra.mxu0 %v2336
  %2422 = vmatpush.msra.mxu0 %v2332
  %2423 = vmatpush.msra.mxu0 %v2328
  %2424 = vmatpush.msra.mxu0 %v2324
  %2425 = vmatmul.f32.gmra.mxu0 %v2398
  %v2426 = vpop.f32.mrf.mxu0
  %v2427 = vadd.f32 %v2379, %v2426
  %2428 = vmatmul.f32.gmra.mxu0 %v2401
  %v2429 = vpop.f32.mrf.mxu0
  %v2430 = vadd.f32 %v2384, %v2429
  %2431 = vmatmul.f32.gmra.mxu0 %v2404
  %v2432 = vpop.f32.mrf.mxu0
  %v2433 = vadd.f32 %v2389, %v2432
  %2434 = vmatmul.f32.gmra.mxu0 %v2407
  %v2435 = vpop.f32.mrf.mxu0
  %v2436 = vadd.f32 %v2394, %v2435
  %2437 = vdwg.mxu0
  %2438 = vmatpush.msra.mxu0 0.0
  %2439 = vmatpush.msra.mxu0 0.0
  %2440 = vmatpush.msra.mxu0 0.0
  %2441 = vmatpush.msra.mxu0 0.0
  %2442 = vmatpush.msra.mxu0 %v2369
  %2443 = vmatpush.msra.mxu0 %v2365
  %2444 = vmatpush.msra.mxu0 %v2361
  %2445 = vmatpush.msra.mxu0 %v2357
  %2446 = vmatpush.msra.mxu0 %v2353
  %2447 = vmatpush.msra.mxu0 %v2349
  %2448 = vmatpush.msra.mxu0 %v2345
  %2449 = vmatpush.msra.mxu0 %v2341
  %2450 = vmatpush.msra.mxu0 %v2337
  %2451 = vmatpush.msra.mxu0 %v2333
  %2452 = vmatpush.msra.mxu0 %v2329
  %2453 = vmatpush.msra.mxu0 %v2325
  %2454 = vmatmul.f32.gmra.mxu0 %v2398
  %v2455 = vpop.f32.mrf.mxu0
  %v2456 = vadd.f32 %v2379, %v2455
  %2457 = vmatmul.f32.gmra.mxu0 %v2401
  %v2458 = vpop.f32.mrf.mxu0
  %v2459 = vadd.f32 %v2384, %v2458
  %2460 = vmatmul.f32.gmra.mxu0 %v2404
  %v2461 = vpop.f32.mrf.mxu0
  %v2462 = vadd.f32 %v2389, %v2461
  %2463 = vmatmul.f32.gmra.mxu0 %v2407
  %v2464 = vpop.f32.mrf.mxu0
  %v2465 = vadd.f32 %v2394, %v2464
  %2466 = vdwg.mxu0
  %2467 = vmatpush.msra.mxu0 0.0
  %2468 = vmatpush.msra.mxu0 0.0
  %2469 = vmatpush.msra.mxu0 0.0
  %2470 = vmatpush.msra.mxu0 0.0
  %2471 = vmatpush.msra.mxu0 %v2370
  %2472 = vmatpush.msra.mxu0 %v2366
  %2473 = vmatpush.msra.mxu0 %v2362
  %2474 = vmatpush.msra.mxu0 %v2358
  %2475 = vmatpush.msra.mxu0 %v2354
  %2476 = vmatpush.msra.mxu0 %v2350
  %2477 = vmatpush.msra.mxu0 %v2346
  %2478 = vmatpush.msra.mxu0 %v2342
  %2479 = vmatpush.msra.mxu0 %v2338
  %2480 = vmatpush.msra.mxu0 %v2334
  %2481 = vmatpush.msra.mxu0 %v2330
  %2482 = vmatpush.msra.mxu0 %v2326
  %2483 = vmatmul.f32.gmra.mxu0 %v2398
  %v2484 = vpop.f32.mrf.mxu0
  %v2485 = vadd.f32 %v2379, %v2484
  %2486 = vmatmul.f32.gmra.mxu0 %v2401
  %v2487 = vpop.f32.mrf.mxu0
  %v2488 = vadd.f32 %v2384, %v2487
  %2489 = vmatmul.f32.gmra.mxu0 %v2404
  %v2490 = vpop.f32.mrf.mxu0
  %v2491 = vadd.f32 %v2389, %v2490
  %2492 = vmatmul.f32.gmra.mxu0 %v2407
  %v2493 = vpop.f32.mrf.mxu0
  %v2494 = vadd.f32 %v2394, %v2493
  %2495 = vdwg.mxu0
  %2496 = vmatpush.msra.mxu0 0.0
  %2497 = vmatpush.msra.mxu0 0.0
  %2498 = vmatpush.msra.mxu0 0.0
  %2499 = vmatpush.msra.mxu0 0.0
  %2500 = vmatpush.msra.mxu0 %v2371
  %2501 = vmatpush.msra.mxu0 %v2367
  %2502 = vmatpush.msra.mxu0 %v2363
  %2503 = vmatpush.msra.mxu0 %v2359
  %2504 = vmatpush.msra.mxu0 %v2355
  %2505 = vmatpush.msra.mxu0 %v2351
  %2506 = vmatpush.msra.mxu0 %v2347
  %2507 = vmatpush.msra.mxu0 %v2343
  %2508 = vmatpush.msra.mxu0 %v2339
  %2509 = vmatpush.msra.mxu0 %v2335
  %2510 = vmatpush.msra.mxu0 %v2331
  %2511 = vmatpush.msra.mxu0 %v2327
  %2512 = vmatmul.f32.gmra.mxu0 %v2398
  %v2513 = vpop.f32.mrf.mxu0
  %v2514 = vadd.f32 %v2379, %v2513
  %2515 = vmatmul.f32.gmra.mxu0 %v2401
  %v2516 = vpop.f32.mrf.mxu0
  %v2517 = vadd.f32 %v2384, %v2516
  %2518 = vmatmul.f32.gmra.mxu0 %v2404
  %v2519 = vpop.f32.mrf.mxu0
  %v2520 = vadd.f32 %v2389, %v2519
  %2521 = vmatmul.f32.gmra.mxu0 %v2407
  %v2522 = vpop.f32.mrf.mxu0
  %v2523 = vadd.f32 %v2394, %v2522
  %2524 = vdwg.mxu0
  %2525 = vmax.xlane.f32.xlu0 %v2427
  %v2526 = vpop.xlane.xlu0 %2525
  %2527 = vmax.xlane.f32.xlu0 %v2430
  %v2528 = vpop.xlane.xlu0 %2527
  %2529 = vmax.xlane.f32.xlu0 %v2433
  %v2530 = vpop.xlane.xlu0 %2529
  %2531 = vmax.xlane.f32.xlu0 %v2436
  %v2532 = vpop.xlane.xlu0 %2531
  %2533 = vst [vmem:[#allocation3 + $0x180] sm:$0xff] %v2526
  %2534 = vst [vmem:[#allocation3 + $0x1a0] sm:$0xff] %v2528
  %2535 = vst [vmem:[#allocation3 + $0x1c0] sm:$0xff] %v2530
  %2536 = vst [vmem:[#allocation3 + $0x1e0] sm:$0xff] %v2532
  %2537 = vmax.xlane.f32.xlu0 %v2456
  %v2538 = vpop.xlane.xlu0 %2537
  %2539 = vmax.xlane.f32.xlu0 %v2459
  %v2540 = vpop.xlane.xlu0 %2539
  %2541 = vmax.xlane.f32.xlu0 %v2462
  %v2542 = vpop.xlane.xlu0 %2541
  %2543 = vmax.xlane.f32.xlu0 %v2465
  %v2544 = vpop.xlane.xlu0 %2543
  %2545 = vst [vmem:[#allocation3 + $0x188] sm:$0xff] %v2538
  %2546 = vst [vmem:[#allocation3 + $0x1a8] sm:$0xff] %v2540
  %2547 = vst [vmem:[#allocation3 + $0x1c8] sm:$0xff] %v2542
  %2548 = vst [vmem:[#allocation3 + $0x1e8] sm:$0xff] %v2544
  %2549 = vmax.xlane.f32.xlu0 %v2485
  %v2550 = vpop.xlane.xlu0 %2549
  %2551 = vmax.xlane.f32.xlu0 %v2488
  %v2552 = vpop.xlane.xlu0 %2551
  %2553 = vmax.xlane.f32.xlu0 %v2491
  %v2554 = vpop.xlane.xlu0 %2553
  %2555 = vmax.xlane.f32.xlu0 %v2494
  %v2556 = vpop.xlane.xlu0 %2555
  %2557 = vst [vmem:[#allocation3 + $0x190] sm:$0xff] %v2550
  %2558 = vst [vmem:[#allocation3 + $0x1b0] sm:$0xff] %v2552
  %2559 = vst [vmem:[#allocation3 + $0x1d0] sm:$0xff] %v2554
  %2560 = vst [vmem:[#allocation3 + $0x1f0] sm:$0xff] %v2556
  %2561 = vmax.xlane.f32.xlu0 %v2514
  %v2562 = vpop.xlane.xlu0 %2561
  %2563 = vmax.xlane.f32.xlu0 %v2517
  %v2564 = vpop.xlane.xlu0 %2563
  %2565 = vmax.xlane.f32.xlu0 %v2520
  %v2566 = vpop.xlane.xlu0 %2565
  %2567 = vmax.xlane.f32.xlu0 %v2523
  %v2568 = vpop.xlane.xlu0 %2567
  %2569 = vst [vmem:[#allocation3 + $0x198] sm:$0xff] %v2562
  %2570 = vst [vmem:[#allocation3 + $0x1b8] sm:$0xff] %v2564
  %2571 = vst [vmem:[#allocation3 + $0x1d8] sm:$0xff] %v2566
  %2572 = vst [vmem:[#allocation3 + $0x1f8] sm:$0xff] %v2568
  %v2573 = vld [vmem:[%s2 + $0x180] sm:$0xff]
  %v2574 = vld [vmem:[%s2 + $0x198] sm:$0xff]
  %v2575 = vld [vmem:[%s2 + $0x1b0] sm:$0xff]
  %v2576 = vld [vmem:[%s2 + $0x1c8] sm:$0xff]
  %v2577 = vld [vmem:[%s2 + $0x1e0] sm:$0xff]
  %v2578 = vld [vmem:[%s2 + $0x1f8] sm:$0xff]
  %v2579 = vld [vmem:[%s2 + $0x210] sm:$0xff]
  %v2580 = vld [vmem:[%s2 + $0x228] sm:$0xff]
  %v2581 = vld [vmem:[#allocation3] sm:$0xff]
  %v2582 = vld [vmem:[#allocation3 + $0x8] sm:$0xff]
  %v2583 = vld [vmem:[#allocation3 + $0x10] sm:$0xff]
  %v2584 = vld [vmem:[#allocation3 + $0x18] sm:$0xff]
  %v2585 = vld [vmem:[#allocation3 + $0x20] sm:$0xff]
  %v2586 = vld [vmem:[#allocation3 + $0x28] sm:$0xff]
  %v2587 = vld [vmem:[#allocation3 + $0x30] sm:$0xff]
  %v2588 = vld [vmem:[#allocation3 + $0x38] sm:$0xff]
  %v2589 = vld [vmem:[#allocation3 + $0x40] sm:$0xff]
  %v2590 = vld [vmem:[#allocation3 + $0x48] sm:$0xff]
  %v2591 = vld [vmem:[#allocation3 + $0x50] sm:$0xff]
  %v2592 = vld [vmem:[#allocation3 + $0x58] sm:$0xff]
  %v2593 = vld [vmem:[#allocation3 + $0x60] sm:$0xff]
  %v2594 = vld [vmem:[#allocation3 + $0x68] sm:$0xff]
  %v2595 = vld [vmem:[#allocation3 + $0x70] sm:$0xff]
  %v2596 = vld [vmem:[#allocation3 + $0x78] sm:$0xff]
  %v2597 = vld [vmem:[#allocation3 + $0x80] sm:$0xff]
  %v2598 = vld [vmem:[#allocation3 + $0x88] sm:$0xff]
  %v2599 = vld [vmem:[#allocation3 + $0x90] sm:$0xff]
  %v2600 = vld [vmem:[#allocation3 + $0x98] sm:$0xff]
  %v2601 = vld [vmem:[#allocation3 + $0xa0] sm:$0xff]
  %v2602 = vld [vmem:[#allocation3 + $0xa8] sm:$0xff]
  %v2603 = vld [vmem:[#allocation3 + $0xb0] sm:$0xff]
  %v2604 = vld [vmem:[#allocation3 + $0xb8] sm:$0xff]
  %v2605 = vld [vmem:[#allocation3 + $0xc0] sm:$0xff]
  %v2606 = vld [vmem:[#allocation3 + $0xc8] sm:$0xff]
  %v2607 = vld [vmem:[#allocation3 + $0xd0] sm:$0xff]
  %v2608 = vld [vmem:[#allocation3 + $0xd8] sm:$0xff]
  %v2609 = vld [vmem:[#allocation3 + $0xe0] sm:$0xff]
  %v2610 = vld [vmem:[#allocation3 + $0xe8] sm:$0xff]
  %v2611 = vld [vmem:[#allocation3 + $0xf0] sm:$0xff]
  %v2612 = vld [vmem:[#allocation3 + $0xf8] sm:$0xff]
  %v2613 = vld [vmem:[#allocation3 + $0x100] sm:$0xff]
  %v2614 = vld [vmem:[#allocation3 + $0x108] sm:$0xff]
  %v2615 = vld [vmem:[#allocation3 + $0x110] sm:$0xff]
  %v2616 = vld [vmem:[#allocation3 + $0x118] sm:$0xff]
  %v2617 = vld [vmem:[#allocation3 + $0x120] sm:$0xff]
  %v2618 = vld [vmem:[#allocation3 + $0x128] sm:$0xff]
  %v2619 = vld [vmem:[#allocation3 + $0x130] sm:$0xff]
  %v2620 = vld [vmem:[#allocation3 + $0x138] sm:$0xff]
  %v2621 = vld [vmem:[#allocation3 + $0x140] sm:$0xff]
  %v2622 = vld [vmem:[#allocation3 + $0x148] sm:$0xff]
  %v2623 = vld [vmem:[#allocation3 + $0x150] sm:$0xff]
  %v2624 = vld [vmem:[#allocation3 + $0x158] sm:$0xff]
  %v2625 = vld [vmem:[#allocation3 + $0x160] sm:$0xff]
  %v2626 = vld [vmem:[#allocation3 + $0x168] sm:$0xff]
  %v2627 = vld [vmem:[#allocation3 + $0x170] sm:$0xff]
  %v2628 = vld [vmem:[#allocation3 + $0x178] sm:$0xff]
  %v2629 = vld [vmem:[#allocation3 + $0x180] sm:$0xff]
  %v2630 = vld [vmem:[#allocation3 + $0x188] sm:$0xff]
  %v2631 = vld [vmem:[#allocation3 + $0x190] sm:$0xff]
  %v2632 = vld [vmem:[#allocation3 + $0x198] sm:$0xff]
  %v2633 = vld [vmem:[#allocation3 + $0x1a0] sm:$0xff]
  %v2634 = vld [vmem:[#allocation3 + $0x1a8] sm:$0xff]
  %v2635 = vld [vmem:[#allocation3 + $0x1b0] sm:$0xff]
  %v2636 = vld [vmem:[#allocation3 + $0x1b8] sm:$0xff]
  %v2637 = vld [vmem:[#allocation3 + $0x1c0] sm:$0xff]
  %v2638 = vld [vmem:[#allocation3 + $0x1c8] sm:$0xff]
  %v2639 = vld [vmem:[#allocation3 + $0x1d0] sm:$0xff]
  %v2640 = vld [vmem:[#allocation3 + $0x1d8] sm:$0xff]
  %v2641 = vld [vmem:[#allocation3 + $0x1e0] sm:$0xff]
  %v2642 = vld [vmem:[#allocation3 + $0x1e8] sm:$0xff]
  %v2643 = vld [vmem:[#allocation3 + $0x1f0] sm:$0xff]
  %v2644 = vld [vmem:[#allocation3 + $0x1f8] sm:$0xff]
  %v2645 = vld [vmem:[%s2 + $0x3d8] sm:$0xff]
  %v2646 = vld [vmem:[%s2 + $0x3f0] sm:$0xff]
  %v2647 = vld [vmem:[%s2 + $0x408] sm:$0xff]
  %v2648 = vld [vmem:[%s2 + $0x420] sm:$0xff]
  %v2649 = vld [vmem:[%s2 + $0x438] sm:$0xff]
  %v2650 = vld [vmem:[%s2 + $0x450] sm:$0xff]
  %v2651 = vld [vmem:[%s2 + $0x468] sm:$0xff]
  %v2652 = vld [vmem:[%s2 + $0x480] sm:$0xff]
  %2654 = vset.pattern.permute.xlu0 0
  %2655 = vperm.xlu0 %2654, %v2645
  %v2656 = vpop.permute.xlu0 %2655
  %2659 = vset.pattern.permute.xlu0 0
  %2660 = vperm.xlu0 %2659, %v2646
  %v2661 = vpop.permute.xlu0 %2660
  %2664 = vset.pattern.permute.xlu0 0
  %2665 = vperm.xlu0 %2664, %v2647
  %v2666 = vpop.permute.xlu0 %2665
  %2669 = vset.pattern.permute.xlu0 0
  %2670 = vperm.xlu0 %2669, %v2648
  %v2671 = vpop.permute.xlu0 %2670
  %2674 = vset.pattern.permute.xlu0 0
  %2675 = vperm.xlu0 %2674, %v2649
  %v2676 = vpop.permute.xlu0 %2675
  %2679 = vset.pattern.permute.xlu0 0
  %2680 = vperm.xlu0 %2679, %v2650
  %v2681 = vpop.permute.xlu0 %2680
  %2684 = vset.pattern.permute.xlu0 0
  %2685 = vperm.xlu0 %2684, %v2651
  %v2686 = vpop.permute.xlu0 %2685
  %2689 = vset.pattern.permute.xlu0 0
  %2690 = vperm.xlu0 %2689, %v2652
  %v2691 = vpop.permute.xlu0 %2690
  %2693 = vmatpush.msra.mxu0 %v2641
  %2694 = vmatpush.msra.mxu0 %v2637
  %2695 = vmatpush.msra.mxu0 %v2633
  %2696 = vmatpush.msra.mxu0 %v2629
  %2697 = vmatpush.msra.mxu0 %v2625
  %2698 = vmatpush.msra.mxu0 %v2621
  %2699 = vmatpush.msra.mxu0 %v2617
  %2700 = vmatpush.msra.mxu0 %v2613
  %2701 = vmatpush.msra.mxu0 %v2609
  %2702 = vmatpush.msra.mxu0 %v2605
  %2703 = vmatpush.msra.mxu0 %v2601
  %2704 = vmatpush.msra.mxu0 %v2597
  %2705 = vmatpush.msra.mxu0 %v2593
  %2706 = vmatpush.msra.mxu0 %v2589
  %2707 = vmatpush.msra.mxu0 %v2585
  %2708 = vmatpush.msra.mxu0 %v2581
  %2709 = vmatmul.f32.gmra.mxu0 %v2573
  %v2710 = vpop.f32.mrf.mxu0
  %v2711 = vadd.f32 %v2656, %v2710
  %2712 = vmatmul.f32.gmra.mxu0 %v2574
  %v2713 = vpop.f32.mrf.mxu0
  %v2714 = vadd.f32 %v2661, %v2713
  %2715 = vmatmul.f32.gmra.mxu0 %v2575
  %v2716 = vpop.f32.mrf.mxu0
  %v2717 = vadd.f32 %v2666, %v2716
  %2718 = vmatmul.f32.gmra.mxu0 %v2576
  %v2719 = vpop.f32.mrf.mxu0
  %v2720 = vadd.f32 %v2671, %v2719
  %2721 = vmatmul.f32.gmra.mxu0 %v2577
  %v2722 = vpop.f32.mrf.mxu0
  %v2723 = vadd.f32 %v2676, %v2722
  %2724 = vmatmul.f32.gmra.mxu0 %v2578
  %v2725 = vpop.f32.mrf.mxu0
  %v2726 = vadd.f32 %v2681, %v2725
  %2727 = vmatmul.f32.gmra.mxu0 %v2579
  %v2728 = vpop.f32.mrf.mxu0
  %v2729 = vadd.f32 %v2686, %v2728
  %2730 = vmatmul.f32.gmra.mxu0 %v2580
  %v2731 = vpop.f32.mrf.mxu0
  %v2732 = vadd.f32 %v2691, %v2731
  %2733 = vdwg.mxu0
  %2734 = vmatpush.msra.mxu0 %v2642
  %2735 = vmatpush.msra.mxu0 %v2638
  %2736 = vmatpush.msra.mxu0 %v2634
  %2737 = vmatpush.msra.mxu0 %v2630
  %2738 = vmatpush.msra.mxu0 %v2626
  %2739 = vmatpush.msra.mxu0 %v2622
  %2740 = vmatpush.msra.mxu0 %v2618
  %2741 = vmatpush.msra.mxu0 %v2614
  %2742 = vmatpush.msra.mxu0 %v2610
  %2743 = vmatpush.msra.mxu0 %v2606
  %2744 = vmatpush.msra.mxu0 %v2602
  %2745 = vmatpush.msra.mxu0 %v2598
  %2746 = vmatpush.msra.mxu0 %v2594
  %2747 = vmatpush.msra.mxu0 %v2590
  %2748 = vmatpush.msra.mxu0 %v2586
  %2749 = vmatpush.msra.mxu0 %v2582
  %2750 = vmatmul.f32.gmra.mxu0 %v2573
  %v2751 = vpop.f32.mrf.mxu0
  %v2752 = vadd.f32 %v2656, %v2751
  %2753 = vmatmul.f32.gmra.mxu0 %v2574
  %v2754 = vpop.f32.mrf.mxu0
  %v2755 = vadd.f32 %v2661, %v2754
  %2756 = vmatmul.f32.gmra.mxu0 %v2575
  %v2757 = vpop.f32.mrf.mxu0
  %v2758 = vadd.f32 %v2666, %v2757
  %2759 = vmatmul.f32.gmra.mxu0 %v2576
  %v2760 = vpop.f32.mrf.mxu0
  %v2761 = vadd.f32 %v2671, %v2760
  %2762 = vmatmul.f32.gmra.mxu0 %v2577
  %v2763 = vpop.f32.mrf.mxu0
  %v2764 = vadd.f32 %v2676, %v2763
  %2765 = vmatmul.f32.gmra.mxu0 %v2578
  %v2766 = vpop.f32.mrf.mxu0
  %v2767 = vadd.f32 %v2681, %v2766
  %2768 = vmatmul.f32.gmra.mxu0 %v2579
  %v2769 = vpop.f32.mrf.mxu0
  %v2770 = vadd.f32 %v2686, %v2769
  %2771 = vmatmul.f32.gmra.mxu0 %v2580
  %v2772 = vpop.f32.mrf.mxu0
  %v2773 = vadd.f32 %v2691, %v2772
  %2774 = vdwg.mxu0
  %2775 = vmatpush.msra.mxu0 %v2643
  %2776 = vmatpush.msra.mxu0 %v2639
  %2777 = vmatpush.msra.mxu0 %v2635
  %2778 = vmatpush.msra.mxu0 %v2631
  %2779 = vmatpush.msra.mxu0 %v2627
  %2780 = vmatpush.msra.mxu0 %v2623
  %2781 = vmatpush.msra.mxu0 %v2619
  %2782 = vmatpush.msra.mxu0 %v2615
  %2783 = vmatpush.msra.mxu0 %v2611
  %2784 = vmatpush.msra.mxu0 %v2607
  %2785 = vmatpush.msra.mxu0 %v2603
  %2786 = vmatpush.msra.mxu0 %v2599
  %2787 = vmatpush.msra.mxu0 %v2595
  %2788 = vmatpush.msra.mxu0 %v2591
  %2789 = vmatpush.msra.mxu0 %v2587
  %2790 = vmatpush.msra.mxu0 %v2583
  %2791 = vmatmul.f32.gmra.mxu0 %v2573
  %v2792 = vpop.f32.mrf.mxu0
  %v2793 = vadd.f32 %v2656, %v2792
  %2794 = vmatmul.f32.gmra.mxu0 %v2574
  %v2795 = vpop.f32.mrf.mxu0
  %v2796 = vadd.f32 %v2661, %v2795
  %2797 = vmatmul.f32.gmra.mxu0 %v2575
  %v2798 = vpop.f32.mrf.mxu0
  %v2799 = vadd.f32 %v2666, %v2798
  %2800 = vmatmul.f32.gmra.mxu0 %v2576
  %v2801 = vpop.f32.mrf.mxu0
  %v2802 = vadd.f32 %v2671, %v2801
  %2803 = vmatmul.f32.gmra.mxu0 %v2577
  %v2804 = vpop.f32.mrf.mxu0
  %v2805 = vadd.f32 %v2676, %v2804
  %2806 = vmatmul.f32.gmra.mxu0 %v2578
  %v2807 = vpop.f32.mrf.mxu0
  %v2808 = vadd.f32 %v2681, %v2807
  %2809 = vmatmul.f32.gmra.mxu0 %v2579
  %v2810 = vpop.f32.mrf.mxu0
  %v2811 = vadd.f32 %v2686, %v2810
  %2812 = vmatmul.f32.gmra.mxu0 %v2580
  %v2813 = vpop.f32.mrf.mxu0
  %v2814 = vadd.f32 %v2691, %v2813
  %2815 = vdwg.mxu0
  %2816 = vmatpush.msra.mxu0 %v2644
  %2817 = vmatpush.msra.mxu0 %v2640
  %2818 = vmatpush.msra.mxu0 %v2636
  %2819 = vmatpush.msra.mxu0 %v2632
  %2820 = vmatpush.msra.mxu0 %v2628
  %2821 = vmatpush.msra.mxu0 %v2624
  %2822 = vmatpush.msra.mxu0 %v2620
  %2823 = vmatpush.msra.mxu0 %v2616
  %2824 = vmatpush.msra.mxu0 %v2612
  %2825 = vmatpush.msra.mxu0 %v2608
  %2826 = vmatpush.msra.mxu0 %v2604
  %2827 = vmatpush.msra.mxu0 %v2600
  %2828 = vmatpush.msra.mxu0 %v2596
  %2829 = vmatpush.msra.mxu0 %v2592
  %2830 = vmatpush.msra.mxu0 %v2588
  %2831 = vmatpush.msra.mxu0 %v2584
  %2832 = vmatmul.f32.gmra.mxu0 %v2573
  %v2833 = vpop.f32.mrf.mxu0
  %v2834 = vadd.f32 %v2656, %v2833
  %2835 = vmatmul.f32.gmra.mxu0 %v2574
  %v2836 = vpop.f32.mrf.mxu0
  %v2837 = vadd.f32 %v2661, %v2836
  %2838 = vmatmul.f32.gmra.mxu0 %v2575
  %v2839 = vpop.f32.mrf.mxu0
  %v2840 = vadd.f32 %v2666, %v2839
  %2841 = vmatmul.f32.gmra.mxu0 %v2576
  %v2842 = vpop.f32.mrf.mxu0
  %v2843 = vadd.f32 %v2671, %v2842
  %2844 = vmatmul.f32.gmra.mxu0 %v2577
  %v2845 = vpop.f32.mrf.mxu0
  %v2846 = vadd.f32 %v2676, %v2845
  %2847 = vmatmul.f32.gmra.mxu0 %v2578
  %v2848 = vpop.f32.mrf.mxu0
  %v2849 = vadd.f32 %v2681, %v2848
  %2850 = vmatmul.f32.gmra.mxu0 %v2579
  %v2851 = vpop.f32.mrf.mxu0
  %v2852 = vadd.f32 %v2686, %v2851
  %2853 = vmatmul.f32.gmra.mxu0 %v2580
  %v2854 = vpop.f32.mrf.mxu0
  %v2855 = vadd.f32 %v2691, %v2854
  %2856 = vdwg.mxu0
  %v2857 = vmax.f32 %v2711, 0.0
  %v2858 = vmax.f32 %v2752, 0.0
  %v2859 = vmax.f32 %v2793, 0.0
  %v2860 = vmax.f32 %v2834, 0.0
  %v2861 = vmax.f32 %v2714, 0.0
  %v2862 = vmax.f32 %v2755, 0.0
  %v2863 = vmax.f32 %v2796, 0.0
  %v2864 = vmax.f32 %v2837, 0.0
  %v2865 = vmax.f32 %v2717, 0.0
  %v2866 = vmax.f32 %v2758, 0.0
  %v2867 = vmax.f32 %v2799, 0.0
  %v2868 = vmax.f32 %v2840, 0.0
  %v2869 = vmax.f32 %v2720, 0.0
  %v2870 = vmax.f32 %v2761, 0.0
  %v2871 = vmax.f32 %v2802, 0.0
  %v2872 = vmax.f32 %v2843, 0.0
  %v2873 = vmax.f32 %v2723, 0.0
  %v2874 = vmax.f32 %v2764, 0.0
  %v2875 = vmax.f32 %v2805, 0.0
  %v2876 = vmax.f32 %v2846, 0.0
  %v2877 = vmax.f32 %v2726, 0.0
  %v2878 = vmax.f32 %v2767, 0.0
  %v2879 = vmax.f32 %v2808, 0.0
  %v2880 = vmax.f32 %v2849, 0.0
  %v2881 = vmax.f32 %v2729, 0.0
  %v2882 = vmax.f32 %v2770, 0.0
  %v2883 = vmax.f32 %v2811, 0.0
  %v2884 = vmax.f32 %v2852, 0.0
  %v2885 = vmax.f32 %v2732, 0.0
  %v2886 = vmax.f32 %v2773, 0.0
  %v2887 = vmax.f32 %v2814, 0.0
  %v2888 = vmax.f32 %v2855, 0.0
  %v2889 = vld [vmem:[%s2 + $0x240] sm:$0x3]
  %v2890 = vld [vmem:[%s2 + $0x498] sm:$0x3]
  %2892 = vset.pattern.permute.xlu0 0
  %2893 = vperm.xlu0 %2892, %v2890
  %v2894 = vpop.permute.xlu0 %2893
  %vm2896 = vcmask 523264
  %v2898 = vsel %vm2896, %v2889, 0
  %2900 = vmatpush.msra.mxu0 0.0
  %2901 = vmatpush.msra.mxu0 0.0
  %2902 = vmatpush.msra.mxu0 0.0
  %2903 = vmatpush.msra.mxu0 0.0
  %2904 = vmatpush.msra.mxu0 0.0
  %2905 = vmatpush.msra.mxu0 0.0
  %2906 = vmatpush.msra.mxu0 0.0
  %2907 = vmatpush.msra.mxu0 0.0
  %2908 = vmatpush.msra.mxu0 %v2885
  %2909 = vmatpush.msra.mxu0 %v2881
  %2910 = vmatpush.msra.mxu0 %v2877
  %2911 = vmatpush.msra.mxu0 %v2873
  %2912 = vmatpush.msra.mxu0 %v2869
  %2913 = vmatpush.msra.mxu0 %v2865
  %2914 = vmatpush.msra.mxu0 %v2861
  %2915 = vmatpush.msra.mxu0 %v2857
  %2916 = vmatmul.f32.gmra.mxu0 %v2898
  %v2917 = vpop.f32.mrf.mxu0
  %v2918 = vadd.f32 %v2894, %v2917
  %2919 = vdwg.mxu0
  %2920 = vmatpush.msra.mxu0 0.0
  %2921 = vmatpush.msra.mxu0 0.0
  %2922 = vmatpush.msra.mxu0 0.0
  %2923 = vmatpush.msra.mxu0 0.0
  %2924 = vmatpush.msra.mxu0 0.0
  %2925 = vmatpush.msra.mxu0 0.0
  %2926 = vmatpush.msra.mxu0 0.0
  %2927 = vmatpush.msra.mxu0 0.0
  %2928 = vmatpush.msra.mxu0 %v2886
  %2929 = vmatpush.msra.mxu0 %v2882
  %2930 = vmatpush.msra.mxu0 %v2878
  %2931 = vmatpush.msra.mxu0 %v2874
  %2932 = vmatpush.msra.mxu0 %v2870
  %2933 = vmatpush.msra.mxu0 %v2866
  %2934 = vmatpush.msra.mxu0 %v2862
  %2935 = vmatpush.msra.mxu0 %v2858
  %2936 = vmatmul.f32.gmra.mxu0 %v2898
  %v2937 = vpop.f32.mrf.mxu0
  %v2938 = vadd.f32 %v2894, %v2937
  %2939 = vdwg.mxu0
  %2940 = vmatpush.msra.mxu0 0.0
  %2941 = vmatpush.msra.mxu0 0.0
  %2942 = vmatpush.msra.mxu0 0.0
  %2943 = vmatpush.msra.mxu0 0.0
  %2944 = vmatpush.msra.mxu0 0.0
  %2945 = vmatpush.msra.mxu0 0.0
  %2946 = vmatpush.msra.mxu0 0.0
  %2947 = vmatpush.msra.mxu0 0.0
  %2948 = vmatpush.msra.mxu0 %v2887
  %2949 = vmatpush.msra.mxu0 %v2883
  %2950 = vmatpush.msra.mxu0 %v2879
  %2951 = vmatpush.msra.mxu0 %v2875
  %2952 = vmatpush.msra.mxu0 %v2871
  %2953 = vmatpush.msra.mxu0 %v2867
  %2954 = vmatpush.msra.mxu0 %v2863
  %2955 = vmatpush.msra.mxu0 %v2859
  %2956 = vmatmul.f32.gmra.mxu0 %v2898
  %v2957 = vpop.f32.mrf.mxu0
  %v2958 = vadd.f32 %v2894, %v2957
  %2959 = vdwg.mxu0
  %2960 = vmatpush.msra.mxu0 0.0
  %2961 = vmatpush.msra.mxu0 0.0
  %2962 = vmatpush.msra.mxu0 0.0
  %2963 = vmatpush.msra.mxu0 0.0
  %2964 = vmatpush.msra.mxu0 0.0
  %2965 = vmatpush.msra.mxu0 0.0
  %2966 = vmatpush.msra.mxu0 0.0
  %2967 = vmatpush.msra.mxu0 0.0
  %2968 = vmatpush.msra.mxu0 %v2888
  %2969 = vmatpush.msra.mxu0 %v2884
  %2970 = vmatpush.msra.mxu0 %v2880
  %2971 = vmatpush.msra.mxu0 %v2876
  %2972 = vmatpush.msra.mxu0 %v2872
  %2973 = vmatpush.msra.mxu0 %v2868
  %2974 = vmatpush.msra.mxu0 %v2864
  %2975 = vmatpush.msra.mxu0 %v2860
  %2976 = vmatmul.f32.gmra.mxu0 %v2898
  %v2977 = vpop.f32.mrf.mxu0
  %v2978 = vadd.f32 %v2894, %v2977
  %2979 = vdwg.mxu0
  %v2980 = vld [vmem:[%s1] sm:$0xff]
  %v2981 = vmul.f32 %v2980, 4.0
  %v2986 = vrot.slane %v2938, 6
  %v2987 = vrot.slane %v2958, 4
  %v2988 = vrot.slane %v2978, 2
  %vm2989 = vcmask 1041408
  %v2990 = vsel %vm2989, %v2918, %v2986
  %vm2991 = vcmask 1045508
  %v2992 = vsel %vm2991, %v2987, %v2988
  %vm2993 = vcmask 1043456
  %v2994 = vsel %vm2993, %v2990, %v2992
  %v2996 = vadd.f32 %v2981, %v2994
  %2997 = vst [vmem:[%s3] sm:$0xff] %v2996
  // Predicated region
  $region14: #{evolution_ms_infer.3} parent=0 // pred_check
    _
  $region15: #{evolution_ms_infer.3} parent=0 // pred_check_branch
    %2999 = sbr.rel (0) target = $region17
  $region16: #{evolution_ms_infer.3} parent=0 // pred_region
    _
  $region17: #{evolution_ms_infer.3} parent=0 // pred_fallthru
    _
  // Predicated region
  $region18: #{evolution_ms_infer.3} parent=0 // pred_check
    _
  $region19: #{evolution_ms_infer.3} parent=0 // pred_check_branch
    %3001 = sbr.rel (0) target = $region21
  $region20: #{evolution_ms_infer.3} parent=0 // pred_region
    _
  $region21: #{evolution_ms_infer.3} parent=0 // pred_fallthru
    _

</llo_original>
